<compile_context>
chip_gen: v5e
topology: v5e:2x2
jax: 0.10.0
libtpu: 0.0.40
codegen_flags: <defaults>
</compile_context>

<pallas_src>
from functools import partial

import jax
import jax.numpy as jnp
from jax.experimental import pallas as pl
from jax.experimental.pallas import tpu as pltpu

EPS = 1e-5


# --------------------------------------------------------------------------- #
# helpers
# --------------------------------------------------------------------------- #
def _pick_row_tile(m):
    """Largest MXU-friendly row tile that divides the flattened N*H*W rows."""
    for t in (256, 512, 1024, 128, 64, 32, 16, 8):
        if m % t == 0:
            return t
    return m


def _cparams(block_bytes, extra_bytes=0):
    """Explicit scoped-VMEM limit: 2x (double-buffered) per-step block bytes
    plus an estimate of in-kernel temporaries, clamped under v7x's 64 MiB."""
    limit = 2 * int(block_bytes) + int(extra_bytes) + (8 << 20)
    limit = min(48 << 20, max(32 << 20, limit))
    return pltpu.CompilerParams(
        dimension_semantics=("parallel",), vmem_limit_bytes=int(limit))


def _fold_bn(stats, count, gamma, beta):
    """Reduce per-tile (sum, sumsq) partials and fold BN into scale/shift."""
    c = stats.shape[-1]
    s = stats.reshape(-1, 8, c)
    total = jnp.sum(s[:, 0, :], axis=0)
    total_sq = jnp.sum(s[:, 1, :], axis=0)
    mean = total / count
    var = jnp.maximum(total_sq / count - mean * mean, 0.0)   # biased batch var
    inv = jax.lax.rsqrt(var + EPS)
    scale = gamma.reshape(-1) * inv
    shift = beta.reshape(-1) - mean * scale
    return (scale.reshape(1, c).astype(jnp.float32),
            shift.reshape(1, c).astype(jnp.float32))


# --------------------------------------------------------------------------- #
# kernels
# --------------------------------------------------------------------------- #
def _pointwise_conv_kernel(x_ref, scale_ref, shift_ref, w_ref,
                           out_ref, stats_ref, *, apply_bn_relu):
    """(optional BN-apply + ReLU) -> 1x1 conv (channel matmul) -> BN partials."""
    a = x_ref[...].astype(jnp.float32)                        # (TM, Cin)
    if apply_bn_relu:
        a = jnp.maximum(a * scale_ref[...] + shift_ref[...], 0.0)
    o = jnp.dot(a.astype(jnp.bfloat16), w_ref[...],
                preferred_element_type=jnp.float32)           # (TM, Cout) f32
    out_ref[...] = o.astype(out_ref.dtype)
    stats_ref[...] = jnp.concatenate(
        [jnp.sum(o, axis=0, keepdims=True),
         jnp.sum(o * o, axis=0, keepdims=True),
         jnp.zeros((6, o.shape[1]), jnp.float32)], axis=0)    # (8, Cout)


def _conv3x3_kernel(o1_ref, scale_ref, shift_ref, w_ref, o2_ref, stats_ref):
    """BN1-apply + ReLU -> 3x3 conv (pad=1) as ONE im2col matmul -> BN partials.

    Processes one full image per grid step (grid over N); the 1-pixel halo is
    built with two thin zero-concats instead of a zero-filled padded scratch.
    """
    _, H, W, C = o1_ref.shape
    a = o1_ref[...].reshape(H, W, C).astype(jnp.float32)
    a = jnp.maximum(a * scale_ref[...].reshape(1, 1, C)
                    + shift_ref[...].reshape(1, 1, C), 0.0)
    a = a.astype(jnp.bfloat16)

    zrow = jnp.zeros((1, W, C), a.dtype)
    ap = jnp.concatenate([zrow, a, zrow], axis=0)             # (H+2, W,   C)
    zcol = jnp.zeros((H + 2, 1, C), a.dtype)
    ap = jnp.concatenate([zcol, ap, zcol], axis=1)            # (H+2, W+2, C)

    taps = [ap[dy:dy + H, dx:dx + W, :] for dy in range(3) for dx in range(3)]
    col = jnp.concatenate(taps, axis=-1).reshape(H * W, 9 * C)  # im2col slab
    o = jnp.dot(col, w_ref[...], preferred_element_type=jnp.float32)  # (H*W, C)

    o2_ref[...] = o.reshape(1, H, W, C).astype(o2_ref.dtype)
    stats_ref[...] = jnp.concatenate(
        [jnp.sum(o, axis=0, keepdims=True),
         jnp.sum(o * o, axis=0, keepdims=True),
         jnp.zeros((6, C), jnp.float32)], axis=0)


def _bn_residual_relu_kernel(o_ref, x_ref, scale_ref, shift_ref, out_ref):
    """BN3-apply (folded scale/shift) + identity residual + ReLU."""
    o = o_ref[...] * scale_ref[...] + shift_ref[...]
    out_ref[...] = jnp.maximum(o + x_ref[...], 0.0)


# --------------------------------------------------------------------------- #
# forward wrapper (NHWC-native)
# --------------------------------------------------------------------------- #
@jax.jit
def bottleneck_forward(x_nhwc, params):
    """x_nhwc: (N, H, W, Cin) float32, Cin == planes*4 (identity residual)."""
    w1, g1, b1, w2, g2, b2, w3, g3, b3 = params
    N, H, W, Cin = x_nhwc.shape
    Cmid = w1.shape[1]
    Cout = w3.shape[1]
    assert Cout == Cin, "downsample=None requires inplanes == planes*4"

    x = x_nhwc.astype(jnp.float32)
    M = N * H * W
    x2d = x.reshape(M, Cin)                      # free reshape (NHWC row-major)
    TM = _pick_row_tile(M)
    GM = M // TM

    # weights: bf16 MXU operands; w2 reshaped for the fused im2col matmul
    w1b = w1.astype(jnp.bfloat16)
    w2b = w2.reshape(9 * Cmid, Cmid).astype(jnp.bfloat16)
    w3b = w3.astype(jnp.bfloat16)

    ones_cin = jnp.ones((1, Cin), jnp.float32)   # unused dummies for stage 1
    zeros_cin = jnp.zeros((1, Cin), jnp.float32)

    # ---- stage 1: conv1 (1x1) + BN1 per-tile partial stats -----------------
    o1, st1 = pl.pallas_call(
        partial(_pointwise_conv_kernel, apply_bn_relu=False),
        out_shape=(jax.ShapeDtypeStruct((M, Cmid), jnp.float32),
                   jax.ShapeDtypeStruct((GM * 8, Cmid), jnp.float32)),
        grid=(GM,),
        in_specs=[pl.BlockSpec((TM, Cin), lambda i: (i, 0)),
                  pl.BlockSpec((1, Cin), lambda i: (0, 0)),
                  pl.BlockSpec((1, Cin), lambda i: (0, 0)),
                  pl.BlockSpec((Cin, Cmid), lambda i: (0, 0))],
        out_specs=(pl.BlockSpec((TM, Cmid), lambda i: (i, 0)),
                   pl.BlockSpec((8, Cmid), lambda i: (i, 0))),
        compiler_params=_cparams(
            TM * Cin * 4 + TM * Cmid * 4 + 8 * Cmid * 4 + Cin * Cmid * 2,
            extra_bytes=2 * TM * Cin * 4),
    )(x2d, ones_cin, zeros_cin, w1b)
    scale1, shift1 = _fold_bn(st1, float(M), g1, b1)

    # ---- stage 2: BN1-apply + ReLU + conv2 (3x3) + BN2 partial stats -------
    o1i = o1.reshape(N, H, W, Cmid)
    o2, st2 = pl.pallas_call(
        _conv3x3_kernel,
        out_shape=(jax.ShapeDtypeStruct((N, H, W, Cmid), jnp.float32),
                   jax.ShapeDtypeStruct((N * 8, Cmid), jnp.float32)),
        grid=(N,),
        in_specs=[pl.BlockSpec((1, H, W, Cmid), lambda n: (n, 0, 0, 0)),
                  pl.BlockSpec((1, Cmid), lambda n: (0, 0)),
                  pl.BlockSpec((1, Cmid), lambda n: (0, 0)),
                  pl.BlockSpec((9 * Cmid, Cmid), lambda n: (0, 0))],
        out_specs=(pl.BlockSpec((1, H, W, Cmid), lambda n: (n, 0, 0, 0)),
                   pl.BlockSpec((8, Cmid), lambda n: (n, 0))),
        compiler_params=_cparams(
            2 * H * W * Cmid * 4 + 8 * Cmid * 4 + 9 * Cmid * Cmid * 2,
            extra_bytes=(H + 2) * (W + 2) * Cmid * 2
            + 2 * H * W * 9 * Cmid * 2 + H * W * Cmid * 4),
    )(o1i, scale1, shift1, w2b)
    scale2, shift2 = _fold_bn(st2, float(M), g2, b2)

    # ---- stage 3: BN2-apply + ReLU + conv3 (1x1) + BN3 partial stats -------
    o2f = o2.reshape(M, Cmid)
    o3, st3 = pl.pallas_call(
        partial(_pointwise_conv_kernel, apply_bn_relu=True),
        out_shape=(jax.ShapeDtypeStruct((M, Cout), jnp.float32),
                   jax.ShapeDtypeStruct((GM * 8, Cout), jnp.float32)),
        grid=(GM,),
        in_specs=[pl.BlockSpec((TM, Cmid), lambda i: (i, 0)),
                  pl.BlockSpec((1, Cmid), lambda i: (0, 0)),
                  pl.BlockSpec((1, Cmid), lambda i: (0, 0)),
                  pl.BlockSpec((Cmid, Cout), lambda i: (0, 0))],
        out_specs=(pl.BlockSpec((TM, Cout), lambda i: (i, 0)),
                   pl.BlockSpec((8, Cout), lambda i: (i, 0))),
        compiler_params=_cparams(
            TM * Cmid * 4 + TM * Cout * 4 + 8 * Cout * 4 + Cmid * Cout * 2,
            extra_bytes=2 * TM * Cout * 4),
    )(o2f, scale2, shift2, w3b)
    scale3, shift3 = _fold_bn(st3, float(M), g3, b3)

    # ---- stage 4: BN3-apply + identity residual + ReLU ---------------------
    out = pl.pallas_call(
        _bn_residual_relu_kernel,
        out_shape=jax.ShapeDtypeStruct((M, Cout), jnp.float32),
        grid=(GM,),
        in_specs=[pl.BlockSpec((TM, Cout), lambda i: (i, 0)),
                  pl.BlockSpec((TM, Cout), lambda i: (i, 0)),
                  pl.BlockSpec((1, Cout), lambda i: (0, 0)),
                  pl.BlockSpec((1, Cout), lambda i: (0, 0))],
        out_specs=pl.BlockSpec((TM, Cout), lambda i: (i, 0)),
        compiler_params=_cparams(3 * TM * Cout * 4),
    )(o3, x2d, scale3, shift3)

    return out.reshape(N, H, W, Cout)


# --------------------------------------------------------------------------- #
# synthetic params + pure-JAX reference
# --------------------------------------------------------------------------- #
def make_params(key, inplanes, planes):
    """Deterministic synthetic parameters (shapes match nn.Module __init__)."""
    cout = planes * 4
    k1, k2, k3 = jax.random.split(key, 3)
    w1 = jax.random.normal(k1, (inplanes, planes), jnp.float32) * 0.1
    w2 = jax.random.normal(k2, (3, 3, planes, planes), jnp.float32) * 0.1  # HWIO
    w3 = jax.random.normal(k3, (planes, cout), jnp.float32) * 0.1
    # BatchNorm2d default init: weight(gamma)=1, bias(beta)=0
    g1, b1 = jnp.ones((1, planes), jnp.float32), jnp.zeros((1, planes), jnp.float32)
    g2, b2 = jnp.ones((1, planes), jnp.float32), jnp.zeros((1, planes), jnp.float32)
    g3, b3 = jnp.ones((1, cout), jnp.float32), jnp.zeros((1, cout), jnp.float32)
    return (w1, g1, b1, w2, g2, b2, w3, g3, b3)


def bottleneck_reference_nhwc(x, params):
    """Pure-JAX f32 reference (training-mode BN with batch statistics)."""
    w1, g1, b1, w2, g2, b2, w3, g3, b3 = params

    def bn(o, g, b):
        mu = o.mean(axis=(0, 1, 2), keepdims=True)
        var = ((o - mu) ** 2).mean(axis=(0, 1, 2), keepdims=True)
        return (o - mu) * jax.lax.rsqrt(var + EPS) * g.reshape(1, 1, 1, -1) \
            + b.reshape(1, 1, 1, -1)

    o = jnp.einsum('nhwc,cd->nhwd', x, w1)
    o = jax.nn.relu(bn(o, g1, b1))
    o = jax.lax.conv_general_dilated(
        o, w2, window_strides=(1, 1), padding=((1, 1), (1, 1)),
        dimension_numbers=('NHWC', 'HWIO', 'NHWC'))
    o = jax.nn.relu(bn(o, g2, b2))
    o = jnp.einsum('nhwc,cd->nhwd', o, w3)
    o = bn(o, g3, b3)
    return jax.nn.relu(o + x)


# --------------------------------------------------------------------------- #
if __name__ == "__main__":
    # Small shapes consistent with Bottleneck(inplanes=128, planes=32):
    # channels chosen so the residual path is lane-dense (Cin = Cout = 128).
    N, inplanes, planes, H, W = 2, 128, 32, 16, 16

    key = jax.random.PRNGKey(0)
    kx, kp = jax.random.split(key)
    x_nchw = jax.random.normal(kx, (N, inplanes, H, W), jnp.float32)  # PyTorch layout
    params = make_params(kp, inplanes, planes)

    # One-time layout conversion at the PyTorch boundary; the kernel pipeline
    # itself is NHWC-native (no transposes in the hot path).
    x_nhwc = jnp.transpose(x_nchw, (0, 2, 3, 1))

    out = bottleneck_forward(x_nhwc, params)
    out = jax.block_until_ready(out)

    ref = bottleneck_reference_nhwc(x_nhwc, params)
    assert out.shape == (N, H, W, planes * 4)
    max_err = float(jnp.max(jnp.abs(out - ref)))
    # bf16 MXU operands (f32 accumulation) -> loosened tolerance vs f32 reference
    assert jnp.allclose(out, ref, rtol=5e-2, atol=5e-2), \
        f"max abs err = {max_err}"

    print("KERNEL_OK")
</pallas_src>

<mosaic_0001>
module attributes {stable_mosaic.version = 11 : i64} {
  func.func @_pointwise_conv_kernel(%arg0: i32, %arg1: memref<256x128xf32, #tpu.memory_space<vmem>>, %arg2: memref<1x128xf32, #tpu.memory_space<vmem>>, %arg3: memref<1x128xf32, #tpu.memory_space<vmem>>, %arg4: memref<128x32xbf16, #tpu.memory_space<vmem>>, %arg5: memref<256x32xf32, #tpu.memory_space<vmem>>, %arg6: memref<8x32xf32, #tpu.memory_space<vmem>>) attributes {dimension_semantics = [#tpu.dimension_semantics<parallel>], iteration_bounds = array<i64: 2>, scalar_prefetch = 0 : i64, scratch_operands = 0 : i64, tpu.core_type = #tpu.core_type<tc>, window_params = [{transform_indices = @transform_0, window_bounds = array<i64: 256, 128>}, {pipeline_mode = #tpu.pipeline_mode<synchronous>, transform_indices = @transform_1, window_bounds = array<i64: 1, 128>}, {pipeline_mode = #tpu.pipeline_mode<synchronous>, transform_indices = @transform_2, window_bounds = array<i64: 1, 128>}, {pipeline_mode = #tpu.pipeline_mode<synchronous>, transform_indices = @transform_3, window_bounds = array<i64: 128, 32>}, {transform_indices = @transform_4, window_bounds = array<i64: 256, 32>}, {transform_indices = @transform_5, window_bounds = array<i64: 8, 32>}]} {
    %c0 = arith.constant 0 : index
    %c0_0 = arith.constant 0 : index
    %0 = vector.load %arg1[%c0, %c0_0] : memref<256x128xf32, #tpu.memory_space<vmem>>, vector<256x128xf32>
    %1 = arith.truncf %0 : vector<256x128xf32> to vector<256x128xbf16>
    %c0_1 = arith.constant 0 : index
    %c0_2 = arith.constant 0 : index
    %2 = vector.load %arg4[%c0_1, %c0_2] : memref<128x32xbf16, #tpu.memory_space<vmem>>, vector<128x32xbf16>
    %cst = arith.constant dense<0.000000e+00> : vector<256x32xf32>
    %3 = tpu.matmul %1, %2, %cst {dimension_numbers = #tpu.dot_dimension_numbers<[1], [0], [0], [1], [0, 0, 1, 1], [], []>} : vector<256x128xbf16>, vector<128x32xbf16>, vector<256x32xf32> -> vector<256x32xf32>
    %c0_3 = arith.constant 0 : index
    %c0_4 = arith.constant 0 : index
    %4 = vector.load %arg5[%c0_3, %c0_4] : memref<256x32xf32, #tpu.memory_space<vmem>>, vector<256x32xf32>
    tpu.vector_store %arg5[%c0_3, %c0_4], %3 {strides = array<i32>} : memref<256x32xf32, #tpu.memory_space<vmem>>, vector<256x32xf32>,
    %cst_5 = arith.constant dense<0.000000e+00> : vector<32xf32>
    %5 = vector.multi_reduction <add>, %3, %cst_5 [0] : vector<256x32xf32> to vector<32xf32>
    %6 = vector.shape_cast %5 : vector<32xf32> to vector<1x32xf32>
    %7 = arith.mulf %3, %3 : vector<256x32xf32>
    %cst_6 = arith.constant dense<0.000000e+00> : vector<32xf32>
    %8 = vector.multi_reduction <add>, %7, %cst_6 [0] : vector<256x32xf32> to vector<32xf32>
    %9 = vector.shape_cast %8 : vector<32xf32> to vector<1x32xf32>
    %cst_7 = arith.constant 0.000000e+00 : f32
    %10 = vector.broadcast %cst_7 : f32 to vector<6x32xf32>
    %11 = tpu.concatenate %6, %9, %10 in 0 : vector<1x32xf32>, vector<1x32xf32>, vector<6x32xf32> -> vector<8x32xf32>
    %c0_8 = arith.constant 0 : index
    %c0_9 = arith.constant 0 : index
    %12 = vector.load %arg6[%c0_8, %c0_9] : memref<8x32xf32, #tpu.memory_space<vmem>>, vector<8x32xf32>
    tpu.vector_store %arg6[%c0_8, %c0_9], %11 {strides = array<i32>} : memref<8x32xf32, #tpu.memory_space<vmem>>, vector<8x32xf32>,
    return
  }
  func.func @transform_0(%arg0: i32) -> (i32, i32) {
    %c0_i32 = arith.constant 0 : i32
    %c0_i32_0 = arith.constant 0 : i32
    return %arg0, %c0_i32 : i32, i32
  }
  func.func @transform_1(%arg0: i32) -> (i32, i32) {
    %c0_i32 = arith.constant 0 : i32
    %c0_i32_0 = arith.constant 0 : i32
    %c0_i32_1 = arith.constant 0 : i32
    return %c0_i32, %c0_i32_0 : i32, i32
  }
  func.func @transform_2(%arg0: i32) -> (i32, i32) {
    %c0_i32 = arith.constant 0 : i32
    %c0_i32_0 = arith.constant 0 : i32
    %c0_i32_1 = arith.constant 0 : i32
    return %c0_i32, %c0_i32_0 : i32, i32
  }
  func.func @transform_3(%arg0: i32) -> (i32, i32) {
    %c0_i32 = arith.constant 0 : i32
    %c0_i32_0 = arith.constant 0 : i32
    %c0_i32_1 = arith.constant 0 : i32
    return %c0_i32, %c0_i32_0 : i32, i32
  }
  func.func @transform_4(%arg0: i32) -> (i32, i32) {
    %c0_i32 = arith.constant 0 : i32
    %c0_i32_0 = arith.constant 0 : i32
    return %arg0, %c0_i32 : i32, i32
  }
  func.func @transform_5(%arg0: i32) -> (i32, i32) {
    %c0_i32 = arith.constant 0 : i32
    %c0_i32_0 = arith.constant 0 : i32
    return %arg0, %c0_i32 : i32, i32
  }
}

module attributes {stable_mosaic.version = 11 : i64} {
  func.func @_conv3x3_kernel(%arg0: i32, %arg1: memref<1x16x16x32xf32, #tpu.memory_space<vmem>>, %arg2: memref<1x32xf32, #tpu.memory_space<vmem>>, %arg3: memref<1x32xf32, #tpu.memory_space<vmem>>, %arg4: memref<288x32xbf16, #tpu.memory_space<vmem>>, %arg5: memref<1x16x16x32xf32, #tpu.memory_space<vmem>>, %arg6: memref<8x32xf32, #tpu.memory_space<vmem>>) attributes {dimension_semantics = [#tpu.dimension_semantics<parallel>], iteration_bounds = array<i64: 2>, scalar_prefetch = 0 : i64, scratch_operands = 0 : i64, tpu.core_type = #tpu.core_type<tc>, window_params = [{transform_indices = @transform_0, window_bounds = array<i64: 1, 16, 16, 32>}, {pipeline_mode = #tpu.pipeline_mode<synchronous>, transform_indices = @transform_1, window_bounds = array<i64: 1, 32>}, {pipeline_mode = #tpu.pipeline_mode<synchronous>, transform_indices = @transform_2, window_bounds = array<i64: 1, 32>}, {pipeline_mode = #tpu.pipeline_mode<synchronous>, transform_indices = @transform_3, window_bounds = array<i64: 288, 32>}, {transform_indices = @transform_4, window_bounds = array<i64: 1, 16, 16, 32>}, {transform_indices = @transform_5, window_bounds = array<i64: 8, 32>}]} {
    %c0 = arith.constant 0 : index
    %c0_0 = arith.constant 0 : index
    %c0_1 = arith.constant 0 : index
    %c0_2 = arith.constant 0 : index
    %0 = vector.load %arg1[%c0, %c0_0, %c0_1, %c0_2] : memref<1x16x16x32xf32, #tpu.memory_space<vmem>>, vector<1x16x16x32xf32>
    %1 = vector.shape_cast %0 : vector<1x16x16x32xf32> to vector<16x16x32xf32>
    %c0_3 = arith.constant 0 : index
    %c0_4 = arith.constant 0 : index
    %2 = vector.load %arg2[%c0_3, %c0_4] : memref<1x32xf32, #tpu.memory_space<vmem>>, vector<1x32xf32>
    %3 = vector.shape_cast %2 : vector<1x32xf32> to vector<1x1x32xf32>
    %4 = vector.broadcast %3 : vector<1x1x32xf32> to vector<16x16x32xf32>
    %5 = arith.mulf %1, %4 : vector<16x16x32xf32>
    %c0_5 = arith.constant 0 : index
    %c0_6 = arith.constant 0 : index
    %6 = vector.load %arg3[%c0_5, %c0_6] : memref<1x32xf32, #tpu.memory_space<vmem>>, vector<1x32xf32>
    %7 = vector.shape_cast %6 : vector<1x32xf32> to vector<1x1x32xf32>
    %8 = vector.broadcast %7 : vector<1x1x32xf32> to vector<16x16x32xf32>
    %9 = arith.addf %5, %8 : vector<16x16x32xf32>
    %cst = arith.constant 0.000000e+00 : f32
    %10 = vector.broadcast %cst : f32 to vector<16x16x32xf32>
    %11 = arith.maximumf %9, %10 : vector<16x16x32xf32>
    %12 = arith.truncf %11 : vector<16x16x32xf32> to vector<16x16x32xbf16>
    %cst_7 = arith.constant 0.000000e+00 : bf16
    %13 = vector.broadcast %cst_7 : bf16 to vector<1x16x32xbf16>
    %14 = tpu.concatenate %13, %12, %13 in 0 : vector<1x16x32xbf16>, vector<16x16x32xbf16>, vector<1x16x32xbf16> -> vector<18x16x32xbf16>
    %cst_8 = arith.constant 0.000000e+00 : bf16
    %15 = vector.broadcast %cst_8 : bf16 to vector<18x1x32xbf16>
    %16 = tpu.concatenate %15, %14, %15 in 1 : vector<18x1x32xbf16>, vector<18x16x32xbf16>, vector<18x1x32xbf16> -> vector<18x18x32xbf16>
    %17 = vector.extract_strided_slice %16 {offsets = [0, 0, 0], sizes = [16, 16, 32], strides = [1, 1, 1]} : vector<18x18x32xbf16> to vector<16x16x32xbf16>
    %18 = vector.extract_strided_slice %16 {offsets = [0, 1, 0], sizes = [16, 16, 32], strides = [1, 1, 1]} : vector<18x18x32xbf16> to vector<16x16x32xbf16>
    %19 = vector.extract_strided_slice %16 {offsets = [0, 2, 0], sizes = [16, 16, 32], strides = [1, 1, 1]} : vector<18x18x32xbf16> to vector<16x16x32xbf16>
    %20 = vector.extract_strided_slice %16 {offsets = [1, 0, 0], sizes = [16, 16, 32], strides = [1, 1, 1]} : vector<18x18x32xbf16> to vector<16x16x32xbf16>
    %21 = vector.extract_strided_slice %16 {offsets = [1, 1, 0], sizes = [16, 16, 32], strides = [1, 1, 1]} : vector<18x18x32xbf16> to vector<16x16x32xbf16>
    %22 = vector.extract_strided_slice %16 {offsets = [1, 2, 0], sizes = [16, 16, 32], strides = [1, 1, 1]} : vector<18x18x32xbf16> to vector<16x16x32xbf16>
    %23 = vector.extract_strided_slice %16 {offsets = [2, 0, 0], sizes = [16, 16, 32], strides = [1, 1, 1]} : vector<18x18x32xbf16> to vector<16x16x32xbf16>
    %24 = vector.extract_strided_slice %16 {offsets = [2, 1, 0], sizes = [16, 16, 32], strides = [1, 1, 1]} : vector<18x18x32xbf16> to vector<16x16x32xbf16>
    %25 = vector.extract_strided_slice %16 {offsets = [2, 2, 0], sizes = [16, 16, 32], strides = [1, 1, 1]} : vector<18x18x32xbf16> to vector<16x16x32xbf16>
    %26 = tpu.concatenate %17, %18, %19, %20, %21, %22, %23, %24, %25 in 2 : vector<16x16x32xbf16>, vector<16x16x32xbf16>, vector<16x16x32xbf16>, vector<16x16x32xbf16>, vector<16x16x32xbf16>, vector<16x16x32xbf16>, vector<16x16x32xbf16>, vector<16x16x32xbf16>, vector<16x16x32xbf16> -> vector<16x16x288xbf16>
    %27 = vector.shape_cast %26 : vector<16x16x288xbf16> to vector<256x288xbf16>
    %c0_9 = arith.constant 0 : index
    %c0_10 = arith.constant 0 : index
    %28 = vector.load %arg4[%c0_9, %c0_10] : memref<288x32xbf16, #tpu.memory_space<vmem>>, vector<288x32xbf16>
    %cst_11 = arith.constant dense<0.000000e+00> : vector<256x32xf32>
    %29 = tpu.matmul %27, %28, %cst_11 {dimension_numbers = #tpu.dot_dimension_numbers<[1], [0], [0], [1], [0, 0, 1, 1], [], []>} : vector<256x288xbf16>, vector<288x32xbf16>, vector<256x32xf32> -> vector<256x32xf32>
    %30 = vector.shape_cast %29 : vector<256x32xf32> to vector<1x16x16x32xf32>
    %c0_12 = arith.constant 0 : index
    %c0_13 = arith.constant 0 : index
    %c0_14 = arith.constant 0 : index
    %c0_15 = arith.constant 0 : index
    %31 = vector.load %arg5[%c0_12, %c0_13, %c0_14, %c0_15] : memref<1x16x16x32xf32, #tpu.memory_space<vmem>>, vector<1x16x16x32xf32>
    tpu.vector_store %arg5[%c0_12, %c0_13, %c0_14, %c0_15], %30 {strides = array<i32>} : memref<1x16x16x32xf32, #tpu.memory_space<vmem>>, vector<1x16x16x32xf32>,
    %cst_16 = arith.constant dense<0.000000e+00> : vector<32xf32>
    %32 = vector.multi_reduction <add>, %29, %cst_16 [0] : vector<256x32xf32> to vector<32xf32>
    %33 = vector.shape_cast %32 : vector<32xf32> to vector<1x32xf32>
    %34 = arith.mulf %29, %29 : vector<256x32xf32>
    %cst_17 = arith.constant dense<0.000000e+00> : vector<32xf32>
    %35 = vector.multi_reduction <add>, %34, %cst_17 [0] : vector<256x32xf32> to vector<32xf32>
    %36 = vector.shape_cast %35 : vector<32xf32> to vector<1x32xf32>
    %cst_18 = arith.constant 0.000000e+00 : f32
    %37 = vector.broadcast %cst_18 : f32 to vector<6x32xf32>
    %38 = tpu.concatenate %33, %36, %37 in 0 : vector<1x32xf32>, vector<1x32xf32>, vector<6x32xf32> -> vector<8x32xf32>
    %c0_19 = arith.constant 0 : index
    %c0_20 = arith.constant 0 : index
    %39 = vector.load %arg6[%c0_19, %c0_20] : memref<8x32xf32, #tpu.memory_space<vmem>>, vector<8x32xf32>
    tpu.vector_store %arg6[%c0_19, %c0_20], %38 {strides = array<i32>} : memref<8x32xf32, #tpu.memory_space<vmem>>, vector<8x32xf32>,
    return
  }
  func.func @transform_0(%arg0: i32) -> (i32, i32, i32, i32) {
    %c0_i32 = arith.constant 0 : i32
    %c0_i32_0 = arith.constant 0 : i32
    %c0_i32_1 = arith.constant 0 : i32
    %c0_i32_2 = arith.constant 0 : i32
    return %arg0, %c0_i32, %c0_i32_0, %c0_i32_1 : i32, i32, i32, i32
  }
  func.func @transform_1(%arg0: i32) -> (i32, i32) {
    %c0_i32 = arith.constant 0 : i32
    %c0_i32_0 = arith.constant 0 : i32
    %c0_i32_1 = arith.constant 0 : i32
    return %c0_i32, %c0_i32_0 : i32, i32
  }
  func.func @transform_2(%arg0: i32) -> (i32, i32) {
    %c0_i32 = arith.constant 0 : i32
    %c0_i32_0 = arith.constant 0 : i32
    %c0_i32_1 = arith.constant 0 : i32
    return %c0_i32, %c0_i32_0 : i32, i32
  }
  func.func @transform_3(%arg0: i32) -> (i32, i32) {
    %c0_i32 = arith.constant 0 : i32
    %c0_i32_0 = arith.constant 0 : i32
    %c0_i32_1 = arith.constant 0 : i32
    return %c0_i32, %c0_i32_0 : i32, i32
  }
  func.func @transform_4(%arg0: i32) -> (i32, i32, i32, i32) {
    %c0_i32 = arith.constant 0 : i32
    %c0_i32_0 = arith.constant 0 : i32
    %c0_i32_1 = arith.constant 0 : i32
    %c0_i32_2 = arith.constant 0 : i32
    return %arg0, %c0_i32, %c0_i32_0, %c0_i32_1 : i32, i32, i32, i32
  }
  func.func @transform_5(%arg0: i32) -> (i32, i32) {
    %c0_i32 = arith.constant 0 : i32
    %c0_i32_0 = arith.constant 0 : i32
    return %arg0, %c0_i32 : i32, i32
  }
}

module attributes {stable_mosaic.version = 11 : i64} {
  func.func @_pointwise_conv_kernel(%arg0: i32, %arg1: memref<256x32xf32, #tpu.memory_space<vmem>>, %arg2: memref<1x32xf32, #tpu.memory_space<vmem>>, %arg3: memref<1x32xf32, #tpu.memory_space<vmem>>, %arg4: memref<32x128xbf16, #tpu.memory_space<vmem>>, %arg5: memref<256x128xf32, #tpu.memory_space<vmem>>, %arg6: memref<8x128xf32, #tpu.memory_space<vmem>>) attributes {dimension_semantics = [#tpu.dimension_semantics<parallel>], iteration_bounds = array<i64: 2>, scalar_prefetch = 0 : i64, scratch_operands = 0 : i64, tpu.core_type = #tpu.core_type<tc>, window_params = [{transform_indices = @transform_0, window_bounds = array<i64: 256, 32>}, {pipeline_mode = #tpu.pipeline_mode<synchronous>, transform_indices = @transform_1, window_bounds = array<i64: 1, 32>}, {pipeline_mode = #tpu.pipeline_mode<synchronous>, transform_indices = @transform_2, window_bounds = array<i64: 1, 32>}, {pipeline_mode = #tpu.pipeline_mode<synchronous>, transform_indices = @transform_3, window_bounds = array<i64: 32, 128>}, {transform_indices = @transform_4, window_bounds = array<i64: 256, 128>}, {transform_indices = @transform_5, window_bounds = array<i64: 8, 128>}]} {
    %c0 = arith.constant 0 : index
    %c0_0 = arith.constant 0 : index
    %0 = vector.load %arg1[%c0, %c0_0] : memref<256x32xf32, #tpu.memory_space<vmem>>, vector<256x32xf32>
    %c0_1 = arith.constant 0 : index
    %c0_2 = arith.constant 0 : index
    %1 = vector.load %arg2[%c0_1, %c0_2] : memref<1x32xf32, #tpu.memory_space<vmem>>, vector<1x32xf32>
    %2 = vector.broadcast %1 : vector<1x32xf32> to vector<256x32xf32>
    %3 = arith.mulf %0, %2 : vector<256x32xf32>
    %c0_3 = arith.constant 0 : index
    %c0_4 = arith.constant 0 : index
    %4 = vector.load %arg3[%c0_3, %c0_4] : memref<1x32xf32, #tpu.memory_space<vmem>>, vector<1x32xf32>
    %5 = vector.broadcast %4 : vector<1x32xf32> to vector<256x32xf32>
    %6 = arith.addf %3, %5 : vector<256x32xf32>
    %cst = arith.constant 0.000000e+00 : f32
    %7 = vector.broadcast %cst : f32 to vector<256x32xf32>
    %8 = arith.maximumf %6, %7 : vector<256x32xf32>
    %9 = arith.truncf %8 : vector<256x32xf32> to vector<256x32xbf16>
    %c0_5 = arith.constant 0 : index
    %c0_6 = arith.constant 0 : index
    %10 = vector.load %arg4[%c0_5, %c0_6] : memref<32x128xbf16, #tpu.memory_space<vmem>>, vector<32x128xbf16>
    %cst_7 = arith.constant dense<0.000000e+00> : vector<256x128xf32>
    %11 = tpu.matmul %9, %10, %cst_7 {dimension_numbers = #tpu.dot_dimension_numbers<[1], [0], [0], [1], [0, 0, 1, 1], [], []>} : vector<256x32xbf16>, vector<32x128xbf16>, vector<256x128xf32> -> vector<256x128xf32>
    %c0_8 = arith.constant 0 : index
    %c0_9 = arith.constant 0 : index
    %12 = vector.load %arg5[%c0_8, %c0_9] : memref<256x128xf32, #tpu.memory_space<vmem>>, vector<256x128xf32>
    tpu.vector_store %arg5[%c0_8, %c0_9], %11 {strides = array<i32>} : memref<256x128xf32, #tpu.memory_space<vmem>>, vector<256x128xf32>,
    %cst_10 = arith.constant dense<0.000000e+00> : vector<128xf32>
    %13 = vector.multi_reduction <add>, %11, %cst_10 [0] : vector<256x128xf32> to vector<128xf32>
    %14 = vector.shape_cast %13 : vector<128xf32> to vector<1x128xf32>
    %15 = arith.mulf %11, %11 : vector<256x128xf32>
    %cst_11 = arith.constant dense<0.000000e+00> : vector<128xf32>
    %16 = vector.multi_reduction <add>, %15, %cst_11 [0] : vector<256x128xf32> to vector<128xf32>
    %17 = vector.shape_cast %16 : vector<128xf32> to vector<1x128xf32>
    %cst_12 = arith.constant 0.000000e+00 : f32
    %18 = vector.broadcast %cst_12 : f32 to vector<6x128xf32>
    %19 = tpu.concatenate %14, %17, %18 in 0 : vector<1x128xf32>, vector<1x128xf32>, vector<6x128xf32> -> vector<8x128xf32>
    %c0_13 = arith.constant 0 : index
    %c0_14 = arith.constant 0 : index
    %20 = vector.load %arg6[%c0_13, %c0_14] : memref<8x128xf32, #tpu.memory_space<vmem>>, vector<8x128xf32>
    tpu.vector_store %arg6[%c0_13, %c0_14], %19 {strides = array<i32>} : memref<8x128xf32, #tpu.memory_space<vmem>>, vector<8x128xf32>,
    return
  }
  func.func @transform_0(%arg0: i32) -> (i32, i32) {
    %c0_i32 = arith.constant 0 : i32
    %c0_i32_0 = arith.constant 0 : i32
    return %arg0, %c0_i32 : i32, i32
  }
  func.func @transform_1(%arg0: i32) -> (i32, i32) {
    %c0_i32 = arith.constant 0 : i32
    %c0_i32_0 = arith.constant 0 : i32
    %c0_i32_1 = arith.constant 0 : i32
    return %c0_i32, %c0_i32_0 : i32, i32
  }
  func.func @transform_2(%arg0: i32) -> (i32, i32) {
    %c0_i32 = arith.constant 0 : i32
    %c0_i32_0 = arith.constant 0 : i32
    %c0_i32_1 = arith.constant 0 : i32
    return %c0_i32, %c0_i32_0 : i32, i32
  }
  func.func @transform_3(%arg0: i32) -> (i32, i32) {
    %c0_i32 = arith.constant 0 : i32
    %c0_i32_0 = arith.constant 0 : i32
    %c0_i32_1 = arith.constant 0 : i32
    return %c0_i32, %c0_i32_0 : i32, i32
  }
  func.func @transform_4(%arg0: i32) -> (i32, i32) {
    %c0_i32 = arith.constant 0 : i32
    %c0_i32_0 = arith.constant 0 : i32
    return %arg0, %c0_i32 : i32, i32
  }
  func.func @transform_5(%arg0: i32) -> (i32, i32) {
    %c0_i32 = arith.constant 0 : i32
    %c0_i32_0 = arith.constant 0 : i32
    return %arg0, %c0_i32 : i32, i32
  }
}

module attributes {stable_mosaic.version = 11 : i64} {
  func.func @_bn_residual_relu_kernel(%arg0: i32, %arg1: memref<256x128xf32, #tpu.memory_space<vmem>>, %arg2: memref<256x128xf32, #tpu.memory_space<vmem>>, %arg3: memref<1x128xf32, #tpu.memory_space<vmem>>, %arg4: memref<1x128xf32, #tpu.memory_space<vmem>>, %arg5: memref<256x128xf32, #tpu.memory_space<vmem>>) attributes {dimension_semantics = [#tpu.dimension_semantics<parallel>], iteration_bounds = array<i64: 2>, scalar_prefetch = 0 : i64, scratch_operands = 0 : i64, tpu.core_type = #tpu.core_type<tc>, window_params = [{transform_indices = @transform_0, window_bounds = array<i64: 256, 128>}, {transform_indices = @transform_1, window_bounds = array<i64: 256, 128>}, {pipeline_mode = #tpu.pipeline_mode<synchronous>, transform_indices = @transform_2, window_bounds = array<i64: 1, 128>}, {pipeline_mode = #tpu.pipeline_mode<synchronous>, transform_indices = @transform_3, window_bounds = array<i64: 1, 128>}, {transform_indices = @transform_4, window_bounds = array<i64: 256, 128>}]} {
    %c0 = arith.constant 0 : index
    %c0_0 = arith.constant 0 : index
    %0 = vector.load %arg1[%c0, %c0_0] : memref<256x128xf32, #tpu.memory_space<vmem>>, vector<256x128xf32>
    %c0_1 = arith.constant 0 : index
    %c0_2 = arith.constant 0 : index
    %1 = vector.load %arg3[%c0_1, %c0_2] : memref<1x128xf32, #tpu.memory_space<vmem>>, vector<1x128xf32>
    %2 = vector.broadcast %1 : vector<1x128xf32> to vector<256x128xf32>
    %3 = arith.mulf %0, %2 : vector<256x128xf32>
    %c0_3 = arith.constant 0 : index
    %c0_4 = arith.constant 0 : index
    %4 = vector.load %arg4[%c0_3, %c0_4] : memref<1x128xf32, #tpu.memory_space<vmem>>, vector<1x128xf32>
    %5 = vector.broadcast %4 : vector<1x128xf32> to vector<256x128xf32>
    %6 = arith.addf %3, %5 : vector<256x128xf32>
    %c0_5 = arith.constant 0 : index
    %c0_6 = arith.constant 0 : index
    %7 = vector.load %arg2[%c0_5, %c0_6] : memref<256x128xf32, #tpu.memory_space<vmem>>, vector<256x128xf32>
    %8 = arith.addf %6, %7 : vector<256x128xf32>
    %cst = arith.constant 0.000000e+00 : f32
    %9 = vector.broadcast %cst : f32 to vector<256x128xf32>
    %10 = arith.maximumf %8, %9 : vector<256x128xf32>
    %c0_7 = arith.constant 0 : index
    %c0_8 = arith.constant 0 : index
    %11 = vector.load %arg5[%c0_7, %c0_8] : memref<256x128xf32, #tpu.memory_space<vmem>>, vector<256x128xf32>
    tpu.vector_store %arg5[%c0_7, %c0_8], %10 {strides = array<i32>} : memref<256x128xf32, #tpu.memory_space<vmem>>, vector<256x128xf32>,
    return
  }
  func.func @transform_0(%arg0: i32) -> (i32, i32) {
    %c0_i32 = arith.constant 0 : i32
    %c0_i32_0 = arith.constant 0 : i32
    return %arg0, %c0_i32 : i32, i32
  }
  func.func @transform_1(%arg0: i32) -> (i32, i32) {
    %c0_i32 = arith.constant 0 : i32
    %c0_i32_0 = arith.constant 0 : i32
    return %arg0, %c0_i32 : i32, i32
  }
  func.func @transform_2(%arg0: i32) -> (i32, i32) {
    %c0_i32 = arith.constant 0 : i32
    %c0_i32_0 = arith.constant 0 : i32
    %c0_i32_1 = arith.constant 0 : i32
    return %c0_i32, %c0_i32_0 : i32, i32
  }
  func.func @transform_3(%arg0: i32) -> (i32, i32) {
    %c0_i32 = arith.constant 0 : i32
    %c0_i32_0 = arith.constant 0 : i32
    %c0_i32_1 = arith.constant 0 : i32
    return %c0_i32, %c0_i32_0 : i32, i32
  }
  func.func @transform_4(%arg0: i32) -> (i32, i32) {
    %c0_i32 = arith.constant 0 : i32
    %c0_i32_0 = arith.constant 0 : i32
    return %arg0, %c0_i32 : i32, i32
  }
}

</mosaic_0001>

<llo_original>
// kernel: bottleneck_forward.4
$region0: #{bottleneck_forward.4}
  #allocation0 [shape = 'u32[]', space=smem, size = 0x4, offset = 0x4, fixed_abs, tag = 'smem constant byte address 0x4 - core index']
  #allocation1 [shape = 'u32[72,128]{1,0:T(1,128)}', space=vmem, size = 0x9000, scoped, tag = 'internal scratch']
  %s0 = inlined_call_operand.hbm [shape: f32[512,128], index: 0, kind: input, shape index: {}]
  %s1 = inlined_call_operand.vmem [shape: f32[1,128], index: 1, kind: input, shape index: {}]
  %s2 = inlined_call_operand.vmem [shape: f32[1,128], index: 2, kind: input, shape index: {}]
  %s3 = inlined_call_operand.vmem [shape: bf16[128,32], index: 3, kind: input, shape index: {}]
  %s4 = inlined_call_operand.vmem [shape: f32[512,32], index: 4, kind: output, shape index: {0}]
  %s5 = inlined_call_operand.vmem [shape: f32[16,32], index: 5, kind: output, shape index: {1}]
  %6 = xla_tuple %s4, %s5
  %s7 = sld [smem:[#allocation0]]
  $region61: #{bottleneck_forward.4} parent=0
    _
  %s9 = ssub.s32 1, %s7
  %s10 = scalar_select 0, %s9, %s7
  $region1: #{bottleneck_forward.4} parent=0
    #allocation2 [shape = 'u8[262144]{0}', space=vmem, size = 0x40000, scoped, tag = 'input window, operand 0']
    #allocation3 [shape = 's32[2]{0}', space=sflag, size = 0x8, scoped, tag = 'scoped memory for bottleneck_forward.4']
    %11 = vsyncpa [#allocation3], 0
    %s12 = scalar_lea.sflag [#allocation3], 1
    %13 = vsyncpa %s12, 0
    loop: start=0, step=1, limit=4
    $region2: #{bottleneck_forward.4} parent=1 // loop_pre_header
      _
    $region3: #{bottleneck_forward.4} parent=1 // loop_header
      %s15 = sphi 0, %s19
      %p16 = scmp.ge.s32.totalorder %s15, 4
      %s25 = sphi 0, %s27
      %s28 = sphi 0, %s25
      %s29 = sphi 0, %s28
      %s45 = sphi 0, %s29
      %s49 = sphi 0, %s49
      %s51 = sphi 0, %s49
      %s52 = sphi 0, %s51
      %s66 = sphi 0, %s52
      %s70 = sphi 0, %s70
      %s72 = sphi 0, %s70
      %s73 = sphi 0, %s72
      %s87 = sphi 0, %s73
      %s91 = sphi 0, %s91
      %s93 = sphi 0, %s91
      %s94 = sphi 0, %s93
      %s108 = sphi 0, %s94
      %s114 = sphi 0, %s116
      %s117 = sphi 0, %s114
      %s118 = sphi 0, %s117
      %s134 = sphi 0, %s118
      %s140 = sphi 0, %s142
      %s143 = sphi 0, %s140
      %s144 = sphi 0, %s143
      %s160 = sphi 0, %s144
    $region4: #{bottleneck_forward.4} parent=1 // loop_header_branch
      %18 = sbr.rel (%p16) target = $region8
    $region5: #{bottleneck_forward.4} parent=1 // loop_body
      %s20 = ssub.s32 %s15, 1
      %s21 = ssub.s32 %s15, 2
      %s22 = sadd.s32 %s15, 1
      %s23 = ssub.s32 %s15, %s22
      %p24 = scmp.eq.s32.totalorder %s23, 0
      %s26 = sadd.s32 %s25, 1
      %s27 = scalar_select %p24, %s25, %s26
      %p30 = pneg %p24
      %p31 = scmp.eq.s32.totalorder %s15, 1
      %p32 = por %p30, %p31
      %p33 = scmp.ne.s32.totalorder %s25, %s28
      %p34 = scmp.eq.s32.totalorder %s15, 0
      %p35 = por %p33, %p34
      %p36 = scmp.ne.s32.totalorder %s25, %s28
      %p37 = scmp.eq.s32.totalorder %s20, 1
      %p38 = por %p36, %p37
      %p39 = scmp.ne.s32.totalorder %s28, %s29
      %p40 = scmp.eq.s32.totalorder %s20, 0
      %p41 = por %p39, %p40
      %p42 = scmp.ne.s32.totalorder %s28, %s29
      %p43 = scmp.eq.s32.totalorder %s21, 1
      %p44 = por %p42, %p43
      %p46 = scmp.ne.s32.totalorder %s29, %s45
      %p47 = scmp.eq.s32.totalorder %s21, 0
      %p48 = por %p46, %p47
      %s50 = sadd.s32 %s49, 1
      %p53 = scmp.eq.s32.totalorder %s15, 1
      %p54 = scmp.ne.s32.totalorder %s49, %s51
      %p55 = scmp.eq.s32.totalorder %s15, 0
      %p56 = por %p54, %p55
      %p57 = scmp.ne.s32.totalorder %s49, %s51
      %p58 = scmp.eq.s32.totalorder %s20, 1
      %p59 = por %p57, %p58
      %p60 = scmp.ne.s32.totalorder %s51, %s52
      %p61 = scmp.eq.s32.totalorder %s20, 0
      %p62 = por %p60, %p61
      %p63 = scmp.ne.s32.totalorder %s51, %s52
      %p64 = scmp.eq.s32.totalorder %s21, 1
      %p65 = por %p63, %p64
      %p67 = scmp.ne.s32.totalorder %s52, %s66
      %p68 = scmp.eq.s32.totalorder %s21, 0
      %p69 = por %p67, %p68
      %s71 = sadd.s32 %s70, 1
      %p74 = scmp.eq.s32.totalorder %s15, 1
      %p75 = scmp.ne.s32.totalorder %s70, %s72
      %p76 = scmp.eq.s32.totalorder %s15, 0
      %p77 = por %p75, %p76
      %p78 = scmp.ne.s32.totalorder %s70, %s72
      %p79 = scmp.eq.s32.totalorder %s20, 1
      %p80 = por %p78, %p79
      %p81 = scmp.ne.s32.totalorder %s72, %s73
      %p82 = scmp.eq.s32.totalorder %s20, 0
      %p83 = por %p81, %p82
      %p84 = scmp.ne.s32.totalorder %s72, %s73
      %p85 = scmp.eq.s32.totalorder %s21, 1
      %p86 = por %p84, %p85
      %p88 = scmp.ne.s32.totalorder %s73, %s87
      %p89 = scmp.eq.s32.totalorder %s21, 0
      %p90 = por %p88, %p89
      %s92 = sadd.s32 %s91, 1
      %p95 = scmp.eq.s32.totalorder %s15, 1
      %p96 = scmp.ne.s32.totalorder %s91, %s93
      %p97 = scmp.eq.s32.totalorder %s15, 0
      %p98 = por %p96, %p97
      %p99 = scmp.ne.s32.totalorder %s91, %s93
      %p100 = scmp.eq.s32.totalorder %s20, 1
      %p101 = por %p99, %p100
      %p102 = scmp.ne.s32.totalorder %s93, %s94
      %p103 = scmp.eq.s32.totalorder %s20, 0
      %p104 = por %p102, %p103
      %p105 = scmp.ne.s32.totalorder %s93, %s94
      %p106 = scmp.eq.s32.totalorder %s21, 1
      %p107 = por %p105, %p106
      %p109 = scmp.ne.s32.totalorder %s94, %s108
      %p110 = scmp.eq.s32.totalorder %s21, 0
      %p111 = por %p109, %p110
      %s112 = ssub.s32 %s15, %s22
      %p113 = scmp.eq.s32.totalorder %s112, 0
      %s115 = sadd.s32 %s114, 1
      %s116 = scalar_select %p113, %s114, %s115
      %p119 = pneg %p113
      %p120 = scmp.eq.s32.totalorder %s15, 1
      %p121 = por %p119, %p120
      %p122 = scmp.ne.s32.totalorder %s114, %s117
      %p123 = scmp.eq.s32.totalorder %s15, 0
      %p124 = por %p122, %p123
      %p125 = scmp.ne.s32.totalorder %s114, %s117
      %p126 = scmp.eq.s32.totalorder %s20, 1
      %p127 = por %p125, %p126
      %p128 = scmp.ne.s32.totalorder %s117, %s118
      %p129 = scmp.eq.s32.totalorder %s20, 0
      %p130 = por %p128, %p129
      %p131 = scmp.ne.s32.totalorder %s117, %s118
      %p132 = scmp.eq.s32.totalorder %s21, 1
      %p133 = por %p131, %p132
      %p135 = scmp.ne.s32.totalorder %s118, %s134
      %p136 = scmp.eq.s32.totalorder %s21, 0
      %p137 = por %p135, %p136
      %s138 = ssub.s32 %s15, %s22
      %p139 = scmp.eq.s32.totalorder %s138, 0
      %s141 = sadd.s32 %s140, 1
      %s142 = scalar_select %p139, %s140, %s141
      %p145 = pneg %p139
      %p146 = scmp.eq.s32.totalorder %s15, 1
      %p147 = por %p145, %p146
      %p148 = scmp.ne.s32.totalorder %s140, %s143
      %p149 = scmp.eq.s32.totalorder %s15, 0
      %p150 = por %p148, %p149
      %p151 = scmp.ne.s32.totalorder %s140, %s143
      %p152 = scmp.eq.s32.totalorder %s20, 1
      %p153 = por %p151, %p152
      %p154 = scmp.ne.s32.totalorder %s143, %s144
      %p155 = scmp.eq.s32.totalorder %s20, 0
      %p156 = por %p154, %p155
      %p157 = scmp.ne.s32.totalorder %s143, %s144
      %p158 = scmp.eq.s32.totalorder %s21, 1
      %p159 = por %p157, %p158
      %p161 = scmp.ne.s32.totalorder %s144, %s160
      %p162 = scmp.eq.s32.totalorder %s21, 0
      %p163 = por %p161, %p162
      %p164 = scmp.le.s32.totalorder 1, %s15
      %p165 = scmp.lt.s32.totalorder %s15, 3
      %p166 = pnand %p164, %p165
      %p167 = pneg %p166
      // Predicated region
      $region9: #{bottleneck_forward.4} parent=5 // pred_check
        _
      $region10: #{bottleneck_forward.4} parent=5 // pred_check_branch
        %169 = sbr.rel (%p166) target = $region12
      $region11: #{bottleneck_forward.4} parent=5 // pred_region
        %s170 = ssub.s32 %s15, 1
        // Predicated region
        $region13: #{bottleneck_forward.4} parent=11 // pred_check
          %p171 = pneg %p62
        $region14: #{bottleneck_forward.4} parent=11 // pred_check_branch
          %173 = sbr.rel (%p171) target = $region16
        $region15: #{bottleneck_forward.4} parent=11 // pred_region
          _
        $region16: #{bottleneck_forward.4} parent=11 // pred_fallthru
          _
        // Predicated region
        $region17: #{bottleneck_forward.4} parent=11 // pred_check
          %p174 = pneg %p83
        $region18: #{bottleneck_forward.4} parent=11 // pred_check_branch
          %176 = sbr.rel (%p174) target = $region20
        $region19: #{bottleneck_forward.4} parent=11 // pred_region
          _
        $region20: #{bottleneck_forward.4} parent=11 // pred_fallthru
          _
        // Predicated region
        $region21: #{bottleneck_forward.4} parent=11 // pred_check
          %p177 = pneg %p104
        $region22: #{bottleneck_forward.4} parent=11 // pred_check_branch
          %179 = sbr.rel (%p177) target = $region24
        $region23: #{bottleneck_forward.4} parent=11 // pred_region
          _
        $region24: #{bottleneck_forward.4} parent=11 // pred_fallthru
          _
      $region12: #{bottleneck_forward.4} parent=5 // pred_fallthru
        _
      %p180 = scmp.lt.s32.totalorder %s15, 2
      // Predicated region
      $region25: #{bottleneck_forward.4} parent=5 // pred_check
        %p181 = pneg %p180
      $region26: #{bottleneck_forward.4} parent=5 // pred_check_branch
        %183 = sbr.rel (%p181) target = $region28
      $region27: #{bottleneck_forward.4} parent=5 // pred_region
        // Predicated region
        $region29: #{bottleneck_forward.4} parent=27 // pred_check
          %p184 = pneg %p35
        $region30: #{bottleneck_forward.4} parent=27 // pred_check_branch
          %186 = sbr.rel (%p184) target = $region32
        $region31: #{bottleneck_forward.4} parent=27 // pred_region
          %s187 = sand.u32 %s25, 1
          %s188 = scalar_lea.sflag [#allocation3], %s187
          %s189 = sand.u32 %s25, 1
          %s190 = smul.addr %s189, 256
          %s191 = scalar_lea.vmem [#allocation2], %s190
          %s192 = smul.u32 32, %s15
          %194 = vsyncadd %s188, 0
          %s195 = smul.addr %s192, 8
          %s196 = scalar_lea.hbm %s0, %s195
          %s197 = sshll.u32 %s196, 4
          %s198 = int_to_ptr.hbm [resolvable:$true] %s197
          %s199 = sshll.u32 %s191, 4
          %s200 = int_to_ptr.vmem [resolvable:$true] %s199
          %205 = dma.hbm_to_vmem [thread:$0]  %s198, 4096, %s200, %s188, 128, 128, 8
        $region32: #{bottleneck_forward.4} parent=27 // pred_fallthru
          _
      $region28: #{bottleneck_forward.4} parent=5 // pred_fallthru
        _
      %p206 = scmp.le.s32.totalorder 1, %s15
      %p207 = scmp.lt.s32.totalorder %s15, 3
      %p208 = pnand %p206, %p207
      %p209 = pneg %p208
      // Predicated region
      $region33: #{bottleneck_forward.4} parent=5 // pred_check
        _
      $region34: #{bottleneck_forward.4} parent=5 // pred_check_branch
        %211 = sbr.rel (%p208) target = $region36
      $region35: #{bottleneck_forward.4} parent=5 // pred_region
        %s212 = ssub.s32 %s15, 1
        %s213 = sand.u32 %s28, 1
        %s214 = scalar_lea.sflag [#allocation3], %s213
        %s215 = sand.u32 %s28, 1
        %s216 = smul.addr %s215, 256
        %s217 = scalar_lea.vmem [#allocation2], %s216
        // Predicated region
        $region37: #{bottleneck_forward.4} parent=35 // pred_check
          %p218 = pneg %p41
        $region38: #{bottleneck_forward.4} parent=35 // pred_check_branch
          %220 = sbr.rel (%p218) target = $region40
        $region39: #{bottleneck_forward.4} parent=35 // pred_region
          %222 = dma.done %s214, 4096
        $region40: #{bottleneck_forward.4} parent=35 // pred_fallthru
          _
        %s223 = sand.u32 %s28, 1
        %s224 = scalar_lea.sflag [#allocation3], %s223
        %s225 = sand.u32 %s28, 1
        %s226 = smul.addr %s225, 256
        %s227 = scalar_lea.vmem [#allocation2], %s226
        %p228 = pneg %p41
        %p229 = pneg %p38
        %p230 = pneg %p62
        %p231 = pneg %p59
        %p232 = pneg %p83
        %p233 = pneg %p80
        %p234 = pneg %p104
        %p235 = pneg %p101
        %p236 = pneg %p130
        %p237 = pneg %p127
        %s238 = smul.u32 32, %s20
        %p239 = scmp.lt.s32.totalorder %s238, 63
        %s240 = scalar_select %p239, %s238, 63
        %s241 = smul.addr %s240, 8
        %s242 = scalar_lea.vmem %s4, %s241
        %p243 = pneg %p156
        %p244 = pneg %p153
        %p245 = scmp.lt.s32.totalorder %s20, 1
        %s246 = scalar_select %p245, %s20, 1
        %s247 = smul.addr %s246, 8
        %s248 = scalar_lea.vmem %s5, %s247
        %s249 = smul.u32 32, %s20
        %s250 = smul.u32 32, %s20
        %p251 = scmp.lt.s32.totalorder %s250, 63
        %s252 = scalar_select %p251, %s250, 63
        %s253 = smul.addr %s252, 8
        %s254 = scalar_lea.vmem %s4, %s253
        %s255 = smul.u32 32, %s20
        %p256 = scmp.lt.s32.totalorder %s20, 1
        %s257 = scalar_select %p256, %s20, 1
        %s258 = smul.addr %s257, 8
        %s259 = scalar_lea.vmem %s5, %s258
        %v260 = vld [vmem:[%s217] sm:$0xff]
        %v261 = vld [vmem:[%s217 + $0x8] sm:$0xff]
        %v262 = vld [vmem:[%s217 + $0x10] sm:$0xff]
        %v263 = vld [vmem:[%s217 + $0x18] sm:$0xff]
        %v264 = vld [vmem:[%s217 + $0x20] sm:$0xff]
        %v265 = vld [vmem:[%s217 + $0x28] sm:$0xff]
        %v266 = vld [vmem:[%s217 + $0x30] sm:$0xff]
        %v267 = vld [vmem:[%s217 + $0x38] sm:$0xff]
        %v268 = vld [vmem:[%s217 + $0x40] sm:$0xff]
        %v269 = vld [vmem:[%s217 + $0x48] sm:$0xff]
        %v270 = vld [vmem:[%s217 + $0x50] sm:$0xff]
        %v271 = vld [vmem:[%s217 + $0x58] sm:$0xff]
        %v272 = vld [vmem:[%s217 + $0x60] sm:$0xff]
        %v273 = vld [vmem:[%s217 + $0x68] sm:$0xff]
        %v274 = vld [vmem:[%s217 + $0x70] sm:$0xff]
        %v275 = vld [vmem:[%s217 + $0x78] sm:$0xff]
        %v276 = vld [vmem:[%s217 + $0x80] sm:$0xff]
        %v277 = vld [vmem:[%s217 + $0x88] sm:$0xff]
        %v278 = vld [vmem:[%s217 + $0x90] sm:$0xff]
        %v279 = vld [vmem:[%s217 + $0x98] sm:$0xff]
        %v280 = vld [vmem:[%s217 + $0xa0] sm:$0xff]
        %v281 = vld [vmem:[%s217 + $0xa8] sm:$0xff]
        %v282 = vld [vmem:[%s217 + $0xb0] sm:$0xff]
        %v283 = vld [vmem:[%s217 + $0xb8] sm:$0xff]
        %v284 = vld [vmem:[%s217 + $0xc0] sm:$0xff]
        %v285 = vld [vmem:[%s217 + $0xc8] sm:$0xff]
        %v286 = vld [vmem:[%s217 + $0xd0] sm:$0xff]
        %v287 = vld [vmem:[%s217 + $0xd8] sm:$0xff]
        %v288 = vld [vmem:[%s217 + $0xe0] sm:$0xff]
        %v289 = vld [vmem:[%s217 + $0xe8] sm:$0xff]
        %v290 = vld [vmem:[%s217 + $0xf0] sm:$0xff]
        %v291 = vld [vmem:[%s217 + $0xf8] sm:$0xff]
        %v292 = vpack.c.bf16 %v261, %v260
        %v293 = vpack.c.bf16 %v263, %v262
        %v294 = vpack.c.bf16 %v265, %v264
        %v295 = vpack.c.bf16 %v267, %v266
        %v296 = vpack.c.bf16 %v269, %v268
        %v297 = vpack.c.bf16 %v271, %v270
        %v298 = vpack.c.bf16 %v273, %v272
        %v299 = vpack.c.bf16 %v275, %v274
        %v300 = vpack.c.bf16 %v277, %v276
        %v301 = vpack.c.bf16 %v279, %v278
        %v302 = vpack.c.bf16 %v281, %v280
        %v303 = vpack.c.bf16 %v283, %v282
        %v304 = vpack.c.bf16 %v285, %v284
        %v305 = vpack.c.bf16 %v287, %v286
        %v306 = vpack.c.bf16 %v289, %v288
        %v307 = vpack.c.bf16 %v291, %v290
        %v308 = vld [vmem:[%s3] sm:$0xf]
        %v309 = vld [vmem:[%s3 + $0x4] sm:$0xf]
        %v310 = vld [vmem:[%s3 + $0x8] sm:$0xf]
        %v311 = vld [vmem:[%s3 + $0xc] sm:$0xf]
        %v312 = vld [vmem:[%s3 + $0x10] sm:$0xf]
        %v313 = vld [vmem:[%s3 + $0x14] sm:$0xf]
        %v314 = vld [vmem:[%s3 + $0x18] sm:$0xf]
        %v315 = vld [vmem:[%s3 + $0x1c] sm:$0xf]
        %v316 = vld [vmem:[%s3 + $0x20] sm:$0xf]
        %v317 = vld [vmem:[%s3 + $0x24] sm:$0xf]
        %v318 = vld [vmem:[%s3 + $0x28] sm:$0xf]
        %v319 = vld [vmem:[%s3 + $0x2c] sm:$0xf]
        %v320 = vld [vmem:[%s3 + $0x30] sm:$0xf]
        %v321 = vld [vmem:[%s3 + $0x34] sm:$0xf]
        %v322 = vld [vmem:[%s3 + $0x38] sm:$0xf]
        %v323 = vld [vmem:[%s3 + $0x3c] sm:$0xf]
        %v340 = vunpack.c.l.b16 %v308
        %v341 = vunpack.c.l.b16 %v309
        %v342 = vunpack.c.l.b16 %v310
        %v343 = vunpack.c.l.b16 %v311
        %v344 = vunpack.c.l.b16 %v312
        %v345 = vunpack.c.l.b16 %v313
        %v346 = vunpack.c.l.b16 %v314
        %v347 = vunpack.c.l.b16 %v315
        %v348 = vunpack.c.l.b16 %v316
        %v349 = vunpack.c.l.b16 %v317
        %v350 = vunpack.c.l.b16 %v318
        %v351 = vunpack.c.l.b16 %v319
        %v352 = vunpack.c.l.b16 %v320
        %v353 = vunpack.c.l.b16 %v321
        %v354 = vunpack.c.l.b16 %v322
        %v355 = vunpack.c.l.b16 %v323
        %v356 = vpack.c.b16 %v341, %v340
        %v357 = vpack.c.b16 %v343, %v342
        %v358 = vpack.c.b16 %v345, %v344
        %v359 = vpack.c.b16 %v347, %v346
        %v360 = vpack.c.b16 %v349, %v348
        %v361 = vpack.c.b16 %v351, %v350
        %v362 = vpack.c.b16 %v353, %v352
        %v363 = vpack.c.b16 %v355, %v354
        %372 = vmatpush.bf16.msra.mxu0 %v363
        %373 = vmatpush.bf16.msra.mxu0 %v362
        %374 = vmatpush.bf16.msra.mxu0 %v361
        %375 = vmatpush.bf16.msra.mxu0 %v360
        %376 = vmatpush.bf16.msra.mxu0 %v359
        %377 = vmatpush.bf16.msra.mxu0 %v358
        %378 = vmatpush.bf16.msra.mxu0 %v357
        %379 = vmatpush.bf16.msra.mxu0 %v356
        %380 = vmatmul.bf16.gmra.mxu0 %v292
        %v381 = vpop.f32.mrf.mxu0
        %v382 = vadd.f32 0.0, %v381
        %v383 = vpop.f32.mrf.mxu0
        %v384 = vadd.f32 0.0, %v383
        %385 = vmatmul.bf16.gmra.mxu0 %v293
        %v386 = vpop.f32.mrf.mxu0
        %v387 = vadd.f32 0.0, %v386
        %v388 = vpop.f32.mrf.mxu0
        %v389 = vadd.f32 0.0, %v388
        %390 = vmatmul.bf16.gmra.mxu0 %v294
        %v391 = vpop.f32.mrf.mxu0
        %v392 = vadd.f32 0.0, %v391
        %v393 = vpop.f32.mrf.mxu0
        %v394 = vadd.f32 0.0, %v393
        %395 = vmatmul.bf16.gmra.mxu0 %v295
        %v396 = vpop.f32.mrf.mxu0
        %v397 = vadd.f32 0.0, %v396
        %v398 = vpop.f32.mrf.mxu0
        %v399 = vadd.f32 0.0, %v398
        %400 = vmatmul.bf16.gmra.mxu0 %v296
        %v401 = vpop.f32.mrf.mxu0
        %v402 = vadd.f32 0.0, %v401
        %v403 = vpop.f32.mrf.mxu0
        %v404 = vadd.f32 0.0, %v403
        %405 = vmatmul.bf16.gmra.mxu0 %v297
        %v406 = vpop.f32.mrf.mxu0
        %v407 = vadd.f32 0.0, %v406
        %v408 = vpop.f32.mrf.mxu0
        %v409 = vadd.f32 0.0, %v408
        %410 = vmatmul.bf16.gmra.mxu0 %v298
        %v411 = vpop.f32.mrf.mxu0
        %v412 = vadd.f32 0.0, %v411
        %v413 = vpop.f32.mrf.mxu0
        %v414 = vadd.f32 0.0, %v413
        %415 = vmatmul.bf16.gmra.mxu0 %v299
        %v416 = vpop.f32.mrf.mxu0
        %v417 = vadd.f32 0.0, %v416
        %v418 = vpop.f32.mrf.mxu0
        %v419 = vadd.f32 0.0, %v418
        %420 = vmatmul.bf16.gmra.mxu0 %v300
        %v421 = vpop.f32.mrf.mxu0
        %v422 = vadd.f32 0.0, %v421
        %v423 = vpop.f32.mrf.mxu0
        %v424 = vadd.f32 0.0, %v423
        %425 = vmatmul.bf16.gmra.mxu0 %v301
        %v426 = vpop.f32.mrf.mxu0
        %v427 = vadd.f32 0.0, %v426
        %v428 = vpop.f32.mrf.mxu0
        %v429 = vadd.f32 0.0, %v428
        %430 = vmatmul.bf16.gmra.mxu0 %v302
        %v431 = vpop.f32.mrf.mxu0
        %v432 = vadd.f32 0.0, %v431
        %v433 = vpop.f32.mrf.mxu0
        %v434 = vadd.f32 0.0, %v433
        %435 = vmatmul.bf16.gmra.mxu0 %v303
        %v436 = vpop.f32.mrf.mxu0
        %v437 = vadd.f32 0.0, %v436
        %v438 = vpop.f32.mrf.mxu0
        %v439 = vadd.f32 0.0, %v438
        %440 = vmatmul.bf16.gmra.mxu0 %v304
        %v441 = vpop.f32.mrf.mxu0
        %v442 = vadd.f32 0.0, %v441
        %v443 = vpop.f32.mrf.mxu0
        %v444 = vadd.f32 0.0, %v443
        %445 = vmatmul.bf16.gmra.mxu0 %v305
        %v446 = vpop.f32.mrf.mxu0
        %v447 = vadd.f32 0.0, %v446
        %v448 = vpop.f32.mrf.mxu0
        %v449 = vadd.f32 0.0, %v448
        %450 = vmatmul.bf16.gmra.mxu0 %v306
        %v451 = vpop.f32.mrf.mxu0
        %v452 = vadd.f32 0.0, %v451
        %v453 = vpop.f32.mrf.mxu0
        %v454 = vadd.f32 0.0, %v453
        %455 = vmatmul.bf16.gmra.mxu0 %v307
        %v456 = vpop.f32.mrf.mxu0
        %v457 = vadd.f32 0.0, %v456
        %v458 = vpop.f32.mrf.mxu0
        %v459 = vadd.f32 0.0, %v458
        %460 = vdwg.mxu0
        %vm461 = vcmask 261120
        %462 = vst.msk [vmem:[%s254] sm:$0xff] %vm461, %v382
        %463 = vst.msk [vmem:[%s254 + $0x8] sm:$0xff] %vm461, %v384
        %464 = vst.msk [vmem:[%s254 + $0x10] sm:$0xff] %vm461, %v387
        %465 = vst.msk [vmem:[%s254 + $0x18] sm:$0xff] %vm461, %v389
        %466 = vst.msk [vmem:[%s254 + $0x20] sm:$0xff] %vm461, %v392
        %467 = vst.msk [vmem:[%s254 + $0x28] sm:$0xff] %vm461, %v394
        %468 = vst.msk [vmem:[%s254 + $0x30] sm:$0xff] %vm461, %v397
        %469 = vst.msk [vmem:[%s254 + $0x38] sm:$0xff] %vm461, %v399
        %470 = vst.msk [vmem:[%s254 + $0x40] sm:$0xff] %vm461, %v402
        %471 = vst.msk [vmem:[%s254 + $0x48] sm:$0xff] %vm461, %v404
        %472 = vst.msk [vmem:[%s254 + $0x50] sm:$0xff] %vm461, %v407
        %473 = vst.msk [vmem:[%s254 + $0x58] sm:$0xff] %vm461, %v409
        %474 = vst.msk [vmem:[%s254 + $0x60] sm:$0xff] %vm461, %v412
        %475 = vst.msk [vmem:[%s254 + $0x68] sm:$0xff] %vm461, %v414
        %476 = vst.msk [vmem:[%s254 + $0x70] sm:$0xff] %vm461, %v417
        %477 = vst.msk [vmem:[%s254 + $0x78] sm:$0xff] %vm461, %v419
        %478 = vst.msk [vmem:[%s254 + $0x80] sm:$0xff] %vm461, %v422
        %479 = vst.msk [vmem:[%s254 + $0x88] sm:$0xff] %vm461, %v424
        %480 = vst.msk [vmem:[%s254 + $0x90] sm:$0xff] %vm461, %v427
        %481 = vst.msk [vmem:[%s254 + $0x98] sm:$0xff] %vm461, %v429
        %482 = vst.msk [vmem:[%s254 + $0xa0] sm:$0xff] %vm461, %v432
        %483 = vst.msk [vmem:[%s254 + $0xa8] sm:$0xff] %vm461, %v434
        %484 = vst.msk [vmem:[%s254 + $0xb0] sm:$0xff] %vm461, %v437
        %485 = vst.msk [vmem:[%s254 + $0xb8] sm:$0xff] %vm461, %v439
        %486 = vst.msk [vmem:[%s254 + $0xc0] sm:$0xff] %vm461, %v442
        %487 = vst.msk [vmem:[%s254 + $0xc8] sm:$0xff] %vm461, %v444
        %488 = vst.msk [vmem:[%s254 + $0xd0] sm:$0xff] %vm461, %v447
        %489 = vst.msk [vmem:[%s254 + $0xd8] sm:$0xff] %vm461, %v449
        %490 = vst.msk [vmem:[%s254 + $0xe0] sm:$0xff] %vm461, %v452
        %491 = vst.msk [vmem:[%s254 + $0xe8] sm:$0xff] %vm461, %v454
        %492 = vst.msk [vmem:[%s254 + $0xf0] sm:$0xff] %vm461, %v457
        %493 = vst.msk [vmem:[%s254 + $0xf8] sm:$0xff] %vm461, %v459
        %v494 = vsel %vm461, %v382, 0.0
        %v495 = vsel %vm461, %v384, 0.0
        %v496 = vadd.f32 %v494, %v495
        %v497 = vsel %vm461, %v387, 0.0
        %v498 = vadd.f32 %v496, %v497
        %v499 = vsel %vm461, %v389, 0.0
        %v500 = vadd.f32 %v498, %v499
        %v501 = vsel %vm461, %v392, 0.0
        %v502 = vadd.f32 %v500, %v501
        %v503 = vsel %vm461, %v394, 0.0
        %v504 = vadd.f32 %v502, %v503
        %v505 = vsel %vm461, %v397, 0.0
        %v506 = vadd.f32 %v504, %v505
        %v507 = vsel %vm461, %v399, 0.0
        %v508 = vadd.f32 %v506, %v507
        %v509 = vsel %vm461, %v402, 0.0
        %v510 = vadd.f32 %v508, %v509
        %v511 = vsel %vm461, %v404, 0.0
        %v512 = vadd.f32 %v510, %v511
        %v513 = vsel %vm461, %v407, 0.0
        %v514 = vadd.f32 %v512, %v513
        %v515 = vsel %vm461, %v409, 0.0
        %v516 = vadd.f32 %v514, %v515
        %v517 = vsel %vm461, %v412, 0.0
        %v518 = vadd.f32 %v516, %v517
        %v519 = vsel %vm461, %v414, 0.0
        %v520 = vadd.f32 %v518, %v519
        %v521 = vsel %vm461, %v417, 0.0
        %v522 = vadd.f32 %v520, %v521
        %v523 = vsel %vm461, %v419, 0.0
        %v524 = vadd.f32 %v522, %v523
        %v525 = vsel %vm461, %v422, 0.0
        %v526 = vadd.f32 %v524, %v525
        %v527 = vsel %vm461, %v424, 0.0
        %v528 = vadd.f32 %v526, %v527
        %v529 = vsel %vm461, %v427, 0.0
        %v530 = vadd.f32 %v528, %v529
        %v531 = vsel %vm461, %v429, 0.0
        %v532 = vadd.f32 %v530, %v531
        %v533 = vsel %vm461, %v432, 0.0
        %v534 = vadd.f32 %v532, %v533
        %v535 = vsel %vm461, %v434, 0.0
        %v536 = vadd.f32 %v534, %v535
        %v537 = vsel %vm461, %v437, 0.0
        %v538 = vadd.f32 %v536, %v537
        %v539 = vsel %vm461, %v439, 0.0
        %v540 = vadd.f32 %v538, %v539
        %v541 = vsel %vm461, %v442, 0.0
        %v542 = vadd.f32 %v540, %v541
        %v543 = vsel %vm461, %v444, 0.0
        %v544 = vadd.f32 %v542, %v543
        %v545 = vsel %vm461, %v447, 0.0
        %v546 = vadd.f32 %v544, %v545
        %v547 = vsel %vm461, %v449, 0.0
        %v548 = vadd.f32 %v546, %v547
        %v549 = vsel %vm461, %v452, 0.0
        %v550 = vadd.f32 %v548, %v549
        %v551 = vsel %vm461, %v454, 0.0
        %v552 = vadd.f32 %v550, %v551
        %v553 = vsel %vm461, %v457, 0.0
        %v554 = vadd.f32 %v552, %v553
        %v555 = vsel %vm461, %v459, 0.0
        %v556 = vadd.f32 %v554, %v555
        %v557 = vrot.slane %v556, 4
        %v558 = vadd.f32 %v556, %v557
        %v559 = vrot.slane %v558, 2
        %v560 = vadd.f32 %v558, %v559
        %v561 = vrot.slane %v560, 1
        %v562 = vadd.f32 %v560, %v561
        %v563 = vmul.f32 %v382, %v382
        %v564 = vmul.f32 %v384, %v384
        %v565 = vmul.f32 %v387, %v387
        %v566 = vmul.f32 %v389, %v389
        %v567 = vmul.f32 %v392, %v392
        %v568 = vmul.f32 %v394, %v394
        %v569 = vmul.f32 %v397, %v397
        %v570 = vmul.f32 %v399, %v399
        %v571 = vmul.f32 %v402, %v402
        %v572 = vmul.f32 %v404, %v404
        %v573 = vmul.f32 %v407, %v407
        %v574 = vmul.f32 %v409, %v409
        %v575 = vmul.f32 %v412, %v412
        %v576 = vmul.f32 %v414, %v414
        %v577 = vmul.f32 %v417, %v417
        %v578 = vmul.f32 %v419, %v419
        %v579 = vmul.f32 %v422, %v422
        %v580 = vmul.f32 %v424, %v424
        %v581 = vmul.f32 %v427, %v427
        %v582 = vmul.f32 %v429, %v429
        %v583 = vmul.f32 %v432, %v432
        %v584 = vmul.f32 %v434, %v434
        %v585 = vmul.f32 %v437, %v437
        %v586 = vmul.f32 %v439, %v439
        %v587 = vmul.f32 %v442, %v442
        %v588 = vmul.f32 %v444, %v444
        %v589 = vmul.f32 %v447, %v447
        %v590 = vmul.f32 %v449, %v449
        %v591 = vmul.f32 %v452, %v452
        %v592 = vmul.f32 %v454, %v454
        %v593 = vmul.f32 %v457, %v457
        %v594 = vmul.f32 %v459, %v459
        %v595 = vsel %vm461, %v563, 0.0
        %v596 = vsel %vm461, %v564, 0.0
        %v597 = vadd.f32 %v595, %v596
        %v598 = vsel %vm461, %v565, 0.0
        %v599 = vadd.f32 %v597, %v598
        %v600 = vsel %vm461, %v566, 0.0
        %v601 = vadd.f32 %v599, %v600
        %v602 = vsel %vm461, %v567, 0.0
        %v603 = vadd.f32 %v601, %v602
        %v604 = vsel %vm461, %v568, 0.0
        %v605 = vadd.f32 %v603, %v604
        %v606 = vsel %vm461, %v569, 0.0
        %v607 = vadd.f32 %v605, %v606
        %v608 = vsel %vm461, %v570, 0.0
        %v609 = vadd.f32 %v607, %v608
        %v610 = vsel %vm461, %v571, 0.0
        %v611 = vadd.f32 %v609, %v610
        %v612 = vsel %vm461, %v572, 0.0
        %v613 = vadd.f32 %v611, %v612
        %v614 = vsel %vm461, %v573, 0.0
        %v615 = vadd.f32 %v613, %v614
        %v616 = vsel %vm461, %v574, 0.0
        %v617 = vadd.f32 %v615, %v616
        %v618 = vsel %vm461, %v575, 0.0
        %v619 = vadd.f32 %v617, %v618
        %v620 = vsel %vm461, %v576, 0.0
        %v621 = vadd.f32 %v619, %v620
        %v622 = vsel %vm461, %v577, 0.0
        %v623 = vadd.f32 %v621, %v622
        %v624 = vsel %vm461, %v578, 0.0
        %v625 = vadd.f32 %v623, %v624
        %v626 = vsel %vm461, %v579, 0.0
        %v627 = vadd.f32 %v625, %v626
        %v628 = vsel %vm461, %v580, 0.0
        %v629 = vadd.f32 %v627, %v628
        %v630 = vsel %vm461, %v581, 0.0
        %v631 = vadd.f32 %v629, %v630
        %v632 = vsel %vm461, %v582, 0.0
        %v633 = vadd.f32 %v631, %v632
        %v634 = vsel %vm461, %v583, 0.0
        %v635 = vadd.f32 %v633, %v634
        %v636 = vsel %vm461, %v584, 0.0
        %v637 = vadd.f32 %v635, %v636
        %v638 = vsel %vm461, %v585, 0.0
        %v639 = vadd.f32 %v637, %v638
        %v640 = vsel %vm461, %v586, 0.0
        %v641 = vadd.f32 %v639, %v640
        %v642 = vsel %vm461, %v587, 0.0
        %v643 = vadd.f32 %v641, %v642
        %v644 = vsel %vm461, %v588, 0.0
        %v645 = vadd.f32 %v643, %v644
        %v646 = vsel %vm461, %v589, 0.0
        %v647 = vadd.f32 %v645, %v646
        %v648 = vsel %vm461, %v590, 0.0
        %v649 = vadd.f32 %v647, %v648
        %v650 = vsel %vm461, %v591, 0.0
        %v651 = vadd.f32 %v649, %v650
        %v652 = vsel %vm461, %v592, 0.0
        %v653 = vadd.f32 %v651, %v652
        %v654 = vsel %vm461, %v593, 0.0
        %v655 = vadd.f32 %v653, %v654
        %v656 = vsel %vm461, %v594, 0.0
        %v657 = vadd.f32 %v655, %v656
        %v658 = vrot.slane %v657, 4
        %v659 = vadd.f32 %v657, %v658
        %v660 = vrot.slane %v659, 2
        %v661 = vadd.f32 %v659, %v660
        %v662 = vrot.slane %v661, 1
        %v663 = vadd.f32 %v661, %v662
        %vm664 = vcmask 1040384
        %v665 = vsel %vm664, %v562, %v663
        %vm666 = vcmask 1041408
        %v667 = vsel %vm666, %v665, 0.0
        %668 = vst.msk [vmem:[%s259] sm:$0xff] %vm461, %v667
        %s669 = smul.u32 32, %s20
        %p670 = scmp.lt.s32.totalorder %s669, 63
        %s671 = scalar_select %p670, %s669, 63
        %s672 = smul.addr %s671, 8
        %s673 = scalar_lea.vmem %s4, %s672
        %p674 = scmp.lt.s32.totalorder %s20, 1
        %s675 = scalar_select %p674, %s20, 1
        %s676 = smul.addr %s675, 8
        %s677 = scalar_lea.vmem %s5, %s676
        // Predicated region
        $region41: #{bottleneck_forward.4} parent=35 // pred_check
          %p678 = pneg %p127
        $region42: #{bottleneck_forward.4} parent=35 // pred_check_branch
          %680 = sbr.rel (%p678) target = $region44
        $region43: #{bottleneck_forward.4} parent=35 // pred_region
          %s681 = smul.u32 32, %s20
        $region44: #{bottleneck_forward.4} parent=35 // pred_fallthru
          _
        // Predicated region
        $region45: #{bottleneck_forward.4} parent=35 // pred_check
          %p682 = pneg %p153
        $region46: #{bottleneck_forward.4} parent=35 // pred_check_branch
          %684 = sbr.rel (%p682) target = $region48
        $region47: #{bottleneck_forward.4} parent=35 // pred_region
          _
        $region48: #{bottleneck_forward.4} parent=35 // pred_fallthru
          _
      $region36: #{bottleneck_forward.4} parent=5 // pred_fallthru
        _
      %p685 = scmp.le.s32.totalorder 2, %s15
      // Predicated region
      $region49: #{bottleneck_forward.4} parent=5 // pred_check
        %p686 = pneg %p685
      $region50: #{bottleneck_forward.4} parent=5 // pred_check_branch
        %688 = sbr.rel (%p686) target = $region52
      $region51: #{bottleneck_forward.4} parent=5 // pred_region
        %s689 = ssub.s32 %s15, 2
        // Predicated region
        $region53: #{bottleneck_forward.4} parent=51 // pred_check
          %p690 = pneg %p133
        $region54: #{bottleneck_forward.4} parent=51 // pred_check_branch
          %692 = sbr.rel (%p690) target = $region56
        $region55: #{bottleneck_forward.4} parent=51 // pred_region
          %s693 = smul.u32 32, %s21
          %p694 = scmp.lt.s32.totalorder %s693, 63
          %s695 = scalar_select %p694, %s693, 63
          %s696 = smul.addr %s695, 8
          %s697 = scalar_lea.vmem %s4, %s696
        $region56: #{bottleneck_forward.4} parent=51 // pred_fallthru
          _
        // Predicated region
        $region57: #{bottleneck_forward.4} parent=51 // pred_check
          %p698 = pneg %p159
        $region58: #{bottleneck_forward.4} parent=51 // pred_check_branch
          %700 = sbr.rel (%p698) target = $region60
        $region59: #{bottleneck_forward.4} parent=51 // pred_region
          %p701 = scmp.lt.s32.totalorder %s21, 1
          %s702 = scalar_select %p701, %s21, 1
          %s703 = smul.addr %s702, 8
          %s704 = scalar_lea.vmem %s5, %s703
        $region60: #{bottleneck_forward.4} parent=51 // pred_fallthru
          _
      $region52: #{bottleneck_forward.4} parent=5 // pred_fallthru
        _
    $region6: #{bottleneck_forward.4} parent=1 // loop_footer
      %s19 = sadd.s32 1, %s15
    $region7: #{bottleneck_forward.4} parent=1 // loop_footer_branch
      %14 = sbr.rel target = $region3
    $region8: #{bottleneck_forward.4} parent=1 // loop_exit
      _
    %705 = vsyncpa [#allocation3], 1
    %s706 = scalar_lea.sflag [#allocation3], 1
    %707 = vsyncpa %s706, 1

// kernel: bottleneck_forward.6
$region0: #{bottleneck_forward.6}
  #allocation0 [shape = 'u32[]', space=smem, size = 0x4, offset = 0x4, fixed_abs, tag = 'smem constant byte address 0x4 - core index']
  #allocation1 [shape = 'u32[72,128]{1,0:T(1,128)}', space=vmem, size = 0x9000, scoped, tag = 'internal scratch']
  %s0 = inlined_call_operand.vmem [shape: f32[512,32], index: 0, kind: input, shape index: {}]
  %s1 = inlined_call_operand.vmem [shape: f32[1,32], index: 1, kind: input, shape index: {}]
  %s2 = inlined_call_operand.vmem [shape: f32[1,32], index: 2, kind: input, shape index: {}]
  %s3 = inlined_call_operand.vmem [shape: bf16[32,128], index: 3, kind: input, shape index: {}]
  %s4 = inlined_call_operand.vmem [shape: f32[512,128], index: 4, kind: output, shape index: {0}]
  %s5 = inlined_call_operand.vmem [shape: f32[16,128], index: 5, kind: output, shape index: {1}]
  %6 = xla_tuple %s4, %s5
  %s7 = sld [smem:[#allocation0]]
  $region57: #{bottleneck_forward.6} parent=0
    _
  %s9 = ssub.s32 1, %s7
  %s10 = scalar_select 0, %s9, %s7
  loop: start=0, step=1, limit=4
  $region2: #{bottleneck_forward.6} parent=0 // loop_pre_header
    _
  $region3: #{bottleneck_forward.6} parent=0 // loop_header
    %s12 = sphi 0, %s16
    %p13 = scmp.ge.s32.totalorder %s12, 4
    %s22 = sphi 0, %s24
    %s25 = sphi 0, %s22
    %s26 = sphi 0, %s25
    %s42 = sphi 0, %s26
    %s46 = sphi 0, %s46
    %s48 = sphi 0, %s46
    %s49 = sphi 0, %s48
    %s63 = sphi 0, %s49
    %s67 = sphi 0, %s67
    %s69 = sphi 0, %s67
    %s70 = sphi 0, %s69
    %s84 = sphi 0, %s70
    %s88 = sphi 0, %s88
    %s90 = sphi 0, %s88
    %s91 = sphi 0, %s90
    %s105 = sphi 0, %s91
    %s111 = sphi 0, %s113
    %s114 = sphi 0, %s111
    %s115 = sphi 0, %s114
    %s131 = sphi 0, %s115
    %s137 = sphi 0, %s139
    %s140 = sphi 0, %s137
    %s141 = sphi 0, %s140
    %s157 = sphi 0, %s141
  $region4: #{bottleneck_forward.6} parent=0 // loop_header_branch
    %15 = sbr.rel (%p13) target = $region8
  $region5: #{bottleneck_forward.6} parent=0 // loop_body
    %s17 = ssub.s32 %s12, 1
    %s18 = ssub.s32 %s12, 2
    %s19 = sadd.s32 %s12, 1
    %s20 = ssub.s32 %s12, %s19
    %p21 = scmp.eq.s32.totalorder %s20, 0
    %s23 = sadd.s32 %s22, 1
    %s24 = scalar_select %p21, %s22, %s23
    %p27 = pneg %p21
    %p28 = scmp.eq.s32.totalorder %s12, 1
    %p29 = por %p27, %p28
    %p30 = scmp.ne.s32.totalorder %s22, %s25
    %p31 = scmp.eq.s32.totalorder %s12, 0
    %p32 = por %p30, %p31
    %p33 = scmp.ne.s32.totalorder %s22, %s25
    %p34 = scmp.eq.s32.totalorder %s17, 1
    %p35 = por %p33, %p34
    %p36 = scmp.ne.s32.totalorder %s25, %s26
    %p37 = scmp.eq.s32.totalorder %s17, 0
    %p38 = por %p36, %p37
    %p39 = scmp.ne.s32.totalorder %s25, %s26
    %p40 = scmp.eq.s32.totalorder %s18, 1
    %p41 = por %p39, %p40
    %p43 = scmp.ne.s32.totalorder %s26, %s42
    %p44 = scmp.eq.s32.totalorder %s18, 0
    %p45 = por %p43, %p44
    %s47 = sadd.s32 %s46, 1
    %p50 = scmp.eq.s32.totalorder %s12, 1
    %p51 = scmp.ne.s32.totalorder %s46, %s48
    %p52 = scmp.eq.s32.totalorder %s12, 0
    %p53 = por %p51, %p52
    %p54 = scmp.ne.s32.totalorder %s46, %s48
    %p55 = scmp.eq.s32.totalorder %s17, 1
    %p56 = por %p54, %p55
    %p57 = scmp.ne.s32.totalorder %s48, %s49
    %p58 = scmp.eq.s32.totalorder %s17, 0
    %p59 = por %p57, %p58
    %p60 = scmp.ne.s32.totalorder %s48, %s49
    %p61 = scmp.eq.s32.totalorder %s18, 1
    %p62 = por %p60, %p61
    %p64 = scmp.ne.s32.totalorder %s49, %s63
    %p65 = scmp.eq.s32.totalorder %s18, 0
    %p66 = por %p64, %p65
    %s68 = sadd.s32 %s67, 1
    %p71 = scmp.eq.s32.totalorder %s12, 1
    %p72 = scmp.ne.s32.totalorder %s67, %s69
    %p73 = scmp.eq.s32.totalorder %s12, 0
    %p74 = por %p72, %p73
    %p75 = scmp.ne.s32.totalorder %s67, %s69
    %p76 = scmp.eq.s32.totalorder %s17, 1
    %p77 = por %p75, %p76
    %p78 = scmp.ne.s32.totalorder %s69, %s70
    %p79 = scmp.eq.s32.totalorder %s17, 0
    %p80 = por %p78, %p79
    %p81 = scmp.ne.s32.totalorder %s69, %s70
    %p82 = scmp.eq.s32.totalorder %s18, 1
    %p83 = por %p81, %p82
    %p85 = scmp.ne.s32.totalorder %s70, %s84
    %p86 = scmp.eq.s32.totalorder %s18, 0
    %p87 = por %p85, %p86
    %s89 = sadd.s32 %s88, 1
    %p92 = scmp.eq.s32.totalorder %s12, 1
    %p93 = scmp.ne.s32.totalorder %s88, %s90
    %p94 = scmp.eq.s32.totalorder %s12, 0
    %p95 = por %p93, %p94
    %p96 = scmp.ne.s32.totalorder %s88, %s90
    %p97 = scmp.eq.s32.totalorder %s17, 1
    %p98 = por %p96, %p97
    %p99 = scmp.ne.s32.totalorder %s90, %s91
    %p100 = scmp.eq.s32.totalorder %s17, 0
    %p101 = por %p99, %p100
    %p102 = scmp.ne.s32.totalorder %s90, %s91
    %p103 = scmp.eq.s32.totalorder %s18, 1
    %p104 = por %p102, %p103
    %p106 = scmp.ne.s32.totalorder %s91, %s105
    %p107 = scmp.eq.s32.totalorder %s18, 0
    %p108 = por %p106, %p107
    %s109 = ssub.s32 %s12, %s19
    %p110 = scmp.eq.s32.totalorder %s109, 0
    %s112 = sadd.s32 %s111, 1
    %s113 = scalar_select %p110, %s111, %s112
    %p116 = pneg %p110
    %p117 = scmp.eq.s32.totalorder %s12, 1
    %p118 = por %p116, %p117
    %p119 = scmp.ne.s32.totalorder %s111, %s114
    %p120 = scmp.eq.s32.totalorder %s12, 0
    %p121 = por %p119, %p120
    %p122 = scmp.ne.s32.totalorder %s111, %s114
    %p123 = scmp.eq.s32.totalorder %s17, 1
    %p124 = por %p122, %p123
    %p125 = scmp.ne.s32.totalorder %s114, %s115
    %p126 = scmp.eq.s32.totalorder %s17, 0
    %p127 = por %p125, %p126
    %p128 = scmp.ne.s32.totalorder %s114, %s115
    %p129 = scmp.eq.s32.totalorder %s18, 1
    %p130 = por %p128, %p129
    %p132 = scmp.ne.s32.totalorder %s115, %s131
    %p133 = scmp.eq.s32.totalorder %s18, 0
    %p134 = por %p132, %p133
    %s135 = ssub.s32 %s12, %s19
    %p136 = scmp.eq.s32.totalorder %s135, 0
    %s138 = sadd.s32 %s137, 1
    %s139 = scalar_select %p136, %s137, %s138
    %p142 = pneg %p136
    %p143 = scmp.eq.s32.totalorder %s12, 1
    %p144 = por %p142, %p143
    %p145 = scmp.ne.s32.totalorder %s137, %s140
    %p146 = scmp.eq.s32.totalorder %s12, 0
    %p147 = por %p145, %p146
    %p148 = scmp.ne.s32.totalorder %s137, %s140
    %p149 = scmp.eq.s32.totalorder %s17, 1
    %p150 = por %p148, %p149
    %p151 = scmp.ne.s32.totalorder %s140, %s141
    %p152 = scmp.eq.s32.totalorder %s17, 0
    %p153 = por %p151, %p152
    %p154 = scmp.ne.s32.totalorder %s140, %s141
    %p155 = scmp.eq.s32.totalorder %s18, 1
    %p156 = por %p154, %p155
    %p158 = scmp.ne.s32.totalorder %s141, %s157
    %p159 = scmp.eq.s32.totalorder %s18, 0
    %p160 = por %p158, %p159
    %p161 = scmp.le.s32.totalorder 1, %s12
    %p162 = scmp.lt.s32.totalorder %s12, 3
    %p163 = pnand %p161, %p162
    %p164 = pneg %p163
    // Predicated region
    $region9: #{bottleneck_forward.6} parent=5 // pred_check
      _
    $region10: #{bottleneck_forward.6} parent=5 // pred_check_branch
      %166 = sbr.rel (%p163) target = $region12
    $region11: #{bottleneck_forward.6} parent=5 // pred_region
      %s167 = ssub.s32 %s12, 1
      // Predicated region
      $region13: #{bottleneck_forward.6} parent=11 // pred_check
        %p168 = pneg %p59
      $region14: #{bottleneck_forward.6} parent=11 // pred_check_branch
        %170 = sbr.rel (%p168) target = $region16
      $region15: #{bottleneck_forward.6} parent=11 // pred_region
        _
      $region16: #{bottleneck_forward.6} parent=11 // pred_fallthru
        _
      // Predicated region
      $region17: #{bottleneck_forward.6} parent=11 // pred_check
        %p171 = pneg %p80
      $region18: #{bottleneck_forward.6} parent=11 // pred_check_branch
        %173 = sbr.rel (%p171) target = $region20
      $region19: #{bottleneck_forward.6} parent=11 // pred_region
        _
      $region20: #{bottleneck_forward.6} parent=11 // pred_fallthru
        _
      // Predicated region
      $region21: #{bottleneck_forward.6} parent=11 // pred_check
        %p174 = pneg %p101
      $region22: #{bottleneck_forward.6} parent=11 // pred_check_branch
        %176 = sbr.rel (%p174) target = $region24
      $region23: #{bottleneck_forward.6} parent=11 // pred_region
        _
      $region24: #{bottleneck_forward.6} parent=11 // pred_fallthru
        _
    $region12: #{bottleneck_forward.6} parent=5 // pred_fallthru
      _
    %p177 = scmp.lt.s32.totalorder %s12, 2
    // Predicated region
    $region25: #{bottleneck_forward.6} parent=5 // pred_check
      %p178 = pneg %p177
    $region26: #{bottleneck_forward.6} parent=5 // pred_check_branch
      %180 = sbr.rel (%p178) target = $region28
    $region27: #{bottleneck_forward.6} parent=5 // pred_region
      // Predicated region
      $region29: #{bottleneck_forward.6} parent=27 // pred_check
        %p181 = pneg %p32
      $region30: #{bottleneck_forward.6} parent=27 // pred_check_branch
        %183 = sbr.rel (%p181) target = $region32
      $region31: #{bottleneck_forward.6} parent=27 // pred_region
        %s184 = smul.u32 32, %s12
        %p185 = scmp.lt.s32.totalorder %s184, 63
        %s186 = scalar_select %p185, %s184, 63
        %s187 = smul.addr %s186, 8
        %s188 = scalar_lea.vmem %s0, %s187
        %s189 = smul.u32 32, %s12
      $region32: #{bottleneck_forward.6} parent=27 // pred_fallthru
        _
    $region28: #{bottleneck_forward.6} parent=5 // pred_fallthru
      _
    %p190 = scmp.le.s32.totalorder 1, %s12
    %p191 = scmp.lt.s32.totalorder %s12, 3
    %p192 = pnand %p190, %p191
    %p193 = pneg %p192
    // Predicated region
    $region33: #{bottleneck_forward.6} parent=5 // pred_check
      _
    $region34: #{bottleneck_forward.6} parent=5 // pred_check_branch
      %195 = sbr.rel (%p192) target = $region36
    $region35: #{bottleneck_forward.6} parent=5 // pred_region
      %s196 = ssub.s32 %s12, 1
      %s197 = smul.u32 32, %s17
      %p198 = scmp.lt.s32.totalorder %s197, 63
      %s199 = scalar_select %p198, %s197, 63
      %s200 = smul.addr %s199, 8
      %s201 = scalar_lea.vmem %s0, %s200
      %p202 = pneg %p38
      %p203 = pneg %p35
      %p204 = pneg %p59
      %p205 = pneg %p56
      %p206 = pneg %p80
      %p207 = pneg %p77
      %p208 = pneg %p101
      %p209 = pneg %p98
      %p210 = pneg %p127
      %p211 = pneg %p124
      %s212 = smul.u32 32, %s17
      %p213 = scmp.lt.s32.totalorder %s212, 63
      %s214 = scalar_select %p213, %s212, 63
      %s215 = smul.addr %s214, 8
      %s216 = scalar_lea.vmem %s4, %s215
      %p217 = pneg %p153
      %p218 = pneg %p150
      %p219 = scmp.lt.s32.totalorder %s17, 1
      %s220 = scalar_select %p219, %s17, 1
      %s221 = smul.addr %s220, 8
      %s222 = scalar_lea.vmem %s5, %s221
      %s223 = smul.u32 32, %s17
      %p224 = scmp.lt.s32.totalorder %s223, 63
      %s225 = scalar_select %p224, %s223, 63
      %s226 = smul.addr %s225, 8
      %s227 = scalar_lea.vmem %s0, %s226
      %s228 = smul.u32 32, %s17
      %s229 = smul.u32 32, %s17
      %p230 = scmp.lt.s32.totalorder %s229, 63
      %s231 = scalar_select %p230, %s229, 63
      %s232 = smul.addr %s231, 8
      %s233 = scalar_lea.vmem %s4, %s232
      %s234 = smul.u32 32, %s17
      %p235 = scmp.lt.s32.totalorder %s17, 1
      %s236 = scalar_select %p235, %s17, 1
      %s237 = smul.addr %s236, 8
      %s238 = scalar_lea.vmem %s5, %s237
      %v240 = vld [vmem:[%s227] sm:$0xff]
      %v241 = vld [vmem:[%s227 + $0x8] sm:$0xff]
      %v242 = vld [vmem:[%s227 + $0x10] sm:$0xff]
      %v243 = vld [vmem:[%s227 + $0x18] sm:$0xff]
      %v244 = vld [vmem:[%s227 + $0x20] sm:$0xff]
      %v245 = vld [vmem:[%s227 + $0x28] sm:$0xff]
      %v246 = vld [vmem:[%s227 + $0x30] sm:$0xff]
      %v247 = vld [vmem:[%s227 + $0x38] sm:$0xff]
      %v248 = vld [vmem:[%s227 + $0x40] sm:$0xff]
      %v249 = vld [vmem:[%s227 + $0x48] sm:$0xff]
      %v250 = vld [vmem:[%s227 + $0x50] sm:$0xff]
      %v251 = vld [vmem:[%s227 + $0x58] sm:$0xff]
      %v252 = vld [vmem:[%s227 + $0x60] sm:$0xff]
      %v253 = vld [vmem:[%s227 + $0x68] sm:$0xff]
      %v254 = vld [vmem:[%s227 + $0x70] sm:$0xff]
      %v255 = vld [vmem:[%s227 + $0x78] sm:$0xff]
      %v256 = vld [vmem:[%s227 + $0x80] sm:$0xff]
      %v257 = vld [vmem:[%s227 + $0x88] sm:$0xff]
      %v258 = vld [vmem:[%s227 + $0x90] sm:$0xff]
      %v259 = vld [vmem:[%s227 + $0x98] sm:$0xff]
      %v260 = vld [vmem:[%s227 + $0xa0] sm:$0xff]
      %v261 = vld [vmem:[%s227 + $0xa8] sm:$0xff]
      %v262 = vld [vmem:[%s227 + $0xb0] sm:$0xff]
      %v263 = vld [vmem:[%s227 + $0xb8] sm:$0xff]
      %v264 = vld [vmem:[%s227 + $0xc0] sm:$0xff]
      %v265 = vld [vmem:[%s227 + $0xc8] sm:$0xff]
      %v266 = vld [vmem:[%s227 + $0xd0] sm:$0xff]
      %v267 = vld [vmem:[%s227 + $0xd8] sm:$0xff]
      %v268 = vld [vmem:[%s227 + $0xe0] sm:$0xff]
      %v269 = vld [vmem:[%s227 + $0xe8] sm:$0xff]
      %v270 = vld [vmem:[%s227 + $0xf0] sm:$0xff]
      %v271 = vld [vmem:[%s227 + $0xf8] sm:$0xff]
      %v272 = vld [vmem:[%s1] sm:$0x1]
      %v274 = vperm.slane %v272, 0
      %v276 = vmul.f32 %v240, %v274
      %v277 = vmul.f32 %v241, %v274
      %v278 = vmul.f32 %v242, %v274
      %v279 = vmul.f32 %v243, %v274
      %v280 = vmul.f32 %v244, %v274
      %v281 = vmul.f32 %v245, %v274
      %v282 = vmul.f32 %v246, %v274
      %v283 = vmul.f32 %v247, %v274
      %v284 = vmul.f32 %v248, %v274
      %v285 = vmul.f32 %v249, %v274
      %v286 = vmul.f32 %v250, %v274
      %v287 = vmul.f32 %v251, %v274
      %v288 = vmul.f32 %v252, %v274
      %v289 = vmul.f32 %v253, %v274
      %v290 = vmul.f32 %v254, %v274
      %v291 = vmul.f32 %v255, %v274
      %v292 = vmul.f32 %v256, %v274
      %v293 = vmul.f32 %v257, %v274
      %v294 = vmul.f32 %v258, %v274
      %v295 = vmul.f32 %v259, %v274
      %v296 = vmul.f32 %v260, %v274
      %v297 = vmul.f32 %v261, %v274
      %v298 = vmul.f32 %v262, %v274
      %v299 = vmul.f32 %v263, %v274
      %v300 = vmul.f32 %v264, %v274
      %v301 = vmul.f32 %v265, %v274
      %v302 = vmul.f32 %v266, %v274
      %v303 = vmul.f32 %v267, %v274
      %v304 = vmul.f32 %v268, %v274
      %v305 = vmul.f32 %v269, %v274
      %v306 = vmul.f32 %v270, %v274
      %v307 = vmul.f32 %v271, %v274
      %v308 = vld [vmem:[%s2] sm:$0x1]
      %v310 = vperm.slane %v308, 0
      %v312 = vadd.f32 %v276, %v310
      %v313 = vadd.f32 %v277, %v310
      %v314 = vadd.f32 %v278, %v310
      %v315 = vadd.f32 %v279, %v310
      %v316 = vadd.f32 %v280, %v310
      %v317 = vadd.f32 %v281, %v310
      %v318 = vadd.f32 %v282, %v310
      %v319 = vadd.f32 %v283, %v310
      %v320 = vadd.f32 %v284, %v310
      %v321 = vadd.f32 %v285, %v310
      %v322 = vadd.f32 %v286, %v310
      %v323 = vadd.f32 %v287, %v310
      %v324 = vadd.f32 %v288, %v310
      %v325 = vadd.f32 %v289, %v310
      %v326 = vadd.f32 %v290, %v310
      %v327 = vadd.f32 %v291, %v310
      %v328 = vadd.f32 %v292, %v310
      %v329 = vadd.f32 %v293, %v310
      %v330 = vadd.f32 %v294, %v310
      %v331 = vadd.f32 %v295, %v310
      %v332 = vadd.f32 %v296, %v310
      %v333 = vadd.f32 %v297, %v310
      %v334 = vadd.f32 %v298, %v310
      %v335 = vadd.f32 %v299, %v310
      %v336 = vadd.f32 %v300, %v310
      %v337 = vadd.f32 %v301, %v310
      %v338 = vadd.f32 %v302, %v310
      %v339 = vadd.f32 %v303, %v310
      %v340 = vadd.f32 %v304, %v310
      %v341 = vadd.f32 %v305, %v310
      %v342 = vadd.f32 %v306, %v310
      %v343 = vadd.f32 %v307, %v310
      %v344 = vmax.f32 %v312, 0.0
      %v345 = vmax.f32 %v313, 0.0
      %v346 = vmax.f32 %v314, 0.0
      %v347 = vmax.f32 %v315, 0.0
      %v348 = vmax.f32 %v316, 0.0
      %v349 = vmax.f32 %v317, 0.0
      %v350 = vmax.f32 %v318, 0.0
      %v351 = vmax.f32 %v319, 0.0
      %v352 = vmax.f32 %v320, 0.0
      %v353 = vmax.f32 %v321, 0.0
      %v354 = vmax.f32 %v322, 0.0
      %v355 = vmax.f32 %v323, 0.0
      %v356 = vmax.f32 %v324, 0.0
      %v357 = vmax.f32 %v325, 0.0
      %v358 = vmax.f32 %v326, 0.0
      %v359 = vmax.f32 %v327, 0.0
      %v360 = vmax.f32 %v328, 0.0
      %v361 = vmax.f32 %v329, 0.0
      %v362 = vmax.f32 %v330, 0.0
      %v363 = vmax.f32 %v331, 0.0
      %v364 = vmax.f32 %v332, 0.0
      %v365 = vmax.f32 %v333, 0.0
      %v366 = vmax.f32 %v334, 0.0
      %v367 = vmax.f32 %v335, 0.0
      %v368 = vmax.f32 %v336, 0.0
      %v369 = vmax.f32 %v337, 0.0
      %v370 = vmax.f32 %v338, 0.0
      %v371 = vmax.f32 %v339, 0.0
      %v372 = vmax.f32 %v340, 0.0
      %v373 = vmax.f32 %v341, 0.0
      %v374 = vmax.f32 %v342, 0.0
      %v375 = vmax.f32 %v343, 0.0
      %v376 = vpack.c.bf16 %v345, %v344
      %v377 = vpack.c.bf16 %v347, %v346
      %v378 = vpack.c.bf16 %v349, %v348
      %v379 = vpack.c.bf16 %v351, %v350
      %v380 = vpack.c.bf16 %v353, %v352
      %v381 = vpack.c.bf16 %v355, %v354
      %v382 = vpack.c.bf16 %v357, %v356
      %v383 = vpack.c.bf16 %v359, %v358
      %v384 = vpack.c.bf16 %v361, %v360
      %v385 = vpack.c.bf16 %v363, %v362
      %v386 = vpack.c.bf16 %v365, %v364
      %v387 = vpack.c.bf16 %v367, %v366
      %v388 = vpack.c.bf16 %v369, %v368
      %v389 = vpack.c.bf16 %v371, %v370
      %v390 = vpack.c.bf16 %v373, %v372
      %v391 = vpack.c.bf16 %v375, %v374
      %v392 = vld [vmem:[%s3] sm:$0xf]
      %v393 = vld [vmem:[%s3 + $0x4] sm:$0xf]
      %v394 = vld [vmem:[%s3 + $0x8] sm:$0xf]
      %v395 = vld [vmem:[%s3 + $0xc] sm:$0xf]
      %v400 = vunpack.c.l.b16 %v392
      %v401 = vunpack.c.l.b16 %v393
      %v402 = vunpack.c.l.b16 %v394
      %v403 = vunpack.c.l.b16 %v395
      %v404 = vpack.c.b16 %v401, %v400
      %v405 = vpack.c.b16 %v403, %v402
      %vm408 = vcmask 261120
      %v410 = vsel %vm408, %v376, 0
      %v413 = vsel %vm408, %v377, 0
      %v416 = vsel %vm408, %v378, 0
      %v419 = vsel %vm408, %v379, 0
      %v422 = vsel %vm408, %v380, 0
      %v425 = vsel %vm408, %v381, 0
      %v428 = vsel %vm408, %v382, 0
      %v431 = vsel %vm408, %v383, 0
      %v434 = vsel %vm408, %v384, 0
      %v437 = vsel %vm408, %v385, 0
      %v440 = vsel %vm408, %v386, 0
      %v443 = vsel %vm408, %v387, 0
      %v446 = vsel %vm408, %v388, 0
      %v449 = vsel %vm408, %v389, 0
      %v452 = vsel %vm408, %v390, 0
      %v455 = vsel %vm408, %v391, 0
      %457 = vmatpush.bf16.msra.mxu0 0
      %458 = vmatpush.bf16.msra.mxu0 0
      %459 = vmatpush.bf16.msra.mxu0 0
      %460 = vmatpush.bf16.msra.mxu0 0
      %461 = vmatpush.bf16.msra.mxu0 0
      %462 = vmatpush.bf16.msra.mxu0 0
      %463 = vmatpush.bf16.msra.mxu0 %v405
      %464 = vmatpush.bf16.msra.mxu0 %v404
      %465 = vmatmul.bf16.gmra.mxu0 %v410
      %v466 = vpop.f32.mrf.mxu0
      %v467 = vadd.f32 0.0, %v466
      %v468 = vpop.f32.mrf.mxu0
      %v469 = vadd.f32 0.0, %v468
      %470 = vmatmul.bf16.gmra.mxu0 %v413
      %v471 = vpop.f32.mrf.mxu0
      %v472 = vadd.f32 0.0, %v471
      %v473 = vpop.f32.mrf.mxu0
      %v474 = vadd.f32 0.0, %v473
      %475 = vmatmul.bf16.gmra.mxu0 %v416
      %v476 = vpop.f32.mrf.mxu0
      %v477 = vadd.f32 0.0, %v476
      %v478 = vpop.f32.mrf.mxu0
      %v479 = vadd.f32 0.0, %v478
      %480 = vmatmul.bf16.gmra.mxu0 %v419
      %v481 = vpop.f32.mrf.mxu0
      %v482 = vadd.f32 0.0, %v481
      %v483 = vpop.f32.mrf.mxu0
      %v484 = vadd.f32 0.0, %v483
      %485 = vmatmul.bf16.gmra.mxu0 %v422
      %v486 = vpop.f32.mrf.mxu0
      %v487 = vadd.f32 0.0, %v486
      %v488 = vpop.f32.mrf.mxu0
      %v489 = vadd.f32 0.0, %v488
      %490 = vmatmul.bf16.gmra.mxu0 %v425
      %v491 = vpop.f32.mrf.mxu0
      %v492 = vadd.f32 0.0, %v491
      %v493 = vpop.f32.mrf.mxu0
      %v494 = vadd.f32 0.0, %v493
      %495 = vmatmul.bf16.gmra.mxu0 %v428
      %v496 = vpop.f32.mrf.mxu0
      %v497 = vadd.f32 0.0, %v496
      %v498 = vpop.f32.mrf.mxu0
      %v499 = vadd.f32 0.0, %v498
      %500 = vmatmul.bf16.gmra.mxu0 %v431
      %v501 = vpop.f32.mrf.mxu0
      %v502 = vadd.f32 0.0, %v501
      %v503 = vpop.f32.mrf.mxu0
      %v504 = vadd.f32 0.0, %v503
      %505 = vmatmul.bf16.gmra.mxu0 %v434
      %v506 = vpop.f32.mrf.mxu0
      %v507 = vadd.f32 0.0, %v506
      %v508 = vpop.f32.mrf.mxu0
      %v509 = vadd.f32 0.0, %v508
      %510 = vmatmul.bf16.gmra.mxu0 %v437
      %v511 = vpop.f32.mrf.mxu0
      %v512 = vadd.f32 0.0, %v511
      %v513 = vpop.f32.mrf.mxu0
      %v514 = vadd.f32 0.0, %v513
      %515 = vmatmul.bf16.gmra.mxu0 %v440
      %v516 = vpop.f32.mrf.mxu0
      %v517 = vadd.f32 0.0, %v516
      %v518 = vpop.f32.mrf.mxu0
      %v519 = vadd.f32 0.0, %v518
      %520 = vmatmul.bf16.gmra.mxu0 %v443
      %v521 = vpop.f32.mrf.mxu0
      %v522 = vadd.f32 0.0, %v521
      %v523 = vpop.f32.mrf.mxu0
      %v524 = vadd.f32 0.0, %v523
      %525 = vmatmul.bf16.gmra.mxu0 %v446
      %v526 = vpop.f32.mrf.mxu0
      %v527 = vadd.f32 0.0, %v526
      %v528 = vpop.f32.mrf.mxu0
      %v529 = vadd.f32 0.0, %v528
      %530 = vmatmul.bf16.gmra.mxu0 %v449
      %v531 = vpop.f32.mrf.mxu0
      %v532 = vadd.f32 0.0, %v531
      %v533 = vpop.f32.mrf.mxu0
      %v534 = vadd.f32 0.0, %v533
      %535 = vmatmul.bf16.gmra.mxu0 %v452
      %v536 = vpop.f32.mrf.mxu0
      %v537 = vadd.f32 0.0, %v536
      %v538 = vpop.f32.mrf.mxu0
      %v539 = vadd.f32 0.0, %v538
      %540 = vmatmul.bf16.gmra.mxu0 %v455
      %v541 = vpop.f32.mrf.mxu0
      %v542 = vadd.f32 0.0, %v541
      %v543 = vpop.f32.mrf.mxu0
      %v544 = vadd.f32 0.0, %v543
      %545 = vdwg.mxu0
      %546 = vst [vmem:[%s233] sm:$0xff] %v467
      %547 = vst [vmem:[%s233 + $0x8] sm:$0xff] %v469
      %548 = vst [vmem:[%s233 + $0x10] sm:$0xff] %v472
      %549 = vst [vmem:[%s233 + $0x18] sm:$0xff] %v474
      %550 = vst [vmem:[%s233 + $0x20] sm:$0xff] %v477
      %551 = vst [vmem:[%s233 + $0x28] sm:$0xff] %v479
      %552 = vst [vmem:[%s233 + $0x30] sm:$0xff] %v482
      %553 = vst [vmem:[%s233 + $0x38] sm:$0xff] %v484
      %554 = vst [vmem:[%s233 + $0x40] sm:$0xff] %v487
      %555 = vst [vmem:[%s233 + $0x48] sm:$0xff] %v489
      %556 = vst [vmem:[%s233 + $0x50] sm:$0xff] %v492
      %557 = vst [vmem:[%s233 + $0x58] sm:$0xff] %v494
      %558 = vst [vmem:[%s233 + $0x60] sm:$0xff] %v497
      %559 = vst [vmem:[%s233 + $0x68] sm:$0xff] %v499
      %560 = vst [vmem:[%s233 + $0x70] sm:$0xff] %v502
      %561 = vst [vmem:[%s233 + $0x78] sm:$0xff] %v504
      %562 = vst [vmem:[%s233 + $0x80] sm:$0xff] %v507
      %563 = vst [vmem:[%s233 + $0x88] sm:$0xff] %v509
      %564 = vst [vmem:[%s233 + $0x90] sm:$0xff] %v512
      %565 = vst [vmem:[%s233 + $0x98] sm:$0xff] %v514
      %566 = vst [vmem:[%s233 + $0xa0] sm:$0xff] %v517
      %567 = vst [vmem:[%s233 + $0xa8] sm:$0xff] %v519
      %568 = vst [vmem:[%s233 + $0xb0] sm:$0xff] %v522
      %569 = vst [vmem:[%s233 + $0xb8] sm:$0xff] %v524
      %570 = vst [vmem:[%s233 + $0xc0] sm:$0xff] %v527
      %571 = vst [vmem:[%s233 + $0xc8] sm:$0xff] %v529
      %572 = vst [vmem:[%s233 + $0xd0] sm:$0xff] %v532
      %573 = vst [vmem:[%s233 + $0xd8] sm:$0xff] %v534
      %574 = vst [vmem:[%s233 + $0xe0] sm:$0xff] %v537
      %575 = vst [vmem:[%s233 + $0xe8] sm:$0xff] %v539
      %576 = vst [vmem:[%s233 + $0xf0] sm:$0xff] %v542
      %577 = vst [vmem:[%s233 + $0xf8] sm:$0xff] %v544
      %v578 = vadd.f32 %v467, %v469
      %v579 = vadd.f32 %v578, %v472
      %v580 = vadd.f32 %v579, %v474
      %v581 = vadd.f32 %v580, %v477
      %v582 = vadd.f32 %v581, %v479
      %v583 = vadd.f32 %v582, %v482
      %v584 = vadd.f32 %v583, %v484
      %v585 = vadd.f32 %v584, %v487
      %v586 = vadd.f32 %v585, %v489
      %v587 = vadd.f32 %v586, %v492
      %v588 = vadd.f32 %v587, %v494
      %v589 = vadd.f32 %v588, %v497
      %v590 = vadd.f32 %v589, %v499
      %v591 = vadd.f32 %v590, %v502
      %v592 = vadd.f32 %v591, %v504
      %v593 = vadd.f32 %v592, %v507
      %v594 = vadd.f32 %v593, %v509
      %v595 = vadd.f32 %v594, %v512
      %v596 = vadd.f32 %v595, %v514
      %v597 = vadd.f32 %v596, %v517
      %v598 = vadd.f32 %v597, %v519
      %v599 = vadd.f32 %v598, %v522
      %v600 = vadd.f32 %v599, %v524
      %v601 = vadd.f32 %v600, %v527
      %v602 = vadd.f32 %v601, %v529
      %v603 = vadd.f32 %v602, %v532
      %v604 = vadd.f32 %v603, %v534
      %v605 = vadd.f32 %v604, %v537
      %v606 = vadd.f32 %v605, %v539
      %v607 = vadd.f32 %v606, %v542
      %v608 = vadd.f32 %v607, %v544
      %v609 = vrot.slane %v608, 4
      %v610 = vadd.f32 %v608, %v609
      %v611 = vrot.slane %v610, 2
      %v612 = vadd.f32 %v610, %v611
      %v613 = vrot.slane %v612, 1
      %v614 = vadd.f32 %v612, %v613
      %v615 = vmul.f32 %v467, %v467
      %v616 = vmul.f32 %v469, %v469
      %v617 = vmul.f32 %v472, %v472
      %v618 = vmul.f32 %v474, %v474
      %v619 = vmul.f32 %v477, %v477
      %v620 = vmul.f32 %v479, %v479
      %v621 = vmul.f32 %v482, %v482
      %v622 = vmul.f32 %v484, %v484
      %v623 = vmul.f32 %v487, %v487
      %v624 = vmul.f32 %v489, %v489
      %v625 = vmul.f32 %v492, %v492
      %v626 = vmul.f32 %v494, %v494
      %v627 = vmul.f32 %v497, %v497
      %v628 = vmul.f32 %v499, %v499
      %v629 = vmul.f32 %v502, %v502
      %v630 = vmul.f32 %v504, %v504
      %v631 = vmul.f32 %v507, %v507
      %v632 = vmul.f32 %v509, %v509
      %v633 = vmul.f32 %v512, %v512
      %v634 = vmul.f32 %v514, %v514
      %v635 = vmul.f32 %v517, %v517
      %v636 = vmul.f32 %v519, %v519
      %v637 = vmul.f32 %v522, %v522
      %v638 = vmul.f32 %v524, %v524
      %v639 = vmul.f32 %v527, %v527
      %v640 = vmul.f32 %v529, %v529
      %v641 = vmul.f32 %v532, %v532
      %v642 = vmul.f32 %v534, %v534
      %v643 = vmul.f32 %v537, %v537
      %v644 = vmul.f32 %v539, %v539
      %v645 = vmul.f32 %v542, %v542
      %v646 = vmul.f32 %v544, %v544
      %v647 = vadd.f32 %v615, %v616
      %v648 = vadd.f32 %v647, %v617
      %v649 = vadd.f32 %v648, %v618
      %v650 = vadd.f32 %v649, %v619
      %v651 = vadd.f32 %v650, %v620
      %v652 = vadd.f32 %v651, %v621
      %v653 = vadd.f32 %v652, %v622
      %v654 = vadd.f32 %v653, %v623
      %v655 = vadd.f32 %v654, %v624
      %v656 = vadd.f32 %v655, %v625
      %v657 = vadd.f32 %v656, %v626
      %v658 = vadd.f32 %v657, %v627
      %v659 = vadd.f32 %v658, %v628
      %v660 = vadd.f32 %v659, %v629
      %v661 = vadd.f32 %v660, %v630
      %v662 = vadd.f32 %v661, %v631
      %v663 = vadd.f32 %v662, %v632
      %v664 = vadd.f32 %v663, %v633
      %v665 = vadd.f32 %v664, %v634
      %v666 = vadd.f32 %v665, %v635
      %v667 = vadd.f32 %v666, %v636
      %v668 = vadd.f32 %v667, %v637
      %v669 = vadd.f32 %v668, %v638
      %v670 = vadd.f32 %v669, %v639
      %v671 = vadd.f32 %v670, %v640
      %v672 = vadd.f32 %v671, %v641
      %v673 = vadd.f32 %v672, %v642
      %v674 = vadd.f32 %v673, %v643
      %v675 = vadd.f32 %v674, %v644
      %v676 = vadd.f32 %v675, %v645
      %v677 = vadd.f32 %v676, %v646
      %v678 = vrot.slane %v677, 4
      %v679 = vadd.f32 %v677, %v678
      %v680 = vrot.slane %v679, 2
      %v681 = vadd.f32 %v679, %v680
      %v682 = vrot.slane %v681, 1
      %v683 = vadd.f32 %v681, %v682
      %vm684 = vcmask 1040384
      %v685 = vsel %vm684, %v614, %v683
      %vm686 = vcmask 1041408
      %v687 = vsel %vm686, %v685, 0.0
      %688 = vst [vmem:[%s238] sm:$0xff] %v687
      %s689 = smul.u32 32, %s17
      %p690 = scmp.lt.s32.totalorder %s689, 63
      %s691 = scalar_select %p690, %s689, 63
      %s692 = smul.addr %s691, 8
      %s693 = scalar_lea.vmem %s4, %s692
      %p694 = scmp.lt.s32.totalorder %s17, 1
      %s695 = scalar_select %p694, %s17, 1
      %s696 = smul.addr %s695, 8
      %s697 = scalar_lea.vmem %s5, %s696
      // Predicated region
      $region37: #{bottleneck_forward.6} parent=35 // pred_check
        %p698 = pneg %p124
      $region38: #{bottleneck_forward.6} parent=35 // pred_check_branch
        %700 = sbr.rel (%p698) target = $region40
      $region39: #{bottleneck_forward.6} parent=35 // pred_region
        %s701 = smul.u32 32, %s17
      $region40: #{bottleneck_forward.6} parent=35 // pred_fallthru
        _
      // Predicated region
      $region41: #{bottleneck_forward.6} parent=35 // pred_check
        %p702 = pneg %p150
      $region42: #{bottleneck_forward.6} parent=35 // pred_check_branch
        %704 = sbr.rel (%p702) target = $region44
      $region43: #{bottleneck_forward.6} parent=35 // pred_region
        _
      $region44: #{bottleneck_forward.6} parent=35 // pred_fallthru
        _
    $region36: #{bottleneck_forward.6} parent=5 // pred_fallthru
      _
    %p705 = scmp.le.s32.totalorder 2, %s12
    // Predicated region
    $region45: #{bottleneck_forward.6} parent=5 // pred_check
      %p706 = pneg %p705
    $region46: #{bottleneck_forward.6} parent=5 // pred_check_branch
      %708 = sbr.rel (%p706) target = $region48
    $region47: #{bottleneck_forward.6} parent=5 // pred_region
      %s709 = ssub.s32 %s12, 2
      // Predicated region
      $region49: #{bottleneck_forward.6} parent=47 // pred_check
        %p710 = pneg %p130
      $region50: #{bottleneck_forward.6} parent=47 // pred_check_branch
        %712 = sbr.rel (%p710) target = $region52
      $region51: #{bottleneck_forward.6} parent=47 // pred_region
        %s713 = smul.u32 32, %s18
        %p714 = scmp.lt.s32.totalorder %s713, 63
        %s715 = scalar_select %p714, %s713, 63
        %s716 = smul.addr %s715, 8
        %s717 = scalar_lea.vmem %s4, %s716
      $region52: #{bottleneck_forward.6} parent=47 // pred_fallthru
        _
      // Predicated region
      $region53: #{bottleneck_forward.6} parent=47 // pred_check
        %p718 = pneg %p156
      $region54: #{bottleneck_forward.6} parent=47 // pred_check_branch
        %720 = sbr.rel (%p718) target = $region56
      $region55: #{bottleneck_forward.6} parent=47 // pred_region
        %p721 = scmp.lt.s32.totalorder %s18, 1
        %s722 = scalar_select %p721, %s18, 1
        %s723 = smul.addr %s722, 8
        %s724 = scalar_lea.vmem %s5, %s723
      $region56: #{bottleneck_forward.6} parent=47 // pred_fallthru
        _
    $region48: #{bottleneck_forward.6} parent=5 // pred_fallthru
      _
  $region6: #{bottleneck_forward.6} parent=0 // loop_footer
    %s16 = sadd.s32 1, %s12
  $region7: #{bottleneck_forward.6} parent=0 // loop_footer_branch
    %11 = sbr.rel target = $region3
  $region8: #{bottleneck_forward.6} parent=0 // loop_exit
    _

// kernel: bottleneck_forward.7
$region0: #{bottleneck_forward.7}
  #allocation0 [shape = 'u32[]', space=smem, size = 0x4, offset = 0x4, fixed_abs, tag = 'smem constant byte address 0x4 - core index']
  #allocation1 [shape = 'u32[72,128]{1,0:T(1,128)}', space=vmem, size = 0x9000, scoped, tag = 'internal scratch']
  %s0 = inlined_call_operand.vmem [shape: f32[512,128], index: 0, kind: input, shape index: {}]
  %s1 = inlined_call_operand.hbm [shape: f32[512,128], index: 1, kind: input, shape index: {}]
  %s2 = inlined_call_operand.vmem [shape: f32[1,128], index: 2, kind: input, shape index: {}]
  %s3 = inlined_call_operand.vmem [shape: f32[1,128], index: 3, kind: input, shape index: {}]
  %s4 = inlined_call_operand.hbm [shape: f32[512,128], index: 4, kind: output, shape index: {}]
  %s5 = sld [smem:[#allocation0]]
  $region53: #{bottleneck_forward.7} parent=0
    _
  %s7 = ssub.s32 1, %s5
  %s8 = scalar_select 0, %s7, %s5
  $region1: #{bottleneck_forward.7} parent=0
    #allocation2 [shape = 'u8[262144]{0}', space=vmem, size = 0x40000, scoped, tag = 'input window, operand 1']
    #allocation3 [shape = 's32[2]{0}', space=sflag, size = 0x8, scoped, tag = 'scoped memory for bottleneck_forward.7']
    #allocation4 [shape = 's32[2]{0}', space=sflag, size = 0x8, scoped, tag = 'scoped memory for bottleneck_forward.7']
    #allocation5 [shape = 'u8[262144]{0}', space=vmem, size = 0x40000, scoped, tag = 'output window, operand 0']
    %9 = vsyncpa [#allocation3], 0
    %s10 = scalar_lea.sflag [#allocation3], 1
    %11 = vsyncpa %s10, 0
    %12 = vsyncpa [#allocation4], 0
    %s13 = scalar_lea.sflag [#allocation4], 1
    %14 = vsyncpa %s13, 0
    loop: start=0, step=1, limit=4
    $region2: #{bottleneck_forward.7} parent=1 // loop_pre_header
      _
    $region3: #{bottleneck_forward.7} parent=1 // loop_header
      %s16 = sphi 0, %s20
      %p17 = scmp.ge.s32.totalorder %s16, 4
      %s26 = sphi 0, %s28
      %s29 = sphi 0, %s26
      %s30 = sphi 0, %s29
      %s46 = sphi 0, %s30
      %s52 = sphi 0, %s54
      %s55 = sphi 0, %s52
      %s56 = sphi 0, %s55
      %s72 = sphi 0, %s56
      %s76 = sphi 0, %s76
      %s78 = sphi 0, %s76
      %s79 = sphi 0, %s78
      %s93 = sphi 0, %s79
      %s97 = sphi 0, %s97
      %s99 = sphi 0, %s97
      %s100 = sphi 0, %s99
      %s114 = sphi 0, %s100
      %s120 = sphi 0, %s122
      %s123 = sphi 0, %s120
      %s124 = sphi 0, %s123
      %s140 = sphi 0, %s124
    $region4: #{bottleneck_forward.7} parent=1 // loop_header_branch
      %19 = sbr.rel (%p17) target = $region8
    $region5: #{bottleneck_forward.7} parent=1 // loop_body
      %s21 = ssub.s32 %s16, 1
      %s22 = ssub.s32 %s16, 2
      %s23 = sadd.s32 %s16, 1
      %s24 = ssub.s32 %s16, %s23
      %p25 = scmp.eq.s32.totalorder %s24, 0
      %s27 = sadd.s32 %s26, 1
      %s28 = scalar_select %p25, %s26, %s27
      %p31 = pneg %p25
      %p32 = scmp.eq.s32.totalorder %s16, 1
      %p33 = por %p31, %p32
      %p34 = scmp.ne.s32.totalorder %s26, %s29
      %p35 = scmp.eq.s32.totalorder %s16, 0
      %p36 = por %p34, %p35
      %p37 = scmp.ne.s32.totalorder %s26, %s29
      %p38 = scmp.eq.s32.totalorder %s21, 1
      %p39 = por %p37, %p38
      %p40 = scmp.ne.s32.totalorder %s29, %s30
      %p41 = scmp.eq.s32.totalorder %s21, 0
      %p42 = por %p40, %p41
      %p43 = scmp.ne.s32.totalorder %s29, %s30
      %p44 = scmp.eq.s32.totalorder %s22, 1
      %p45 = por %p43, %p44
      %p47 = scmp.ne.s32.totalorder %s30, %s46
      %p48 = scmp.eq.s32.totalorder %s22, 0
      %p49 = por %p47, %p48
      %s50 = ssub.s32 %s16, %s23
      %p51 = scmp.eq.s32.totalorder %s50, 0
      %s53 = sadd.s32 %s52, 1
      %s54 = scalar_select %p51, %s52, %s53
      %p57 = pneg %p51
      %p58 = scmp.eq.s32.totalorder %s16, 1
      %p59 = por %p57, %p58
      %p60 = scmp.ne.s32.totalorder %s52, %s55
      %p61 = scmp.eq.s32.totalorder %s16, 0
      %p62 = por %p60, %p61
      %p63 = scmp.ne.s32.totalorder %s52, %s55
      %p64 = scmp.eq.s32.totalorder %s21, 1
      %p65 = por %p63, %p64
      %p66 = scmp.ne.s32.totalorder %s55, %s56
      %p67 = scmp.eq.s32.totalorder %s21, 0
      %p68 = por %p66, %p67
      %p69 = scmp.ne.s32.totalorder %s55, %s56
      %p70 = scmp.eq.s32.totalorder %s22, 1
      %p71 = por %p69, %p70
      %p73 = scmp.ne.s32.totalorder %s56, %s72
      %p74 = scmp.eq.s32.totalorder %s22, 0
      %p75 = por %p73, %p74
      %s77 = sadd.s32 %s76, 1
      %p80 = scmp.eq.s32.totalorder %s16, 1
      %p81 = scmp.ne.s32.totalorder %s76, %s78
      %p82 = scmp.eq.s32.totalorder %s16, 0
      %p83 = por %p81, %p82
      %p84 = scmp.ne.s32.totalorder %s76, %s78
      %p85 = scmp.eq.s32.totalorder %s21, 1
      %p86 = por %p84, %p85
      %p87 = scmp.ne.s32.totalorder %s78, %s79
      %p88 = scmp.eq.s32.totalorder %s21, 0
      %p89 = por %p87, %p88
      %p90 = scmp.ne.s32.totalorder %s78, %s79
      %p91 = scmp.eq.s32.totalorder %s22, 1
      %p92 = por %p90, %p91
      %p94 = scmp.ne.s32.totalorder %s79, %s93
      %p95 = scmp.eq.s32.totalorder %s22, 0
      %p96 = por %p94, %p95
      %s98 = sadd.s32 %s97, 1
      %p101 = scmp.eq.s32.totalorder %s16, 1
      %p102 = scmp.ne.s32.totalorder %s97, %s99
      %p103 = scmp.eq.s32.totalorder %s16, 0
      %p104 = por %p102, %p103
      %p105 = scmp.ne.s32.totalorder %s97, %s99
      %p106 = scmp.eq.s32.totalorder %s21, 1
      %p107 = por %p105, %p106
      %p108 = scmp.ne.s32.totalorder %s99, %s100
      %p109 = scmp.eq.s32.totalorder %s21, 0
      %p110 = por %p108, %p109
      %p111 = scmp.ne.s32.totalorder %s99, %s100
      %p112 = scmp.eq.s32.totalorder %s22, 1
      %p113 = por %p111, %p112
      %p115 = scmp.ne.s32.totalorder %s100, %s114
      %p116 = scmp.eq.s32.totalorder %s22, 0
      %p117 = por %p115, %p116
      %s118 = ssub.s32 %s16, %s23
      %p119 = scmp.eq.s32.totalorder %s118, 0
      %s121 = sadd.s32 %s120, 1
      %s122 = scalar_select %p119, %s120, %s121
      %p125 = pneg %p119
      %p126 = scmp.eq.s32.totalorder %s16, 1
      %p127 = por %p125, %p126
      %p128 = scmp.ne.s32.totalorder %s120, %s123
      %p129 = scmp.eq.s32.totalorder %s16, 0
      %p130 = por %p128, %p129
      %p131 = scmp.ne.s32.totalorder %s120, %s123
      %p132 = scmp.eq.s32.totalorder %s21, 1
      %p133 = por %p131, %p132
      %p134 = scmp.ne.s32.totalorder %s123, %s124
      %p135 = scmp.eq.s32.totalorder %s21, 0
      %p136 = por %p134, %p135
      %p137 = scmp.ne.s32.totalorder %s123, %s124
      %p138 = scmp.eq.s32.totalorder %s22, 1
      %p139 = por %p137, %p138
      %p141 = scmp.ne.s32.totalorder %s124, %s140
      %p142 = scmp.eq.s32.totalorder %s22, 0
      %p143 = por %p141, %p142
      %p144 = scmp.le.s32.totalorder 1, %s16
      %p145 = scmp.lt.s32.totalorder %s16, 3
      %p146 = pnand %p144, %p145
      %p147 = pneg %p146
      // Predicated region
      $region9: #{bottleneck_forward.7} parent=5 // pred_check
        _
      $region10: #{bottleneck_forward.7} parent=5 // pred_check_branch
        %149 = sbr.rel (%p146) target = $region12
      $region11: #{bottleneck_forward.7} parent=5 // pred_region
        %s150 = ssub.s32 %s16, 1
        // Predicated region
        $region13: #{bottleneck_forward.7} parent=11 // pred_check
          %p151 = pneg %p89
        $region14: #{bottleneck_forward.7} parent=11 // pred_check_branch
          %153 = sbr.rel (%p151) target = $region16
        $region15: #{bottleneck_forward.7} parent=11 // pred_region
          _
        $region16: #{bottleneck_forward.7} parent=11 // pred_fallthru
          _
        // Predicated region
        $region17: #{bottleneck_forward.7} parent=11 // pred_check
          %p154 = pneg %p110
        $region18: #{bottleneck_forward.7} parent=11 // pred_check_branch
          %156 = sbr.rel (%p154) target = $region20
        $region19: #{bottleneck_forward.7} parent=11 // pred_region
          _
        $region20: #{bottleneck_forward.7} parent=11 // pred_fallthru
          _
      $region12: #{bottleneck_forward.7} parent=5 // pred_fallthru
        _
      %p157 = scmp.lt.s32.totalorder %s16, 2
      // Predicated region
      $region21: #{bottleneck_forward.7} parent=5 // pred_check
        %p158 = pneg %p157
      $region22: #{bottleneck_forward.7} parent=5 // pred_check_branch
        %160 = sbr.rel (%p158) target = $region24
      $region23: #{bottleneck_forward.7} parent=5 // pred_region
        // Predicated region
        $region25: #{bottleneck_forward.7} parent=23 // pred_check
          %p161 = pneg %p36
        $region26: #{bottleneck_forward.7} parent=23 // pred_check_branch
          %163 = sbr.rel (%p161) target = $region28
        $region27: #{bottleneck_forward.7} parent=23 // pred_region
          %s164 = smul.u32 32, %s16
          %p165 = scmp.lt.s32.totalorder %s164, 63
          %s166 = scalar_select %p165, %s164, 63
          %s167 = smul.addr %s166, 8
          %s168 = scalar_lea.vmem %s0, %s167
          %s169 = smul.u32 32, %s16
        $region28: #{bottleneck_forward.7} parent=23 // pred_fallthru
          _
        // Predicated region
        $region29: #{bottleneck_forward.7} parent=23 // pred_check
          %p170 = pneg %p62
        $region30: #{bottleneck_forward.7} parent=23 // pred_check_branch
          %172 = sbr.rel (%p170) target = $region32
        $region31: #{bottleneck_forward.7} parent=23 // pred_region
          %s173 = sand.u32 %s52, 1
          %s174 = scalar_lea.sflag [#allocation3], %s173
          %s175 = sand.u32 %s52, 1
          %s176 = smul.addr %s175, 256
          %s177 = scalar_lea.vmem [#allocation2], %s176
          %s178 = smul.u32 32, %s16
          %180 = vsyncadd %s174, 0
          %s181 = smul.addr %s178, 8
          %s182 = scalar_lea.hbm %s1, %s181
          %s183 = sshll.u32 %s182, 4
          %s184 = int_to_ptr.hbm [resolvable:$true] %s183
          %s185 = sshll.u32 %s177, 4
          %s186 = int_to_ptr.vmem [resolvable:$true] %s185
          %191 = dma.hbm_to_vmem [thread:$0]  %s184, 4096, %s186, %s174, 128, 128, 8
        $region32: #{bottleneck_forward.7} parent=23 // pred_fallthru
          _
      $region24: #{bottleneck_forward.7} parent=5 // pred_fallthru
        _
      %p192 = scmp.le.s32.totalorder 1, %s16
      %p193 = scmp.lt.s32.totalorder %s16, 3
      %p194 = pnand %p192, %p193
      %p195 = pneg %p194
      // Predicated region
      $region33: #{bottleneck_forward.7} parent=5 // pred_check
        _
      $region34: #{bottleneck_forward.7} parent=5 // pred_check_branch
        %197 = sbr.rel (%p194) target = $region36
      $region35: #{bottleneck_forward.7} parent=5 // pred_region
        %s198 = ssub.s32 %s16, 1
        %s199 = sand.u32 %s55, 1
        %s200 = scalar_lea.sflag [#allocation3], %s199
        %s201 = sand.u32 %s55, 1
        %s202 = smul.addr %s201, 256
        %s203 = scalar_lea.vmem [#allocation2], %s202
        // Predicated region
        $region37: #{bottleneck_forward.7} parent=35 // pred_check
          %p204 = pneg %p68
        $region38: #{bottleneck_forward.7} parent=35 // pred_check_branch
          %206 = sbr.rel (%p204) target = $region40
        $region39: #{bottleneck_forward.7} parent=35 // pred_region
          %208 = dma.done %s200, 4096
        $region40: #{bottleneck_forward.7} parent=35 // pred_fallthru
          _
        %s209 = smul.u32 32, %s21
        %p210 = scmp.lt.s32.totalorder %s209, 63
        %s211 = scalar_select %p210, %s209, 63
        %s212 = smul.addr %s211, 8
        %s213 = scalar_lea.vmem %s0, %s212
        %p214 = pneg %p42
        %p215 = pneg %p39
        %s216 = sand.u32 %s55, 1
        %s217 = scalar_lea.sflag [#allocation3], %s216
        %s218 = sand.u32 %s55, 1
        %s219 = smul.addr %s218, 256
        %s220 = scalar_lea.vmem [#allocation2], %s219
        %p221 = pneg %p68
        %p222 = pneg %p65
        %p223 = pneg %p89
        %p224 = pneg %p86
        %p225 = pneg %p110
        %p226 = pneg %p107
        %p227 = pneg %p136
        %p228 = pneg %p133
        %s229 = sand.u32 %s123, 1
        %s230 = scalar_lea.sflag [#allocation4], %s229
        %s231 = sand.u32 %s123, 1
        %s232 = smul.addr %s231, 256
        %s233 = scalar_lea.vmem [#allocation5], %s232
        %s234 = smul.u32 32, %s21
        %p235 = scmp.lt.s32.totalorder %s234, 63
        %s236 = scalar_select %p235, %s234, 63
        %s237 = smul.addr %s236, 8
        %s238 = scalar_lea.vmem %s0, %s237
        %s239 = smul.u32 32, %s21
        %s240 = smul.u32 32, %s21
        %s241 = smul.u32 32, %s21
        %v242 = vld [vmem:[%s238] sm:$0xff]
        %v243 = vld [vmem:[%s238 + $0x8] sm:$0xff]
        %v244 = vld [vmem:[%s238 + $0x10] sm:$0xff]
        %v245 = vld [vmem:[%s238 + $0x18] sm:$0xff]
        %v246 = vld [vmem:[%s238 + $0x20] sm:$0xff]
        %v247 = vld [vmem:[%s238 + $0x28] sm:$0xff]
        %v248 = vld [vmem:[%s238 + $0x30] sm:$0xff]
        %v249 = vld [vmem:[%s238 + $0x38] sm:$0xff]
        %v250 = vld [vmem:[%s238 + $0x40] sm:$0xff]
        %v251 = vld [vmem:[%s238 + $0x48] sm:$0xff]
        %v252 = vld [vmem:[%s238 + $0x50] sm:$0xff]
        %v253 = vld [vmem:[%s238 + $0x58] sm:$0xff]
        %v254 = vld [vmem:[%s238 + $0x60] sm:$0xff]
        %v255 = vld [vmem:[%s238 + $0x68] sm:$0xff]
        %v256 = vld [vmem:[%s238 + $0x70] sm:$0xff]
        %v257 = vld [vmem:[%s238 + $0x78] sm:$0xff]
        %v258 = vld [vmem:[%s238 + $0x80] sm:$0xff]
        %v259 = vld [vmem:[%s238 + $0x88] sm:$0xff]
        %v260 = vld [vmem:[%s238 + $0x90] sm:$0xff]
        %v261 = vld [vmem:[%s238 + $0x98] sm:$0xff]
        %v262 = vld [vmem:[%s238 + $0xa0] sm:$0xff]
        %v263 = vld [vmem:[%s238 + $0xa8] sm:$0xff]
        %v264 = vld [vmem:[%s238 + $0xb0] sm:$0xff]
        %v265 = vld [vmem:[%s238 + $0xb8] sm:$0xff]
        %v266 = vld [vmem:[%s238 + $0xc0] sm:$0xff]
        %v267 = vld [vmem:[%s238 + $0xc8] sm:$0xff]
        %v268 = vld [vmem:[%s238 + $0xd0] sm:$0xff]
        %v269 = vld [vmem:[%s238 + $0xd8] sm:$0xff]
        %v270 = vld [vmem:[%s238 + $0xe0] sm:$0xff]
        %v271 = vld [vmem:[%s238 + $0xe8] sm:$0xff]
        %v272 = vld [vmem:[%s238 + $0xf0] sm:$0xff]
        %v273 = vld [vmem:[%s238 + $0xf8] sm:$0xff]
        %v274 = vld [vmem:[%s2] sm:$0x1]
        %v276 = vperm.slane %v274, 0
        %v278 = vmul.f32 %v242, %v276
        %v279 = vmul.f32 %v243, %v276
        %v280 = vmul.f32 %v244, %v276
        %v281 = vmul.f32 %v245, %v276
        %v282 = vmul.f32 %v246, %v276
        %v283 = vmul.f32 %v247, %v276
        %v284 = vmul.f32 %v248, %v276
        %v285 = vmul.f32 %v249, %v276
        %v286 = vmul.f32 %v250, %v276
        %v287 = vmul.f32 %v251, %v276
        %v288 = vmul.f32 %v252, %v276
        %v289 = vmul.f32 %v253, %v276
        %v290 = vmul.f32 %v254, %v276
        %v291 = vmul.f32 %v255, %v276
        %v292 = vmul.f32 %v256, %v276
        %v293 = vmul.f32 %v257, %v276
        %v294 = vmul.f32 %v258, %v276
        %v295 = vmul.f32 %v259, %v276
        %v296 = vmul.f32 %v260, %v276
        %v297 = vmul.f32 %v261, %v276
        %v298 = vmul.f32 %v262, %v276
        %v299 = vmul.f32 %v263, %v276
        %v300 = vmul.f32 %v264, %v276
        %v301 = vmul.f32 %v265, %v276
        %v302 = vmul.f32 %v266, %v276
        %v303 = vmul.f32 %v267, %v276
        %v304 = vmul.f32 %v268, %v276
        %v305 = vmul.f32 %v269, %v276
        %v306 = vmul.f32 %v270, %v276
        %v307 = vmul.f32 %v271, %v276
        %v308 = vmul.f32 %v272, %v276
        %v309 = vmul.f32 %v273, %v276
        %v310 = vld [vmem:[%s3] sm:$0x1]
        %v312 = vperm.slane %v310, 0
        %v314 = vadd.f32 %v278, %v312
        %v315 = vadd.f32 %v279, %v312
        %v316 = vadd.f32 %v280, %v312
        %v317 = vadd.f32 %v281, %v312
        %v318 = vadd.f32 %v282, %v312
        %v319 = vadd.f32 %v283, %v312
        %v320 = vadd.f32 %v284, %v312
        %v321 = vadd.f32 %v285, %v312
        %v322 = vadd.f32 %v286, %v312
        %v323 = vadd.f32 %v287, %v312
        %v324 = vadd.f32 %v288, %v312
        %v325 = vadd.f32 %v289, %v312
        %v326 = vadd.f32 %v290, %v312
        %v327 = vadd.f32 %v291, %v312
        %v328 = vadd.f32 %v292, %v312
        %v329 = vadd.f32 %v293, %v312
        %v330 = vadd.f32 %v294, %v312
        %v331 = vadd.f32 %v295, %v312
        %v332 = vadd.f32 %v296, %v312
        %v333 = vadd.f32 %v297, %v312
        %v334 = vadd.f32 %v298, %v312
        %v335 = vadd.f32 %v299, %v312
        %v336 = vadd.f32 %v300, %v312
        %v337 = vadd.f32 %v301, %v312
        %v338 = vadd.f32 %v302, %v312
        %v339 = vadd.f32 %v303, %v312
        %v340 = vadd.f32 %v304, %v312
        %v341 = vadd.f32 %v305, %v312
        %v342 = vadd.f32 %v306, %v312
        %v343 = vadd.f32 %v307, %v312
        %v344 = vadd.f32 %v308, %v312
        %v345 = vadd.f32 %v309, %v312
        %v346 = vld [vmem:[%s203] sm:$0xff]
        %v347 = vld [vmem:[%s203 + $0x8] sm:$0xff]
        %v348 = vld [vmem:[%s203 + $0x10] sm:$0xff]
        %v349 = vld [vmem:[%s203 + $0x18] sm:$0xff]
        %v350 = vld [vmem:[%s203 + $0x20] sm:$0xff]
        %v351 = vld [vmem:[%s203 + $0x28] sm:$0xff]
        %v352 = vld [vmem:[%s203 + $0x30] sm:$0xff]
        %v353 = vld [vmem:[%s203 + $0x38] sm:$0xff]
        %v354 = vld [vmem:[%s203 + $0x40] sm:$0xff]
        %v355 = vld [vmem:[%s203 + $0x48] sm:$0xff]
        %v356 = vld [vmem:[%s203 + $0x50] sm:$0xff]
        %v357 = vld [vmem:[%s203 + $0x58] sm:$0xff]
        %v358 = vld [vmem:[%s203 + $0x60] sm:$0xff]
        %v359 = vld [vmem:[%s203 + $0x68] sm:$0xff]
        %v360 = vld [vmem:[%s203 + $0x70] sm:$0xff]
        %v361 = vld [vmem:[%s203 + $0x78] sm:$0xff]
        %v362 = vld [vmem:[%s203 + $0x80] sm:$0xff]
        %v363 = vld [vmem:[%s203 + $0x88] sm:$0xff]
        %v364 = vld [vmem:[%s203 + $0x90] sm:$0xff]
        %v365 = vld [vmem:[%s203 + $0x98] sm:$0xff]
        %v366 = vld [vmem:[%s203 + $0xa0] sm:$0xff]
        %v367 = vld [vmem:[%s203 + $0xa8] sm:$0xff]
        %v368 = vld [vmem:[%s203 + $0xb0] sm:$0xff]
        %v369 = vld [vmem:[%s203 + $0xb8] sm:$0xff]
        %v370 = vld [vmem:[%s203 + $0xc0] sm:$0xff]
        %v371 = vld [vmem:[%s203 + $0xc8] sm:$0xff]
        %v372 = vld [vmem:[%s203 + $0xd0] sm:$0xff]
        %v373 = vld [vmem:[%s203 + $0xd8] sm:$0xff]
        %v374 = vld [vmem:[%s203 + $0xe0] sm:$0xff]
        %v375 = vld [vmem:[%s203 + $0xe8] sm:$0xff]
        %v376 = vld [vmem:[%s203 + $0xf0] sm:$0xff]
        %v377 = vld [vmem:[%s203 + $0xf8] sm:$0xff]
        %v378 = vadd.f32 %v314, %v346
        %v379 = vadd.f32 %v315, %v347
        %v380 = vadd.f32 %v316, %v348
        %v381 = vadd.f32 %v317, %v349
        %v382 = vadd.f32 %v318, %v350
        %v383 = vadd.f32 %v319, %v351
        %v384 = vadd.f32 %v320, %v352
        %v385 = vadd.f32 %v321, %v353
        %v386 = vadd.f32 %v322, %v354
        %v387 = vadd.f32 %v323, %v355
        %v388 = vadd.f32 %v324, %v356
        %v389 = vadd.f32 %v325, %v357
        %v390 = vadd.f32 %v326, %v358
        %v391 = vadd.f32 %v327, %v359
        %v392 = vadd.f32 %v328, %v360
        %v393 = vadd.f32 %v329, %v361
        %v394 = vadd.f32 %v330, %v362
        %v395 = vadd.f32 %v331, %v363
        %v396 = vadd.f32 %v332, %v364
        %v397 = vadd.f32 %v333, %v365
        %v398 = vadd.f32 %v334, %v366
        %v399 = vadd.f32 %v335, %v367
        %v400 = vadd.f32 %v336, %v368
        %v401 = vadd.f32 %v337, %v369
        %v402 = vadd.f32 %v338, %v370
        %v403 = vadd.f32 %v339, %v371
        %v404 = vadd.f32 %v340, %v372
        %v405 = vadd.f32 %v341, %v373
        %v406 = vadd.f32 %v342, %v374
        %v407 = vadd.f32 %v343, %v375
        %v408 = vadd.f32 %v344, %v376
        %v409 = vadd.f32 %v345, %v377
        %v410 = vmax.f32 %v378, 0.0
        %v411 = vmax.f32 %v379, 0.0
        %v412 = vmax.f32 %v380, 0.0
        %v413 = vmax.f32 %v381, 0.0
        %v414 = vmax.f32 %v382, 0.0
        %v415 = vmax.f32 %v383, 0.0
        %v416 = vmax.f32 %v384, 0.0
        %v417 = vmax.f32 %v385, 0.0
        %v418 = vmax.f32 %v386, 0.0
        %v419 = vmax.f32 %v387, 0.0
        %v420 = vmax.f32 %v388, 0.0
        %v421 = vmax.f32 %v389, 0.0
        %v422 = vmax.f32 %v390, 0.0
        %v423 = vmax.f32 %v391, 0.0
        %v424 = vmax.f32 %v392, 0.0
        %v425 = vmax.f32 %v393, 0.0
        %v426 = vmax.f32 %v394, 0.0
        %v427 = vmax.f32 %v395, 0.0
        %v428 = vmax.f32 %v396, 0.0
        %v429 = vmax.f32 %v397, 0.0
        %v430 = vmax.f32 %v398, 0.0
        %v431 = vmax.f32 %v399, 0.0
        %v432 = vmax.f32 %v400, 0.0
        %v433 = vmax.f32 %v401, 0.0
        %v434 = vmax.f32 %v402, 0.0
        %v435 = vmax.f32 %v403, 0.0
        %v436 = vmax.f32 %v404, 0.0
        %v437 = vmax.f32 %v405, 0.0
        %v438 = vmax.f32 %v406, 0.0
        %v439 = vmax.f32 %v407, 0.0
        %v440 = vmax.f32 %v408, 0.0
        %v441 = vmax.f32 %v409, 0.0
        %442 = vst [vmem:[%s233] sm:$0xff] %v410
        %443 = vst [vmem:[%s233 + $0x8] sm:$0xff] %v411
        %444 = vst [vmem:[%s233 + $0x10] sm:$0xff] %v412
        %445 = vst [vmem:[%s233 + $0x18] sm:$0xff] %v413
        %446 = vst [vmem:[%s233 + $0x20] sm:$0xff] %v414
        %447 = vst [vmem:[%s233 + $0x28] sm:$0xff] %v415
        %448 = vst [vmem:[%s233 + $0x30] sm:$0xff] %v416
        %449 = vst [vmem:[%s233 + $0x38] sm:$0xff] %v417
        %450 = vst [vmem:[%s233 + $0x40] sm:$0xff] %v418
        %451 = vst [vmem:[%s233 + $0x48] sm:$0xff] %v419
        %452 = vst [vmem:[%s233 + $0x50] sm:$0xff] %v420
        %453 = vst [vmem:[%s233 + $0x58] sm:$0xff] %v421
        %454 = vst [vmem:[%s233 + $0x60] sm:$0xff] %v422
        %455 = vst [vmem:[%s233 + $0x68] sm:$0xff] %v423
        %456 = vst [vmem:[%s233 + $0x70] sm:$0xff] %v424
        %457 = vst [vmem:[%s233 + $0x78] sm:$0xff] %v425
        %458 = vst [vmem:[%s233 + $0x80] sm:$0xff] %v426
        %459 = vst [vmem:[%s233 + $0x88] sm:$0xff] %v427
        %460 = vst [vmem:[%s233 + $0x90] sm:$0xff] %v428
        %461 = vst [vmem:[%s233 + $0x98] sm:$0xff] %v429
        %462 = vst [vmem:[%s233 + $0xa0] sm:$0xff] %v430
        %463 = vst [vmem:[%s233 + $0xa8] sm:$0xff] %v431
        %464 = vst [vmem:[%s233 + $0xb0] sm:$0xff] %v432
        %465 = vst [vmem:[%s233 + $0xb8] sm:$0xff] %v433
        %466 = vst [vmem:[%s233 + $0xc0] sm:$0xff] %v434
        %467 = vst [vmem:[%s233 + $0xc8] sm:$0xff] %v435
        %468 = vst [vmem:[%s233 + $0xd0] sm:$0xff] %v436
        %469 = vst [vmem:[%s233 + $0xd8] sm:$0xff] %v437
        %470 = vst [vmem:[%s233 + $0xe0] sm:$0xff] %v438
        %471 = vst [vmem:[%s233 + $0xe8] sm:$0xff] %v439
        %472 = vst [vmem:[%s233 + $0xf0] sm:$0xff] %v440
        %473 = vst [vmem:[%s233 + $0xf8] sm:$0xff] %v441
        %s474 = sand.u32 %s123, 1
        %s475 = scalar_lea.sflag [#allocation4], %s474
        %s476 = sand.u32 %s123, 1
        %s477 = smul.addr %s476, 256
        %s478 = scalar_lea.vmem [#allocation5], %s477
        // Predicated region
        $region41: #{bottleneck_forward.7} parent=35 // pred_check
          %p479 = pneg %p133
        $region42: #{bottleneck_forward.7} parent=35 // pred_check_branch
          %481 = sbr.rel (%p479) target = $region44
        $region43: #{bottleneck_forward.7} parent=35 // pred_region
          %s482 = smul.u32 32, %s21
          %484 = vsyncadd %s475, 0
          %s485 = smul.addr %s482, 8
          %s486 = scalar_lea.hbm %s4, %s485
          %s487 = sshll.u32 %s478, 4
          %s488 = int_to_ptr.vmem [resolvable:$true] %s487
          %s489 = sshll.u32 %s486, 4
          %s490 = int_to_ptr.hbm [resolvable:$true] %s489
          %495 = dma.vmem_to_hbm [thread:$0]  %s488, 4096, %s490, %s475, 128, 128, 8
        $region44: #{bottleneck_forward.7} parent=35 // pred_fallthru
          _
      $region36: #{bottleneck_forward.7} parent=5 // pred_fallthru
        _
      %p496 = scmp.le.s32.totalorder 2, %s16
      // Predicated region
      $region45: #{bottleneck_forward.7} parent=5 // pred_check
        %p497 = pneg %p496
      $region46: #{bottleneck_forward.7} parent=5 // pred_check_branch
        %499 = sbr.rel (%p497) target = $region48
      $region47: #{bottleneck_forward.7} parent=5 // pred_region
        %s500 = ssub.s32 %s16, 2
        // Predicated region
        $region49: #{bottleneck_forward.7} parent=47 // pred_check
          %p501 = pneg %p139
        $region50: #{bottleneck_forward.7} parent=47 // pred_check_branch
          %503 = sbr.rel (%p501) target = $region52
        $region51: #{bottleneck_forward.7} parent=47 // pred_region
          %s504 = sand.u32 %s124, 1
          %s505 = scalar_lea.sflag [#allocation4], %s504
          %s506 = sand.u32 %s124, 1
          %s507 = smul.addr %s506, 256
          %s508 = scalar_lea.vmem [#allocation5], %s507
          %510 = dma.done %s505, 4096
        $region52: #{bottleneck_forward.7} parent=47 // pred_fallthru
          _
      $region48: #{bottleneck_forward.7} parent=5 // pred_fallthru
        _
    $region6: #{bottleneck_forward.7} parent=1 // loop_footer
      %s20 = sadd.s32 1, %s16
    $region7: #{bottleneck_forward.7} parent=1 // loop_footer_branch
      %15 = sbr.rel target = $region3
    $region8: #{bottleneck_forward.7} parent=1 // loop_exit
      _
    %511 = vsyncpa [#allocation3], 1
    %s512 = scalar_lea.sflag [#allocation3], 1
    %513 = vsyncpa %s512, 1
    %514 = vsyncpa [#allocation4], 1
    %s515 = scalar_lea.sflag [#allocation4], 1
    %516 = vsyncpa %s515, 1

// kernel: bottleneck_forward.5
$region0: #{bottleneck_forward.5}
  #allocation0 [shape = 'u32[]', space=smem, size = 0x4, offset = 0x4, fixed_abs, tag = 'smem constant byte address 0x4 - core index']
  #allocation1 [shape = 'u32[72,128]{1,0:T(1,128)}', space=vmem, size = 0x9000, scoped, tag = 'internal scratch']
  %s0 = inlined_call_operand.vmem [shape: f32[2,16,16,32], index: 0, kind: input, shape index: {}]
  %s1 = inlined_call_operand.vmem [shape: f32[1,32], index: 1, kind: input, shape index: {}]
  %s2 = inlined_call_operand.vmem [shape: f32[1,32], index: 2, kind: input, shape index: {}]
  %s3 = inlined_call_operand.vmem [shape: bf16[288,32], index: 3, kind: input, shape index: {}]
  %s4 = inlined_call_operand.vmem [shape: f32[2,16,16,32], index: 4, kind: output, shape index: {0}]
  %s5 = inlined_call_operand.vmem [shape: f32[16,32], index: 5, kind: output, shape index: {1}]
  %6 = xla_tuple %s4, %s5
  %s7 = sld [smem:[#allocation0]]
  $region57: #{bottleneck_forward.5} parent=0
    _
  %s9 = ssub.s32 1, %s7
  %s10 = scalar_select 0, %s9, %s7
  loop: start=0, step=1, limit=4
  $region2: #{bottleneck_forward.5} parent=0 // loop_pre_header
    _
  $region3: #{bottleneck_forward.5} parent=0 // loop_header
    %s12 = sphi 0, %s16
    %p13 = scmp.ge.s32.totalorder %s12, 4
    %s22 = sphi 0, %s24
    %s25 = sphi 0, %s22
    %s26 = sphi 0, %s25
    %s42 = sphi 0, %s26
    %s46 = sphi 0, %s46
    %s48 = sphi 0, %s46
    %s49 = sphi 0, %s48
    %s63 = sphi 0, %s49
    %s67 = sphi 0, %s67
    %s69 = sphi 0, %s67
    %s70 = sphi 0, %s69
    %s84 = sphi 0, %s70
    %s88 = sphi 0, %s88
    %s90 = sphi 0, %s88
    %s91 = sphi 0, %s90
    %s105 = sphi 0, %s91
    %s111 = sphi 0, %s113
    %s114 = sphi 0, %s111
    %s115 = sphi 0, %s114
    %s131 = sphi 0, %s115
    %s137 = sphi 0, %s139
    %s140 = sphi 0, %s137
    %s141 = sphi 0, %s140
    %s157 = sphi 0, %s141
  $region4: #{bottleneck_forward.5} parent=0 // loop_header_branch
    %15 = sbr.rel (%p13) target = $region8
  $region5: #{bottleneck_forward.5} parent=0 // loop_body
    %s17 = ssub.s32 %s12, 1
    %s18 = ssub.s32 %s12, 2
    %s19 = sadd.s32 %s12, 1
    %s20 = ssub.s32 %s12, %s19
    %p21 = scmp.eq.s32.totalorder %s20, 0
    %s23 = sadd.s32 %s22, 1
    %s24 = scalar_select %p21, %s22, %s23
    %p27 = pneg %p21
    %p28 = scmp.eq.s32.totalorder %s12, 1
    %p29 = por %p27, %p28
    %p30 = scmp.ne.s32.totalorder %s22, %s25
    %p31 = scmp.eq.s32.totalorder %s12, 0
    %p32 = por %p30, %p31
    %p33 = scmp.ne.s32.totalorder %s22, %s25
    %p34 = scmp.eq.s32.totalorder %s17, 1
    %p35 = por %p33, %p34
    %p36 = scmp.ne.s32.totalorder %s25, %s26
    %p37 = scmp.eq.s32.totalorder %s17, 0
    %p38 = por %p36, %p37
    %p39 = scmp.ne.s32.totalorder %s25, %s26
    %p40 = scmp.eq.s32.totalorder %s18, 1
    %p41 = por %p39, %p40
    %p43 = scmp.ne.s32.totalorder %s26, %s42
    %p44 = scmp.eq.s32.totalorder %s18, 0
    %p45 = por %p43, %p44
    %s47 = sadd.s32 %s46, 1
    %p50 = scmp.eq.s32.totalorder %s12, 1
    %p51 = scmp.ne.s32.totalorder %s46, %s48
    %p52 = scmp.eq.s32.totalorder %s12, 0
    %p53 = por %p51, %p52
    %p54 = scmp.ne.s32.totalorder %s46, %s48
    %p55 = scmp.eq.s32.totalorder %s17, 1
    %p56 = por %p54, %p55
    %p57 = scmp.ne.s32.totalorder %s48, %s49
    %p58 = scmp.eq.s32.totalorder %s17, 0
    %p59 = por %p57, %p58
    %p60 = scmp.ne.s32.totalorder %s48, %s49
    %p61 = scmp.eq.s32.totalorder %s18, 1
    %p62 = por %p60, %p61
    %p64 = scmp.ne.s32.totalorder %s49, %s63
    %p65 = scmp.eq.s32.totalorder %s18, 0
    %p66 = por %p64, %p65
    %s68 = sadd.s32 %s67, 1
    %p71 = scmp.eq.s32.totalorder %s12, 1
    %p72 = scmp.ne.s32.totalorder %s67, %s69
    %p73 = scmp.eq.s32.totalorder %s12, 0
    %p74 = por %p72, %p73
    %p75 = scmp.ne.s32.totalorder %s67, %s69
    %p76 = scmp.eq.s32.totalorder %s17, 1
    %p77 = por %p75, %p76
    %p78 = scmp.ne.s32.totalorder %s69, %s70
    %p79 = scmp.eq.s32.totalorder %s17, 0
    %p80 = por %p78, %p79
    %p81 = scmp.ne.s32.totalorder %s69, %s70
    %p82 = scmp.eq.s32.totalorder %s18, 1
    %p83 = por %p81, %p82
    %p85 = scmp.ne.s32.totalorder %s70, %s84
    %p86 = scmp.eq.s32.totalorder %s18, 0
    %p87 = por %p85, %p86
    %s89 = sadd.s32 %s88, 1
    %p92 = scmp.eq.s32.totalorder %s12, 1
    %p93 = scmp.ne.s32.totalorder %s88, %s90
    %p94 = scmp.eq.s32.totalorder %s12, 0
    %p95 = por %p93, %p94
    %p96 = scmp.ne.s32.totalorder %s88, %s90
    %p97 = scmp.eq.s32.totalorder %s17, 1
    %p98 = por %p96, %p97
    %p99 = scmp.ne.s32.totalorder %s90, %s91
    %p100 = scmp.eq.s32.totalorder %s17, 0
    %p101 = por %p99, %p100
    %p102 = scmp.ne.s32.totalorder %s90, %s91
    %p103 = scmp.eq.s32.totalorder %s18, 1
    %p104 = por %p102, %p103
    %p106 = scmp.ne.s32.totalorder %s91, %s105
    %p107 = scmp.eq.s32.totalorder %s18, 0
    %p108 = por %p106, %p107
    %s109 = ssub.s32 %s12, %s19
    %p110 = scmp.eq.s32.totalorder %s109, 0
    %s112 = sadd.s32 %s111, 1
    %s113 = scalar_select %p110, %s111, %s112
    %p116 = pneg %p110
    %p117 = scmp.eq.s32.totalorder %s12, 1
    %p118 = por %p116, %p117
    %p119 = scmp.ne.s32.totalorder %s111, %s114
    %p120 = scmp.eq.s32.totalorder %s12, 0
    %p121 = por %p119, %p120
    %p122 = scmp.ne.s32.totalorder %s111, %s114
    %p123 = scmp.eq.s32.totalorder %s17, 1
    %p124 = por %p122, %p123
    %p125 = scmp.ne.s32.totalorder %s114, %s115
    %p126 = scmp.eq.s32.totalorder %s17, 0
    %p127 = por %p125, %p126
    %p128 = scmp.ne.s32.totalorder %s114, %s115
    %p129 = scmp.eq.s32.totalorder %s18, 1
    %p130 = por %p128, %p129
    %p132 = scmp.ne.s32.totalorder %s115, %s131
    %p133 = scmp.eq.s32.totalorder %s18, 0
    %p134 = por %p132, %p133
    %s135 = ssub.s32 %s12, %s19
    %p136 = scmp.eq.s32.totalorder %s135, 0
    %s138 = sadd.s32 %s137, 1
    %s139 = scalar_select %p136, %s137, %s138
    %p142 = pneg %p136
    %p143 = scmp.eq.s32.totalorder %s12, 1
    %p144 = por %p142, %p143
    %p145 = scmp.ne.s32.totalorder %s137, %s140
    %p146 = scmp.eq.s32.totalorder %s12, 0
    %p147 = por %p145, %p146
    %p148 = scmp.ne.s32.totalorder %s137, %s140
    %p149 = scmp.eq.s32.totalorder %s17, 1
    %p150 = por %p148, %p149
    %p151 = scmp.ne.s32.totalorder %s140, %s141
    %p152 = scmp.eq.s32.totalorder %s17, 0
    %p153 = por %p151, %p152
    %p154 = scmp.ne.s32.totalorder %s140, %s141
    %p155 = scmp.eq.s32.totalorder %s18, 1
    %p156 = por %p154, %p155
    %p158 = scmp.ne.s32.totalorder %s141, %s157
    %p159 = scmp.eq.s32.totalorder %s18, 0
    %p160 = por %p158, %p159
    %p161 = scmp.le.s32.totalorder 1, %s12
    %p162 = scmp.lt.s32.totalorder %s12, 3
    %p163 = pnand %p161, %p162
    %p164 = pneg %p163
    // Predicated region
    $region9: #{bottleneck_forward.5} parent=5 // pred_check
      _
    $region10: #{bottleneck_forward.5} parent=5 // pred_check_branch
      %166 = sbr.rel (%p163) target = $region12
    $region11: #{bottleneck_forward.5} parent=5 // pred_region
      %s167 = ssub.s32 %s12, 1
      // Predicated region
      $region13: #{bottleneck_forward.5} parent=11 // pred_check
        %p168 = pneg %p59
      $region14: #{bottleneck_forward.5} parent=11 // pred_check_branch
        %170 = sbr.rel (%p168) target = $region16
      $region15: #{bottleneck_forward.5} parent=11 // pred_region
        _
      $region16: #{bottleneck_forward.5} parent=11 // pred_fallthru
        _
      // Predicated region
      $region17: #{bottleneck_forward.5} parent=11 // pred_check
        %p171 = pneg %p80
      $region18: #{bottleneck_forward.5} parent=11 // pred_check_branch
        %173 = sbr.rel (%p171) target = $region20
      $region19: #{bottleneck_forward.5} parent=11 // pred_region
        _
      $region20: #{bottleneck_forward.5} parent=11 // pred_fallthru
        _
      // Predicated region
      $region21: #{bottleneck_forward.5} parent=11 // pred_check
        %p174 = pneg %p101
      $region22: #{bottleneck_forward.5} parent=11 // pred_check_branch
        %176 = sbr.rel (%p174) target = $region24
      $region23: #{bottleneck_forward.5} parent=11 // pred_region
        _
      $region24: #{bottleneck_forward.5} parent=11 // pred_fallthru
        _
    $region12: #{bottleneck_forward.5} parent=5 // pred_fallthru
      _
    %p177 = scmp.lt.s32.totalorder %s12, 2
    // Predicated region
    $region25: #{bottleneck_forward.5} parent=5 // pred_check
      %p178 = pneg %p177
    $region26: #{bottleneck_forward.5} parent=5 // pred_check_branch
      %180 = sbr.rel (%p178) target = $region28
    $region27: #{bottleneck_forward.5} parent=5 // pred_region
      // Predicated region
      $region29: #{bottleneck_forward.5} parent=27 // pred_check
        %p181 = pneg %p32
      $region30: #{bottleneck_forward.5} parent=27 // pred_check_branch
        %183 = sbr.rel (%p181) target = $region32
      $region31: #{bottleneck_forward.5} parent=27 // pred_region
        %p184 = scmp.lt.s32.totalorder %s12, 1
        %s185 = scalar_select %p184, %s12, 1
        %s186 = smul.addr %s185, 32
        %s187 = smul.addr %s186, 8
        %s188 = scalar_lea.vmem %s0, %s187
      $region32: #{bottleneck_forward.5} parent=27 // pred_fallthru
        _
    $region28: #{bottleneck_forward.5} parent=5 // pred_fallthru
      _
    %p189 = scmp.le.s32.totalorder 1, %s12
    %p190 = scmp.lt.s32.totalorder %s12, 3
    %p191 = pnand %p189, %p190
    %p192 = pneg %p191
    // Predicated region
    $region33: #{bottleneck_forward.5} parent=5 // pred_check
      _
    $region34: #{bottleneck_forward.5} parent=5 // pred_check_branch
      %194 = sbr.rel (%p191) target = $region36
    $region35: #{bottleneck_forward.5} parent=5 // pred_region
      %s195 = ssub.s32 %s12, 1
      %p196 = scmp.lt.s32.totalorder %s17, 1
      %s197 = scalar_select %p196, %s17, 1
      %s198 = smul.addr %s197, 32
      %s199 = smul.addr %s198, 8
      %s200 = scalar_lea.vmem %s0, %s199
      %p201 = pneg %p38
      %p202 = pneg %p35
      %p203 = pneg %p59
      %p204 = pneg %p56
      %p205 = pneg %p80
      %p206 = pneg %p77
      %p207 = pneg %p101
      %p208 = pneg %p98
      %p209 = pneg %p127
      %p210 = pneg %p124
      %p211 = scmp.lt.s32.totalorder %s17, 1
      %s212 = scalar_select %p211, %s17, 1
      %s213 = smul.addr %s212, 32
      %s214 = smul.addr %s213, 8
      %s215 = scalar_lea.vmem %s4, %s214
      %p216 = pneg %p153
      %p217 = pneg %p150
      %p218 = scmp.lt.s32.totalorder %s17, 1
      %s219 = scalar_select %p218, %s17, 1
      %s220 = smul.addr %s219, 8
      %s221 = scalar_lea.vmem %s5, %s220
      %p222 = scmp.lt.s32.totalorder %s17, 1
      %s223 = scalar_select %p222, %s17, 1
      %s224 = smul.addr %s223, 32
      %s225 = smul.addr %s224, 8
      %s226 = scalar_lea.vmem %s0, %s225
      %p227 = scmp.lt.s32.totalorder %s17, 1
      %s228 = scalar_select %p227, %s17, 1
      %s229 = smul.addr %s228, 32
      %s230 = smul.addr %s229, 8
      %s231 = scalar_lea.vmem %s4, %s230
      %p232 = scmp.lt.s32.totalorder %s17, 1
      %s233 = scalar_select %p232, %s17, 1
      %s234 = smul.addr %s233, 8
      %s235 = scalar_lea.vmem %s5, %s234
      %v237 = vld [vmem:[%s226] sm:$0xff]
      %v238 = vld [vmem:[%s226 + $0x8] sm:$0xff]
      %v239 = vld [vmem:[%s226 + $0x10] sm:$0xff]
      %v240 = vld [vmem:[%s226 + $0x18] sm:$0xff]
      %v241 = vld [vmem:[%s226 + $0x20] sm:$0xff]
      %v242 = vld [vmem:[%s226 + $0x28] sm:$0xff]
      %v243 = vld [vmem:[%s226 + $0x30] sm:$0xff]
      %v244 = vld [vmem:[%s226 + $0x38] sm:$0xff]
      %v245 = vld [vmem:[%s226 + $0x40] sm:$0xff]
      %v246 = vld [vmem:[%s226 + $0x48] sm:$0xff]
      %v247 = vld [vmem:[%s226 + $0x50] sm:$0xff]
      %v248 = vld [vmem:[%s226 + $0x58] sm:$0xff]
      %v249 = vld [vmem:[%s226 + $0x60] sm:$0xff]
      %v250 = vld [vmem:[%s226 + $0x68] sm:$0xff]
      %v251 = vld [vmem:[%s226 + $0x70] sm:$0xff]
      %v252 = vld [vmem:[%s226 + $0x78] sm:$0xff]
      %v253 = vld [vmem:[%s226 + $0x80] sm:$0xff]
      %v254 = vld [vmem:[%s226 + $0x88] sm:$0xff]
      %v255 = vld [vmem:[%s226 + $0x90] sm:$0xff]
      %v256 = vld [vmem:[%s226 + $0x98] sm:$0xff]
      %v257 = vld [vmem:[%s226 + $0xa0] sm:$0xff]
      %v258 = vld [vmem:[%s226 + $0xa8] sm:$0xff]
      %v259 = vld [vmem:[%s226 + $0xb0] sm:$0xff]
      %v260 = vld [vmem:[%s226 + $0xb8] sm:$0xff]
      %v261 = vld [vmem:[%s226 + $0xc0] sm:$0xff]
      %v262 = vld [vmem:[%s226 + $0xc8] sm:$0xff]
      %v263 = vld [vmem:[%s226 + $0xd0] sm:$0xff]
      %v264 = vld [vmem:[%s226 + $0xd8] sm:$0xff]
      %v265 = vld [vmem:[%s226 + $0xe0] sm:$0xff]
      %v266 = vld [vmem:[%s226 + $0xe8] sm:$0xff]
      %v267 = vld [vmem:[%s226 + $0xf0] sm:$0xff]
      %v268 = vld [vmem:[%s226 + $0xf8] sm:$0xff]
      %v269 = vld [vmem:[%s1] sm:$0x1]
      %v271 = vperm.slane %v269, 0
      %v273 = vmul.f32 %v237, %v271
      %v274 = vmul.f32 %v238, %v271
      %v275 = vmul.f32 %v239, %v271
      %v276 = vmul.f32 %v240, %v271
      %v277 = vmul.f32 %v241, %v271
      %v278 = vmul.f32 %v242, %v271
      %v279 = vmul.f32 %v243, %v271
      %v280 = vmul.f32 %v244, %v271
      %v281 = vmul.f32 %v245, %v271
      %v282 = vmul.f32 %v246, %v271
      %v283 = vmul.f32 %v247, %v271
      %v284 = vmul.f32 %v248, %v271
      %v285 = vmul.f32 %v249, %v271
      %v286 = vmul.f32 %v250, %v271
      %v287 = vmul.f32 %v251, %v271
      %v288 = vmul.f32 %v252, %v271
      %v289 = vmul.f32 %v253, %v271
      %v290 = vmul.f32 %v254, %v271
      %v291 = vmul.f32 %v255, %v271
      %v292 = vmul.f32 %v256, %v271
      %v293 = vmul.f32 %v257, %v271
      %v294 = vmul.f32 %v258, %v271
      %v295 = vmul.f32 %v259, %v271
      %v296 = vmul.f32 %v260, %v271
      %v297 = vmul.f32 %v261, %v271
      %v298 = vmul.f32 %v262, %v271
      %v299 = vmul.f32 %v263, %v271
      %v300 = vmul.f32 %v264, %v271
      %v301 = vmul.f32 %v265, %v271
      %v302 = vmul.f32 %v266, %v271
      %v303 = vmul.f32 %v267, %v271
      %v304 = vmul.f32 %v268, %v271
      %v305 = vld [vmem:[%s2] sm:$0x1]
      %v307 = vperm.slane %v305, 0
      %v309 = vadd.f32 %v273, %v307
      %v310 = vadd.f32 %v274, %v307
      %v311 = vadd.f32 %v275, %v307
      %v312 = vadd.f32 %v276, %v307
      %v313 = vadd.f32 %v277, %v307
      %v314 = vadd.f32 %v278, %v307
      %v315 = vadd.f32 %v279, %v307
      %v316 = vadd.f32 %v280, %v307
      %v317 = vadd.f32 %v281, %v307
      %v318 = vadd.f32 %v282, %v307
      %v319 = vadd.f32 %v283, %v307
      %v320 = vadd.f32 %v284, %v307
      %v321 = vadd.f32 %v285, %v307
      %v322 = vadd.f32 %v286, %v307
      %v323 = vadd.f32 %v287, %v307
      %v324 = vadd.f32 %v288, %v307
      %v325 = vadd.f32 %v289, %v307
      %v326 = vadd.f32 %v290, %v307
      %v327 = vadd.f32 %v291, %v307
      %v328 = vadd.f32 %v292, %v307
      %v329 = vadd.f32 %v293, %v307
      %v330 = vadd.f32 %v294, %v307
      %v331 = vadd.f32 %v295, %v307
      %v332 = vadd.f32 %v296, %v307
      %v333 = vadd.f32 %v297, %v307
      %v334 = vadd.f32 %v298, %v307
      %v335 = vadd.f32 %v299, %v307
      %v336 = vadd.f32 %v300, %v307
      %v337 = vadd.f32 %v301, %v307
      %v338 = vadd.f32 %v302, %v307
      %v339 = vadd.f32 %v303, %v307
      %v340 = vadd.f32 %v304, %v307
      %v341 = vmax.f32 %v309, 0.0
      %v342 = vmax.f32 %v310, 0.0
      %v343 = vmax.f32 %v311, 0.0
      %v344 = vmax.f32 %v312, 0.0
      %v345 = vmax.f32 %v313, 0.0
      %v346 = vmax.f32 %v314, 0.0
      %v347 = vmax.f32 %v315, 0.0
      %v348 = vmax.f32 %v316, 0.0
      %v349 = vmax.f32 %v317, 0.0
      %v350 = vmax.f32 %v318, 0.0
      %v351 = vmax.f32 %v319, 0.0
      %v352 = vmax.f32 %v320, 0.0
      %v353 = vmax.f32 %v321, 0.0
      %v354 = vmax.f32 %v322, 0.0
      %v355 = vmax.f32 %v323, 0.0
      %v356 = vmax.f32 %v324, 0.0
      %v357 = vmax.f32 %v325, 0.0
      %v358 = vmax.f32 %v326, 0.0
      %v359 = vmax.f32 %v327, 0.0
      %v360 = vmax.f32 %v328, 0.0
      %v361 = vmax.f32 %v329, 0.0
      %v362 = vmax.f32 %v330, 0.0
      %v363 = vmax.f32 %v331, 0.0
      %v364 = vmax.f32 %v332, 0.0
      %v365 = vmax.f32 %v333, 0.0
      %v366 = vmax.f32 %v334, 0.0
      %v367 = vmax.f32 %v335, 0.0
      %v368 = vmax.f32 %v336, 0.0
      %v369 = vmax.f32 %v337, 0.0
      %v370 = vmax.f32 %v338, 0.0
      %v371 = vmax.f32 %v339, 0.0
      %v372 = vmax.f32 %v340, 0.0
      %v373 = vpack.c.bf16 %v341, %v341
      %v374 = vpack.c.bf16 %v342, %v342
      %v375 = vpack.c.bf16 %v343, %v343
      %v376 = vpack.c.bf16 %v344, %v344
      %v377 = vpack.c.bf16 %v345, %v345
      %v378 = vpack.c.bf16 %v346, %v346
      %v379 = vpack.c.bf16 %v347, %v347
      %v380 = vpack.c.bf16 %v348, %v348
      %v381 = vpack.c.bf16 %v349, %v349
      %v382 = vpack.c.bf16 %v350, %v350
      %v383 = vpack.c.bf16 %v351, %v351
      %v384 = vpack.c.bf16 %v352, %v352
      %v385 = vpack.c.bf16 %v353, %v353
      %v386 = vpack.c.bf16 %v354, %v354
      %v387 = vpack.c.bf16 %v355, %v355
      %v388 = vpack.c.bf16 %v356, %v356
      %v389 = vpack.c.bf16 %v357, %v357
      %v390 = vpack.c.bf16 %v358, %v358
      %v391 = vpack.c.bf16 %v359, %v359
      %v392 = vpack.c.bf16 %v360, %v360
      %v393 = vpack.c.bf16 %v361, %v361
      %v394 = vpack.c.bf16 %v362, %v362
      %v395 = vpack.c.bf16 %v363, %v363
      %v396 = vpack.c.bf16 %v364, %v364
      %v397 = vpack.c.bf16 %v365, %v365
      %v398 = vpack.c.bf16 %v366, %v366
      %v399 = vpack.c.bf16 %v367, %v367
      %v400 = vpack.c.bf16 %v368, %v368
      %v401 = vpack.c.bf16 %v369, %v369
      %v402 = vpack.c.bf16 %v370, %v370
      %v403 = vpack.c.bf16 %v371, %v371
      %v404 = vpack.c.bf16 %v372, %v372
      %v437 = vunpack.c.l.b16 %v373
      %v438 = vunpack.c.l.b16 %v374
      %v439 = vunpack.c.l.b16 %v375
      %v440 = vunpack.c.l.b16 %v376
      %v441 = vunpack.c.l.b16 %v377
      %v442 = vunpack.c.l.b16 %v378
      %v443 = vunpack.c.l.b16 %v379
      %v444 = vunpack.c.l.b16 %v380
      %v445 = vunpack.c.l.b16 %v381
      %v446 = vunpack.c.l.b16 %v382
      %v447 = vunpack.c.l.b16 %v383
      %v448 = vunpack.c.l.b16 %v384
      %v449 = vunpack.c.l.b16 %v385
      %v450 = vunpack.c.l.b16 %v386
      %v451 = vunpack.c.l.b16 %v387
      %v452 = vunpack.c.l.b16 %v388
      %v453 = vunpack.c.l.b16 %v389
      %v454 = vunpack.c.l.b16 %v390
      %v455 = vunpack.c.l.b16 %v391
      %v456 = vunpack.c.l.b16 %v392
      %v457 = vunpack.c.l.b16 %v393
      %v458 = vunpack.c.l.b16 %v394
      %v459 = vunpack.c.l.b16 %v395
      %v460 = vunpack.c.l.b16 %v396
      %v461 = vunpack.c.l.b16 %v397
      %v462 = vunpack.c.l.b16 %v398
      %v463 = vunpack.c.l.b16 %v399
      %v464 = vunpack.c.l.b16 %v400
      %v465 = vunpack.c.l.b16 %v401
      %v466 = vunpack.c.l.b16 %v402
      %v467 = vunpack.c.l.b16 %v403
      %v468 = vunpack.c.l.b16 %v404
      %v469 = vpack.c.b16 %v438, %v437
      %v470 = vpack.c.b16 %v440, %v439
      %v471 = vpack.c.b16 %v442, %v441
      %v472 = vpack.c.b16 %v444, %v443
      %v473 = vpack.c.b16 %v446, %v445
      %v474 = vpack.c.b16 %v448, %v447
      %v475 = vpack.c.b16 %v450, %v449
      %v476 = vpack.c.b16 %v452, %v451
      %v477 = vpack.c.b16 %v454, %v453
      %v478 = vpack.c.b16 %v456, %v455
      %v479 = vpack.c.b16 %v458, %v457
      %v480 = vpack.c.b16 %v460, %v459
      %v481 = vpack.c.b16 %v462, %v461
      %v482 = vpack.c.b16 %v464, %v463
      %v483 = vpack.c.b16 %v466, %v465
      %v484 = vpack.c.b16 %v468, %v467
      %v486 = vshrl.u32 0, 16
      %v488 = vrot.slane %v486, 7
      %v489 = vshll.u32 0, 16
      %v491 = vor.u32 %v488, %v489
      %v493 = vshrl.u32 %v469, 16
      %v495 = vrot.slane %v493, 7
      %v496 = vshll.u32 %v469, 16
      %v498 = vor.u32 %v495, %v496
      %v500 = vshrl.u32 %v470, 16
      %v502 = vrot.slane %v500, 7
      %v503 = vshll.u32 %v470, 16
      %v505 = vor.u32 %v502, %v503
      %v507 = vshrl.u32 %v471, 16
      %v509 = vrot.slane %v507, 7
      %v510 = vshll.u32 %v471, 16
      %v512 = vor.u32 %v509, %v510
      %v514 = vshrl.u32 %v472, 16
      %v516 = vrot.slane %v514, 7
      %v517 = vshll.u32 %v472, 16
      %v519 = vor.u32 %v516, %v517
      %v521 = vshrl.u32 %v473, 16
      %v523 = vrot.slane %v521, 7
      %v524 = vshll.u32 %v473, 16
      %v526 = vor.u32 %v523, %v524
      %v528 = vshrl.u32 %v474, 16
      %v530 = vrot.slane %v528, 7
      %v531 = vshll.u32 %v474, 16
      %v533 = vor.u32 %v530, %v531
      %v535 = vshrl.u32 %v475, 16
      %v537 = vrot.slane %v535, 7
      %v538 = vshll.u32 %v475, 16
      %v540 = vor.u32 %v537, %v538
      %v542 = vshrl.u32 %v476, 16
      %v544 = vrot.slane %v542, 7
      %v545 = vshll.u32 %v476, 16
      %v547 = vor.u32 %v544, %v545
      %v549 = vshrl.u32 %v477, 16
      %v551 = vrot.slane %v549, 7
      %v552 = vshll.u32 %v477, 16
      %v554 = vor.u32 %v551, %v552
      %v556 = vshrl.u32 %v478, 16
      %v558 = vrot.slane %v556, 7
      %v559 = vshll.u32 %v478, 16
      %v561 = vor.u32 %v558, %v559
      %v563 = vshrl.u32 %v479, 16
      %v565 = vrot.slane %v563, 7
      %v566 = vshll.u32 %v479, 16
      %v568 = vor.u32 %v565, %v566
      %v570 = vshrl.u32 %v480, 16
      %v572 = vrot.slane %v570, 7
      %v573 = vshll.u32 %v480, 16
      %v575 = vor.u32 %v572, %v573
      %v577 = vshrl.u32 %v481, 16
      %v579 = vrot.slane %v577, 7
      %v580 = vshll.u32 %v481, 16
      %v582 = vor.u32 %v579, %v580
      %v584 = vshrl.u32 %v482, 16
      %v586 = vrot.slane %v584, 7
      %v587 = vshll.u32 %v482, 16
      %v589 = vor.u32 %v586, %v587
      %v591 = vshrl.u32 %v483, 16
      %v593 = vrot.slane %v591, 7
      %v594 = vshll.u32 %v483, 16
      %v596 = vor.u32 %v593, %v594
      %v598 = vshrl.u32 %v484, 16
      %v600 = vrot.slane %v598, 7
      %v601 = vshll.u32 %v484, 16
      %v603 = vor.u32 %v600, %v601
      %vm638 = vcmask 1040384
      %vm639 = vsmask.f32 256
      %vm640 = vmand %vm638, %vm639
      %v641 = vsel %vm640, 0, %v491
      %v642 = vsel %vm640, 0, %v498
      %v643 = vsel %vm640, 0, %v505
      %v644 = vsel %vm640, 0, %v512
      %v645 = vsel %vm640, 0, %v519
      %v646 = vsel %vm640, 0, %v526
      %v647 = vsel %vm640, 0, %v533
      %v648 = vsel %vm640, 0, %v540
      %v649 = vsel %vm640, 0, %v547
      %v650 = vsel %vm640, 0, %v554
      %v651 = vsel %vm640, 0, %v561
      %v652 = vsel %vm640, 0, %v568
      %v653 = vsel %vm640, 0, %v575
      %v654 = vsel %vm640, 0, %v582
      %v655 = vsel %vm640, 0, %v589
      %v656 = vsel %vm640, 0, %v596
      %v657 = vsel %vm640, 0, %v603
      %v658 = vsel %vm640, %v488, 0
      %v659 = vsel %vm640, %v495, 0
      %v660 = vsel %vm640, %v502, 0
      %v661 = vsel %vm640, %v509, 0
      %v662 = vsel %vm640, %v516, 0
      %v663 = vsel %vm640, %v523, 0
      %v664 = vsel %vm640, %v530, 0
      %v665 = vsel %vm640, %v537, 0
      %v666 = vsel %vm640, %v544, 0
      %v667 = vsel %vm640, %v551, 0
      %v668 = vsel %vm640, %v558, 0
      %v669 = vsel %vm640, %v565, 0
      %v670 = vsel %vm640, %v572, 0
      %v671 = vsel %vm640, %v579, 0
      %v672 = vsel %vm640, %v586, 0
      %v673 = vsel %vm640, %v593, 0
      %v674 = vsel %vm640, %v600, 0
      %vm675 = vsmask.f32 7424
      %v677 = vshrl.u32 %v641, 16
      %v679 = vshll.u32 %v641, 16
      %v681 = vrot.slane %v679, 1
      %v682 = vor.u32 %v677, %v681
      %v684 = vshll.u32 %v658, 16
      %v686 = vrot.slane %v684, 1
      %v687 = vsel %vm675, %v682, %v686
      %v689 = vshrl.u32 %v642, 16
      %v691 = vshll.u32 %v642, 16
      %v693 = vrot.slane %v691, 1
      %v694 = vor.u32 %v689, %v693
      %v696 = vshll.u32 %v659, 16
      %v698 = vrot.slane %v696, 1
      %v699 = vsel %vm675, %v694, %v698
      %v701 = vshrl.u32 %v643, 16
      %v703 = vshll.u32 %v643, 16
      %v705 = vrot.slane %v703, 1
      %v706 = vor.u32 %v701, %v705
      %v708 = vshll.u32 %v660, 16
      %v710 = vrot.slane %v708, 1
      %v711 = vsel %vm675, %v706, %v710
      %v713 = vshrl.u32 %v644, 16
      %v715 = vshll.u32 %v644, 16
      %v717 = vrot.slane %v715, 1
      %v718 = vor.u32 %v713, %v717
      %v720 = vshll.u32 %v661, 16
      %v722 = vrot.slane %v720, 1
      %v723 = vsel %vm675, %v718, %v722
      %v725 = vshrl.u32 %v645, 16
      %v727 = vshll.u32 %v645, 16
      %v729 = vrot.slane %v727, 1
      %v730 = vor.u32 %v725, %v729
      %v732 = vshll.u32 %v662, 16
      %v734 = vrot.slane %v732, 1
      %v735 = vsel %vm675, %v730, %v734
      %v737 = vshrl.u32 %v646, 16
      %v739 = vshll.u32 %v646, 16
      %v741 = vrot.slane %v739, 1
      %v742 = vor.u32 %v737, %v741
      %v744 = vshll.u32 %v663, 16
      %v746 = vrot.slane %v744, 1
      %v747 = vsel %vm675, %v742, %v746
      %v749 = vshrl.u32 %v647, 16
      %v751 = vshll.u32 %v647, 16
      %v753 = vrot.slane %v751, 1
      %v754 = vor.u32 %v749, %v753
      %v756 = vshll.u32 %v664, 16
      %v758 = vrot.slane %v756, 1
      %v759 = vsel %vm675, %v754, %v758
      %v761 = vshrl.u32 %v648, 16
      %v763 = vshll.u32 %v648, 16
      %v765 = vrot.slane %v763, 1
      %v766 = vor.u32 %v761, %v765
      %v768 = vshll.u32 %v665, 16
      %v770 = vrot.slane %v768, 1
      %v771 = vsel %vm675, %v766, %v770
      %v773 = vshrl.u32 %v649, 16
      %v775 = vshll.u32 %v649, 16
      %v777 = vrot.slane %v775, 1
      %v778 = vor.u32 %v773, %v777
      %v780 = vshll.u32 %v666, 16
      %v782 = vrot.slane %v780, 1
      %v783 = vsel %vm675, %v778, %v782
      %v785 = vshrl.u32 %v650, 16
      %v787 = vshll.u32 %v650, 16
      %v789 = vrot.slane %v787, 1
      %v790 = vor.u32 %v785, %v789
      %v792 = vshll.u32 %v667, 16
      %v794 = vrot.slane %v792, 1
      %v795 = vsel %vm675, %v790, %v794
      %v797 = vshrl.u32 %v651, 16
      %v799 = vshll.u32 %v651, 16
      %v801 = vrot.slane %v799, 1
      %v802 = vor.u32 %v797, %v801
      %v804 = vshll.u32 %v668, 16
      %v806 = vrot.slane %v804, 1
      %v807 = vsel %vm675, %v802, %v806
      %v809 = vshrl.u32 %v652, 16
      %v811 = vshll.u32 %v652, 16
      %v813 = vrot.slane %v811, 1
      %v814 = vor.u32 %v809, %v813
      %v816 = vshll.u32 %v669, 16
      %v818 = vrot.slane %v816, 1
      %v819 = vsel %vm675, %v814, %v818
      %v821 = vshrl.u32 %v653, 16
      %v823 = vshll.u32 %v653, 16
      %v825 = vrot.slane %v823, 1
      %v826 = vor.u32 %v821, %v825
      %v828 = vshll.u32 %v670, 16
      %v830 = vrot.slane %v828, 1
      %v831 = vsel %vm675, %v826, %v830
      %v833 = vshrl.u32 %v654, 16
      %v835 = vshll.u32 %v654, 16
      %v837 = vrot.slane %v835, 1
      %v838 = vor.u32 %v833, %v837
      %v840 = vshll.u32 %v671, 16
      %v842 = vrot.slane %v840, 1
      %v843 = vsel %vm675, %v838, %v842
      %v845 = vshrl.u32 %v655, 16
      %v847 = vshll.u32 %v655, 16
      %v849 = vrot.slane %v847, 1
      %v850 = vor.u32 %v845, %v849
      %v852 = vshll.u32 %v672, 16
      %v854 = vrot.slane %v852, 1
      %v855 = vsel %vm675, %v850, %v854
      %v857 = vshrl.u32 %v656, 16
      %v859 = vshll.u32 %v656, 16
      %v861 = vrot.slane %v859, 1
      %v862 = vor.u32 %v857, %v861
      %v864 = vshll.u32 %v673, 16
      %v866 = vrot.slane %v864, 1
      %v867 = vsel %vm675, %v862, %v866
      %868 = vrot.lane.b32.xlu0 %v687, 32
      %v869 = vpop.permute.xlu0 %868
      %870 = vrot.lane.b32.xlu0 %v699, 32
      %v871 = vpop.permute.xlu0 %870
      %872 = vrot.lane.b32.xlu0 %v711, 32
      %v873 = vpop.permute.xlu0 %872
      %874 = vrot.lane.b32.xlu0 %v723, 32
      %v875 = vpop.permute.xlu0 %874
      %876 = vrot.lane.b32.xlu0 %v735, 32
      %v877 = vpop.permute.xlu0 %876
      %878 = vrot.lane.b32.xlu0 %v747, 32
      %v879 = vpop.permute.xlu0 %878
      %880 = vrot.lane.b32.xlu0 %v759, 32
      %v881 = vpop.permute.xlu0 %880
      %882 = vrot.lane.b32.xlu0 %v771, 32
      %v883 = vpop.permute.xlu0 %882
      %884 = vrot.lane.b32.xlu0 %v783, 32
      %v885 = vpop.permute.xlu0 %884
      %886 = vrot.lane.b32.xlu0 %v795, 32
      %v887 = vpop.permute.xlu0 %886
      %888 = vrot.lane.b32.xlu0 %v807, 32
      %v889 = vpop.permute.xlu0 %888
      %890 = vrot.lane.b32.xlu0 %v819, 32
      %v891 = vpop.permute.xlu0 %890
      %892 = vrot.lane.b32.xlu0 %v831, 32
      %v893 = vpop.permute.xlu0 %892
      %894 = vrot.lane.b32.xlu0 %v843, 32
      %v895 = vpop.permute.xlu0 %894
      %896 = vrot.lane.b32.xlu0 %v855, 32
      %v897 = vpop.permute.xlu0 %896
      %898 = vrot.lane.b32.xlu0 %v867, 32
      %v899 = vpop.permute.xlu0 %898
      %vm932 = vcmask 1046528
      %v933 = vrot.slane %v641, 1
      %v934 = vrot.slane %v658, 1
      %v935 = vsel %vm932, %v933, %v934
      %v936 = vrot.slane %v642, 1
      %v937 = vrot.slane %v659, 1
      %v938 = vsel %vm932, %v936, %v937
      %v939 = vrot.slane %v643, 1
      %v940 = vrot.slane %v660, 1
      %v941 = vsel %vm932, %v939, %v940
      %v942 = vrot.slane %v644, 1
      %v943 = vrot.slane %v661, 1
      %v944 = vsel %vm932, %v942, %v943
      %v945 = vrot.slane %v645, 1
      %v946 = vrot.slane %v662, 1
      %v947 = vsel %vm932, %v945, %v946
      %v948 = vrot.slane %v646, 1
      %v949 = vrot.slane %v663, 1
      %v950 = vsel %vm932, %v948, %v949
      %v951 = vrot.slane %v647, 1
      %v952 = vrot.slane %v664, 1
      %v953 = vsel %vm932, %v951, %v952
      %v954 = vrot.slane %v648, 1
      %v955 = vrot.slane %v665, 1
      %v956 = vsel %vm932, %v954, %v955
      %v957 = vrot.slane %v649, 1
      %v958 = vrot.slane %v666, 1
      %v959 = vsel %vm932, %v957, %v958
      %v960 = vrot.slane %v650, 1
      %v961 = vrot.slane %v667, 1
      %v962 = vsel %vm932, %v960, %v961
      %v963 = vrot.slane %v651, 1
      %v964 = vrot.slane %v668, 1
      %v965 = vsel %vm932, %v963, %v964
      %v966 = vrot.slane %v652, 1
      %v967 = vrot.slane %v669, 1
      %v968 = vsel %vm932, %v966, %v967
      %v969 = vrot.slane %v653, 1
      %v970 = vrot.slane %v670, 1
      %v971 = vsel %vm932, %v969, %v970
      %v972 = vrot.slane %v654, 1
      %v973 = vrot.slane %v671, 1
      %v974 = vsel %vm932, %v972, %v973
      %v975 = vrot.slane %v655, 1
      %v976 = vrot.slane %v672, 1
      %v977 = vsel %vm932, %v975, %v976
      %v978 = vrot.slane %v656, 1
      %v979 = vrot.slane %v673, 1
      %v980 = vsel %vm932, %v978, %v979
      %981 = vrot.lane.b32.xlu0 %v935, 64
      %v982 = vpop.permute.xlu0 %981
      %983 = vrot.lane.b32.xlu0 %v938, 64
      %v984 = vpop.permute.xlu0 %983
      %985 = vrot.lane.b32.xlu0 %v941, 64
      %v986 = vpop.permute.xlu0 %985
      %987 = vrot.lane.b32.xlu0 %v944, 64
      %v988 = vpop.permute.xlu0 %987
      %989 = vrot.lane.b32.xlu0 %v947, 64
      %v990 = vpop.permute.xlu0 %989
      %991 = vrot.lane.b32.xlu0 %v950, 64
      %v992 = vpop.permute.xlu0 %991
      %993 = vrot.lane.b32.xlu0 %v953, 64
      %v994 = vpop.permute.xlu0 %993
      %995 = vrot.lane.b32.xlu0 %v956, 64
      %v996 = vpop.permute.xlu0 %995
      %997 = vrot.lane.b32.xlu0 %v959, 64
      %v998 = vpop.permute.xlu0 %997
      %999 = vrot.lane.b32.xlu0 %v962, 64
      %v1000 = vpop.permute.xlu0 %999
      %1001 = vrot.lane.b32.xlu0 %v965, 64
      %v1002 = vpop.permute.xlu0 %1001
      %1003 = vrot.lane.b32.xlu0 %v968, 64
      %v1004 = vpop.permute.xlu0 %1003
      %1005 = vrot.lane.b32.xlu0 %v971, 64
      %v1006 = vpop.permute.xlu0 %1005
      %1007 = vrot.lane.b32.xlu0 %v974, 64
      %v1008 = vpop.permute.xlu0 %1007
      %1009 = vrot.lane.b32.xlu0 %v977, 64
      %v1010 = vpop.permute.xlu0 %1009
      %1011 = vrot.lane.b32.xlu0 %v980, 64
      %v1012 = vpop.permute.xlu0 %1011
      %1014 = vrot.lane.b32.xlu0 %v642, 96
      %v1015 = vpop.permute.xlu0 %1014
      %1016 = vrot.lane.b32.xlu0 %v643, 96
      %v1017 = vpop.permute.xlu0 %1016
      %1018 = vrot.lane.b32.xlu0 %v644, 96
      %v1019 = vpop.permute.xlu0 %1018
      %1020 = vrot.lane.b32.xlu0 %v645, 96
      %v1021 = vpop.permute.xlu0 %1020
      %1022 = vrot.lane.b32.xlu0 %v646, 96
      %v1023 = vpop.permute.xlu0 %1022
      %1024 = vrot.lane.b32.xlu0 %v647, 96
      %v1025 = vpop.permute.xlu0 %1024
      %1026 = vrot.lane.b32.xlu0 %v648, 96
      %v1027 = vpop.permute.xlu0 %1026
      %1028 = vrot.lane.b32.xlu0 %v649, 96
      %v1029 = vpop.permute.xlu0 %1028
      %1030 = vrot.lane.b32.xlu0 %v650, 96
      %v1031 = vpop.permute.xlu0 %1030
      %1032 = vrot.lane.b32.xlu0 %v651, 96
      %v1033 = vpop.permute.xlu0 %1032
      %1034 = vrot.lane.b32.xlu0 %v652, 96
      %v1035 = vpop.permute.xlu0 %1034
      %1036 = vrot.lane.b32.xlu0 %v653, 96
      %v1037 = vpop.permute.xlu0 %1036
      %1038 = vrot.lane.b32.xlu0 %v654, 96
      %v1039 = vpop.permute.xlu0 %1038
      %1040 = vrot.lane.b32.xlu0 %v655, 96
      %v1041 = vpop.permute.xlu0 %1040
      %1042 = vrot.lane.b32.xlu0 %v656, 96
      %v1043 = vpop.permute.xlu0 %1042
      %1044 = vrot.lane.b32.xlu0 %v657, 96
      %v1045 = vpop.permute.xlu0 %1044
      %v1047 = vshrl.u32 %v657, 16
      %v1049 = vshll.u32 %v657, 16
      %v1051 = vrot.slane %v1049, 1
      %v1052 = vor.u32 %v1047, %v1051
      %v1054 = vshll.u32 %v674, 16
      %v1056 = vrot.slane %v1054, 1
      %v1057 = vsel %vm675, %v1052, %v1056
      %v1059 = vrot.slane %v657, 1
      %v1060 = vrot.slane %v674, 1
      %v1061 = vsel %vm932, %v1059, %v1060
      %1062 = vrot.lane.b32.xlu0 %v938, 32
      %v1063 = vpop.permute.xlu0 %1062
      %1064 = vrot.lane.b32.xlu0 %v941, 32
      %v1065 = vpop.permute.xlu0 %1064
      %1066 = vrot.lane.b32.xlu0 %v944, 32
      %v1067 = vpop.permute.xlu0 %1066
      %1068 = vrot.lane.b32.xlu0 %v947, 32
      %v1069 = vpop.permute.xlu0 %1068
      %1070 = vrot.lane.b32.xlu0 %v950, 32
      %v1071 = vpop.permute.xlu0 %1070
      %1072 = vrot.lane.b32.xlu0 %v953, 32
      %v1073 = vpop.permute.xlu0 %1072
      %1074 = vrot.lane.b32.xlu0 %v956, 32
      %v1075 = vpop.permute.xlu0 %1074
      %1076 = vrot.lane.b32.xlu0 %v959, 32
      %v1077 = vpop.permute.xlu0 %1076
      %1078 = vrot.lane.b32.xlu0 %v962, 32
      %v1079 = vpop.permute.xlu0 %1078
      %1080 = vrot.lane.b32.xlu0 %v965, 32
      %v1081 = vpop.permute.xlu0 %1080
      %1082 = vrot.lane.b32.xlu0 %v968, 32
      %v1083 = vpop.permute.xlu0 %1082
      %1084 = vrot.lane.b32.xlu0 %v971, 32
      %v1085 = vpop.permute.xlu0 %1084
      %1086 = vrot.lane.b32.xlu0 %v974, 32
      %v1087 = vpop.permute.xlu0 %1086
      %1088 = vrot.lane.b32.xlu0 %v977, 32
      %v1089 = vpop.permute.xlu0 %1088
      %1090 = vrot.lane.b32.xlu0 %v980, 32
      %v1091 = vpop.permute.xlu0 %1090
      %1092 = vrot.lane.b32.xlu0 %v1061, 32
      %v1093 = vpop.permute.xlu0 %1092
      %1094 = vrot.lane.b32.xlu0 %v643, 64
      %v1095 = vpop.permute.xlu0 %1094
      %1096 = vrot.lane.b32.xlu0 %v644, 64
      %v1097 = vpop.permute.xlu0 %1096
      %1098 = vrot.lane.b32.xlu0 %v645, 64
      %v1099 = vpop.permute.xlu0 %1098
      %1100 = vrot.lane.b32.xlu0 %v646, 64
      %v1101 = vpop.permute.xlu0 %1100
      %1102 = vrot.lane.b32.xlu0 %v647, 64
      %v1103 = vpop.permute.xlu0 %1102
      %1104 = vrot.lane.b32.xlu0 %v648, 64
      %v1105 = vpop.permute.xlu0 %1104
      %1106 = vrot.lane.b32.xlu0 %v649, 64
      %v1107 = vpop.permute.xlu0 %1106
      %1108 = vrot.lane.b32.xlu0 %v650, 64
      %v1109 = vpop.permute.xlu0 %1108
      %1110 = vrot.lane.b32.xlu0 %v651, 64
      %v1111 = vpop.permute.xlu0 %1110
      %1112 = vrot.lane.b32.xlu0 %v652, 64
      %v1113 = vpop.permute.xlu0 %1112
      %1114 = vrot.lane.b32.xlu0 %v653, 64
      %v1115 = vpop.permute.xlu0 %1114
      %1116 = vrot.lane.b32.xlu0 %v654, 64
      %v1117 = vpop.permute.xlu0 %1116
      %1118 = vrot.lane.b32.xlu0 %v655, 64
      %v1119 = vpop.permute.xlu0 %1118
      %1120 = vrot.lane.b32.xlu0 %v656, 64
      %v1121 = vpop.permute.xlu0 %1120
      %1122 = vrot.lane.b32.xlu0 %v657, 64
      %v1123 = vpop.permute.xlu0 %1122
      %1124 = vrot.lane.b32.xlu0 %v641, 64
      %v1125 = vpop.permute.xlu0 %1124
      %1126 = vrot.lane.b32.xlu0 %v711, 96
      %v1127 = vpop.permute.xlu0 %1126
      %1128 = vrot.lane.b32.xlu0 %v723, 96
      %v1129 = vpop.permute.xlu0 %1128
      %1130 = vrot.lane.b32.xlu0 %v735, 96
      %v1131 = vpop.permute.xlu0 %1130
      %1132 = vrot.lane.b32.xlu0 %v747, 96
      %v1133 = vpop.permute.xlu0 %1132
      %1134 = vrot.lane.b32.xlu0 %v759, 96
      %v1135 = vpop.permute.xlu0 %1134
      %1136 = vrot.lane.b32.xlu0 %v771, 96
      %v1137 = vpop.permute.xlu0 %1136
      %1138 = vrot.lane.b32.xlu0 %v783, 96
      %v1139 = vpop.permute.xlu0 %1138
      %1140 = vrot.lane.b32.xlu0 %v795, 96
      %v1141 = vpop.permute.xlu0 %1140
      %1142 = vrot.lane.b32.xlu0 %v807, 96
      %v1143 = vpop.permute.xlu0 %1142
      %1144 = vrot.lane.b32.xlu0 %v819, 96
      %v1145 = vpop.permute.xlu0 %1144
      %1146 = vrot.lane.b32.xlu0 %v831, 96
      %v1147 = vpop.permute.xlu0 %1146
      %1148 = vrot.lane.b32.xlu0 %v843, 96
      %v1149 = vpop.permute.xlu0 %1148
      %1150 = vrot.lane.b32.xlu0 %v855, 96
      %v1151 = vpop.permute.xlu0 %1150
      %1152 = vrot.lane.b32.xlu0 %v867, 96
      %v1153 = vpop.permute.xlu0 %1152
      %1154 = vrot.lane.b32.xlu0 %v1057, 96
      %v1155 = vpop.permute.xlu0 %1154
      %1156 = vrot.lane.b32.xlu0 %v687, 96
      %v1157 = vpop.permute.xlu0 %1156
      %vm1158 = vcmask 261120
      %v1160 = vsel %vm1158, %v641, %v869
      %v1162 = vsel %vm1158, %v642, %v871
      %v1164 = vsel %vm1158, %v643, %v873
      %v1166 = vsel %vm1158, %v644, %v875
      %v1168 = vsel %vm1158, %v645, %v877
      %v1170 = vsel %vm1158, %v646, %v879
      %v1172 = vsel %vm1158, %v647, %v881
      %v1174 = vsel %vm1158, %v648, %v883
      %v1176 = vsel %vm1158, %v649, %v885
      %v1178 = vsel %vm1158, %v650, %v887
      %v1180 = vsel %vm1158, %v651, %v889
      %v1182 = vsel %vm1158, %v652, %v891
      %v1184 = vsel %vm1158, %v653, %v893
      %v1186 = vsel %vm1158, %v654, %v895
      %v1188 = vsel %vm1158, %v655, %v897
      %v1190 = vsel %vm1158, %v656, %v899
      %vm1191 = vcmask 523264
      %v1193 = vsel %vm1191, %v1160, %v982
      %v1195 = vsel %vm1191, %v1162, %v984
      %v1197 = vsel %vm1191, %v1164, %v986
      %v1199 = vsel %vm1191, %v1166, %v988
      %v1201 = vsel %vm1191, %v1168, %v990
      %v1203 = vsel %vm1191, %v1170, %v992
      %v1205 = vsel %vm1191, %v1172, %v994
      %v1207 = vsel %vm1191, %v1174, %v996
      %v1209 = vsel %vm1191, %v1176, %v998
      %v1211 = vsel %vm1191, %v1178, %v1000
      %v1213 = vsel %vm1191, %v1180, %v1002
      %v1215 = vsel %vm1191, %v1182, %v1004
      %v1217 = vsel %vm1191, %v1184, %v1006
      %v1219 = vsel %vm1191, %v1186, %v1008
      %v1221 = vsel %vm1191, %v1188, %v1010
      %v1223 = vsel %vm1191, %v1190, %v1012
      %vm1224 = vcmask 785408
      %v1226 = vsel %vm1224, %v1193, %v1015
      %v1229 = vsel %vm1224, %v1195, %v1017
      %v1232 = vsel %vm1224, %v1197, %v1019
      %v1235 = vsel %vm1224, %v1199, %v1021
      %v1238 = vsel %vm1224, %v1201, %v1023
      %v1241 = vsel %vm1224, %v1203, %v1025
      %v1244 = vsel %vm1224, %v1205, %v1027
      %v1247 = vsel %vm1224, %v1207, %v1029
      %v1250 = vsel %vm1224, %v1209, %v1031
      %v1253 = vsel %vm1224, %v1211, %v1033
      %v1256 = vsel %vm1224, %v1213, %v1035
      %v1259 = vsel %vm1224, %v1215, %v1037
      %v1262 = vsel %vm1224, %v1217, %v1039
      %v1265 = vsel %vm1224, %v1219, %v1041
      %v1268 = vsel %vm1224, %v1221, %v1043
      %v1271 = vsel %vm1224, %v1223, %v1045
      %v1275 = vsel %vm1158, %v699, %v1063
      %v1278 = vsel %vm1158, %v711, %v1065
      %v1281 = vsel %vm1158, %v723, %v1067
      %v1284 = vsel %vm1158, %v735, %v1069
      %v1287 = vsel %vm1158, %v747, %v1071
      %v1290 = vsel %vm1158, %v759, %v1073
      %v1293 = vsel %vm1158, %v771, %v1075
      %v1296 = vsel %vm1158, %v783, %v1077
      %v1299 = vsel %vm1158, %v795, %v1079
      %v1302 = vsel %vm1158, %v807, %v1081
      %v1305 = vsel %vm1158, %v819, %v1083
      %v1308 = vsel %vm1158, %v831, %v1085
      %v1311 = vsel %vm1158, %v843, %v1087
      %v1314 = vsel %vm1158, %v855, %v1089
      %v1317 = vsel %vm1158, %v867, %v1091
      %v1320 = vsel %vm1158, %v1057, %v1093
      %v1322 = vsel %vm1191, %v1275, %v1095
      %v1324 = vsel %vm1191, %v1278, %v1097
      %v1326 = vsel %vm1191, %v1281, %v1099
      %v1328 = vsel %vm1191, %v1284, %v1101
      %v1330 = vsel %vm1191, %v1287, %v1103
      %v1332 = vsel %vm1191, %v1290, %v1105
      %v1334 = vsel %vm1191, %v1293, %v1107
      %v1336 = vsel %vm1191, %v1296, %v1109
      %v1338 = vsel %vm1191, %v1299, %v1111
      %v1340 = vsel %vm1191, %v1302, %v1113
      %v1342 = vsel %vm1191, %v1305, %v1115
      %v1344 = vsel %vm1191, %v1308, %v1117
      %v1346 = vsel %vm1191, %v1311, %v1119
      %v1348 = vsel %vm1191, %v1314, %v1121
      %v1350 = vsel %vm1191, %v1317, %v1123
      %v1352 = vsel %vm1191, %v1320, %v1125
      %v1354 = vsel %vm1224, %v1322, %v1127
      %v1357 = vsel %vm1224, %v1324, %v1129
      %v1360 = vsel %vm1224, %v1326, %v1131
      %v1363 = vsel %vm1224, %v1328, %v1133
      %v1366 = vsel %vm1224, %v1330, %v1135
      %v1369 = vsel %vm1224, %v1332, %v1137
      %v1372 = vsel %vm1224, %v1334, %v1139
      %v1375 = vsel %vm1224, %v1336, %v1141
      %v1378 = vsel %vm1224, %v1338, %v1143
      %v1381 = vsel %vm1224, %v1340, %v1145
      %v1384 = vsel %vm1224, %v1342, %v1147
      %v1387 = vsel %vm1224, %v1344, %v1149
      %v1390 = vsel %vm1224, %v1346, %v1151
      %v1393 = vsel %vm1224, %v1348, %v1153
      %v1396 = vsel %vm1224, %v1350, %v1155
      %v1399 = vsel %vm1224, %v1352, %v1157
      %v1401 = vld [vmem:[%s3] sm:$0xf]
      %v1402 = vld [vmem:[%s3 + $0x4] sm:$0xf]
      %v1403 = vld [vmem:[%s3 + $0x8] sm:$0xf]
      %v1404 = vld [vmem:[%s3 + $0xc] sm:$0xf]
      %v1405 = vld [vmem:[%s3 + $0x10] sm:$0xf]
      %v1406 = vld [vmem:[%s3 + $0x14] sm:$0xf]
      %v1407 = vld [vmem:[%s3 + $0x18] sm:$0xf]
      %v1408 = vld [vmem:[%s3 + $0x1c] sm:$0xf]
      %v1409 = vld [vmem:[%s3 + $0x20] sm:$0xf]
      %v1410 = vld [vmem:[%s3 + $0x24] sm:$0xf]
      %v1411 = vld [vmem:[%s3 + $0x28] sm:$0xf]
      %v1412 = vld [vmem:[%s3 + $0x2c] sm:$0xf]
      %v1413 = vld [vmem:[%s3 + $0x30] sm:$0xf]
      %v1414 = vld [vmem:[%s3 + $0x34] sm:$0xf]
      %v1415 = vld [vmem:[%s3 + $0x38] sm:$0xf]
      %v1416 = vld [vmem:[%s3 + $0x3c] sm:$0xf]
      %v1417 = vld [vmem:[%s3 + $0x40] sm:$0xf]
      %v1418 = vld [vmem:[%s3 + $0x44] sm:$0xf]
      %v1419 = vld [vmem:[%s3 + $0x48] sm:$0xf]
      %v1420 = vld [vmem:[%s3 + $0x4c] sm:$0xf]
      %v1421 = vld [vmem:[%s3 + $0x50] sm:$0xf]
      %v1422 = vld [vmem:[%s3 + $0x54] sm:$0xf]
      %v1423 = vld [vmem:[%s3 + $0x58] sm:$0xf]
      %v1424 = vld [vmem:[%s3 + $0x5c] sm:$0xf]
      %v1425 = vld [vmem:[%s3 + $0x60] sm:$0xf]
      %v1426 = vld [vmem:[%s3 + $0x64] sm:$0xf]
      %v1427 = vld [vmem:[%s3 + $0x68] sm:$0xf]
      %v1428 = vld [vmem:[%s3 + $0x6c] sm:$0xf]
      %v1429 = vld [vmem:[%s3 + $0x70] sm:$0xf]
      %v1430 = vld [vmem:[%s3 + $0x74] sm:$0xf]
      %v1431 = vld [vmem:[%s3 + $0x78] sm:$0xf]
      %v1432 = vld [vmem:[%s3 + $0x7c] sm:$0xf]
      %v1433 = vld [vmem:[%s3 + $0x80] sm:$0xf]
      %v1434 = vld [vmem:[%s3 + $0x84] sm:$0xf]
      %v1435 = vld [vmem:[%s3 + $0x88] sm:$0xf]
      %v1436 = vld [vmem:[%s3 + $0x8c] sm:$0xf]
      %v1473 = vunpack.c.l.b16 %v1401
      %v1474 = vunpack.c.l.b16 %v1402
      %v1475 = vunpack.c.l.b16 %v1403
      %v1476 = vunpack.c.l.b16 %v1404
      %v1477 = vunpack.c.l.b16 %v1405
      %v1478 = vunpack.c.l.b16 %v1406
      %v1479 = vunpack.c.l.b16 %v1407
      %v1480 = vunpack.c.l.b16 %v1408
      %v1481 = vunpack.c.l.b16 %v1409
      %v1482 = vunpack.c.l.b16 %v1410
      %v1483 = vunpack.c.l.b16 %v1411
      %v1484 = vunpack.c.l.b16 %v1412
      %v1485 = vunpack.c.l.b16 %v1413
      %v1486 = vunpack.c.l.b16 %v1414
      %v1487 = vunpack.c.l.b16 %v1415
      %v1488 = vunpack.c.l.b16 %v1416
      %v1489 = vunpack.c.l.b16 %v1417
      %v1490 = vunpack.c.l.b16 %v1418
      %v1491 = vunpack.c.l.b16 %v1419
      %v1492 = vunpack.c.l.b16 %v1420
      %v1493 = vunpack.c.l.b16 %v1421
      %v1494 = vunpack.c.l.b16 %v1422
      %v1495 = vunpack.c.l.b16 %v1423
      %v1496 = vunpack.c.l.b16 %v1424
      %v1497 = vunpack.c.l.b16 %v1425
      %v1498 = vunpack.c.l.b16 %v1426
      %v1499 = vunpack.c.l.b16 %v1427
      %v1500 = vunpack.c.l.b16 %v1428
      %v1501 = vunpack.c.l.b16 %v1429
      %v1502 = vunpack.c.l.b16 %v1430
      %v1503 = vunpack.c.l.b16 %v1431
      %v1504 = vunpack.c.l.b16 %v1432
      %v1505 = vunpack.c.l.b16 %v1433
      %v1506 = vunpack.c.l.b16 %v1434
      %v1507 = vunpack.c.l.b16 %v1435
      %v1508 = vunpack.c.l.b16 %v1436
      %v1509 = vpack.c.b16 %v1474, %v1473
      %v1510 = vpack.c.b16 %v1476, %v1475
      %v1511 = vpack.c.b16 %v1478, %v1477
      %v1512 = vpack.c.b16 %v1480, %v1479
      %v1513 = vpack.c.b16 %v1482, %v1481
      %v1514 = vpack.c.b16 %v1484, %v1483
      %v1515 = vpack.c.b16 %v1486, %v1485
      %v1516 = vpack.c.b16 %v1488, %v1487
      %v1517 = vpack.c.b16 %v1490, %v1489
      %v1518 = vpack.c.b16 %v1492, %v1491
      %v1519 = vpack.c.b16 %v1494, %v1493
      %v1520 = vpack.c.b16 %v1496, %v1495
      %v1521 = vpack.c.b16 %v1498, %v1497
      %v1522 = vpack.c.b16 %v1500, %v1499
      %v1523 = vpack.c.b16 %v1502, %v1501
      %v1524 = vpack.c.b16 %v1504, %v1503
      %v1525 = vpack.c.b16 %v1506, %v1505
      %v1526 = vpack.c.b16 %v1508, %v1507
      %v1546 = vsel %vm1158, %v941, 0
      %v1549 = vsel %vm1158, %v944, 0
      %v1552 = vsel %vm1158, %v947, 0
      %v1555 = vsel %vm1158, %v950, 0
      %v1558 = vsel %vm1158, %v953, 0
      %v1561 = vsel %vm1158, %v956, 0
      %v1564 = vsel %vm1158, %v959, 0
      %v1567 = vsel %vm1158, %v962, 0
      %v1570 = vsel %vm1158, %v965, 0
      %v1573 = vsel %vm1158, %v968, 0
      %v1576 = vsel %vm1158, %v971, 0
      %v1579 = vsel %vm1158, %v974, 0
      %v1582 = vsel %vm1158, %v977, 0
      %v1585 = vsel %vm1158, %v980, 0
      %v1588 = vsel %vm1158, %v1061, 0
      %v1591 = vsel %vm1158, %v935, 0
      %1593 = vmatpush.bf16.msra.mxu0 %v1516
      %1594 = vmatpush.bf16.msra.mxu0 %v1515
      %1595 = vmatpush.bf16.msra.mxu0 %v1514
      %1596 = vmatpush.bf16.msra.mxu0 %v1513
      %1597 = vmatpush.bf16.msra.mxu0 %v1512
      %1598 = vmatpush.bf16.msra.mxu0 %v1511
      %1599 = vmatpush.bf16.msra.mxu0 %v1510
      %1600 = vmatpush.bf16.msra.mxu0 %v1509
      %1601 = vmatmul.bf16.gmra.mxu0 %v1226
      %v1602 = vpop.f32.mrf.mxu0
      %v1603 = vadd.f32 0.0, %v1602
      %v1604 = vpop.f32.mrf.mxu0
      %v1605 = vadd.f32 0.0, %v1604
      %1606 = vmatmul.bf16.gmra.mxu0 %v1229
      %v1607 = vpop.f32.mrf.mxu0
      %v1608 = vadd.f32 0.0, %v1607
      %v1609 = vpop.f32.mrf.mxu0
      %v1610 = vadd.f32 0.0, %v1609
      %1611 = vmatmul.bf16.gmra.mxu0 %v1232
      %v1612 = vpop.f32.mrf.mxu0
      %v1613 = vadd.f32 0.0, %v1612
      %v1614 = vpop.f32.mrf.mxu0
      %v1615 = vadd.f32 0.0, %v1614
      %1616 = vmatmul.bf16.gmra.mxu0 %v1235
      %v1617 = vpop.f32.mrf.mxu0
      %v1618 = vadd.f32 0.0, %v1617
      %v1619 = vpop.f32.mrf.mxu0
      %v1620 = vadd.f32 0.0, %v1619
      %1621 = vmatmul.bf16.gmra.mxu0 %v1238
      %v1622 = vpop.f32.mrf.mxu0
      %v1623 = vadd.f32 0.0, %v1622
      %v1624 = vpop.f32.mrf.mxu0
      %v1625 = vadd.f32 0.0, %v1624
      %1626 = vmatmul.bf16.gmra.mxu0 %v1241
      %v1627 = vpop.f32.mrf.mxu0
      %v1628 = vadd.f32 0.0, %v1627
      %v1629 = vpop.f32.mrf.mxu0
      %v1630 = vadd.f32 0.0, %v1629
      %1631 = vmatmul.bf16.gmra.mxu0 %v1244
      %v1632 = vpop.f32.mrf.mxu0
      %v1633 = vadd.f32 0.0, %v1632
      %v1634 = vpop.f32.mrf.mxu0
      %v1635 = vadd.f32 0.0, %v1634
      %1636 = vmatmul.bf16.gmra.mxu0 %v1247
      %v1637 = vpop.f32.mrf.mxu0
      %v1638 = vadd.f32 0.0, %v1637
      %v1639 = vpop.f32.mrf.mxu0
      %v1640 = vadd.f32 0.0, %v1639
      %1641 = vmatmul.bf16.gmra.mxu0 %v1250
      %v1642 = vpop.f32.mrf.mxu0
      %v1643 = vadd.f32 0.0, %v1642
      %v1644 = vpop.f32.mrf.mxu0
      %v1645 = vadd.f32 0.0, %v1644
      %1646 = vmatmul.bf16.gmra.mxu0 %v1253
      %v1647 = vpop.f32.mrf.mxu0
      %v1648 = vadd.f32 0.0, %v1647
      %v1649 = vpop.f32.mrf.mxu0
      %v1650 = vadd.f32 0.0, %v1649
      %1651 = vmatmul.bf16.gmra.mxu0 %v1256
      %v1652 = vpop.f32.mrf.mxu0
      %v1653 = vadd.f32 0.0, %v1652
      %v1654 = vpop.f32.mrf.mxu0
      %v1655 = vadd.f32 0.0, %v1654
      %1656 = vmatmul.bf16.gmra.mxu0 %v1259
      %v1657 = vpop.f32.mrf.mxu0
      %v1658 = vadd.f32 0.0, %v1657
      %v1659 = vpop.f32.mrf.mxu0
      %v1660 = vadd.f32 0.0, %v1659
      %1661 = vmatmul.bf16.gmra.mxu0 %v1262
      %v1662 = vpop.f32.mrf.mxu0
      %v1663 = vadd.f32 0.0, %v1662
      %v1664 = vpop.f32.mrf.mxu0
      %v1665 = vadd.f32 0.0, %v1664
      %1666 = vmatmul.bf16.gmra.mxu0 %v1265
      %v1667 = vpop.f32.mrf.mxu0
      %v1668 = vadd.f32 0.0, %v1667
      %v1669 = vpop.f32.mrf.mxu0
      %v1670 = vadd.f32 0.0, %v1669
      %1671 = vmatmul.bf16.gmra.mxu0 %v1268
      %v1672 = vpop.f32.mrf.mxu0
      %v1673 = vadd.f32 0.0, %v1672
      %v1674 = vpop.f32.mrf.mxu0
      %v1675 = vadd.f32 0.0, %v1674
      %1676 = vmatmul.bf16.gmra.mxu0 %v1271
      %v1677 = vpop.f32.mrf.mxu0
      %v1678 = vadd.f32 0.0, %v1677
      %v1679 = vpop.f32.mrf.mxu0
      %v1680 = vadd.f32 0.0, %v1679
      %1681 = vdwg.mxu0
      %1682 = vmatpush.bf16.msra.mxu0 %v1524
      %1683 = vmatpush.bf16.msra.mxu0 %v1523
      %1684 = vmatpush.bf16.msra.mxu0 %v1522
      %1685 = vmatpush.bf16.msra.mxu0 %v1521
      %1686 = vmatpush.bf16.msra.mxu0 %v1520
      %1687 = vmatpush.bf16.msra.mxu0 %v1519
      %1688 = vmatpush.bf16.msra.mxu0 %v1518
      %1689 = vmatpush.bf16.msra.mxu0 %v1517
      %1690 = vmatmul.bf16.gmra.mxu0 %v1354
      %v1691 = vpop.f32.mrf.mxu0
      %v1692 = vadd.f32 %v1603, %v1691
      %v1693 = vpop.f32.mrf.mxu0
      %v1694 = vadd.f32 %v1605, %v1693
      %1695 = vmatmul.bf16.gmra.mxu0 %v1357
      %v1696 = vpop.f32.mrf.mxu0
      %v1697 = vadd.f32 %v1608, %v1696
      %v1698 = vpop.f32.mrf.mxu0
      %v1699 = vadd.f32 %v1610, %v1698
      %1700 = vmatmul.bf16.gmra.mxu0 %v1360
      %v1701 = vpop.f32.mrf.mxu0
      %v1702 = vadd.f32 %v1613, %v1701
      %v1703 = vpop.f32.mrf.mxu0
      %v1704 = vadd.f32 %v1615, %v1703
      %1705 = vmatmul.bf16.gmra.mxu0 %v1363
      %v1706 = vpop.f32.mrf.mxu0
      %v1707 = vadd.f32 %v1618, %v1706
      %v1708 = vpop.f32.mrf.mxu0
      %v1709 = vadd.f32 %v1620, %v1708
      %1710 = vmatmul.bf16.gmra.mxu0 %v1366
      %v1711 = vpop.f32.mrf.mxu0
      %v1712 = vadd.f32 %v1623, %v1711
      %v1713 = vpop.f32.mrf.mxu0
      %v1714 = vadd.f32 %v1625, %v1713
      %1715 = vmatmul.bf16.gmra.mxu0 %v1369
      %v1716 = vpop.f32.mrf.mxu0
      %v1717 = vadd.f32 %v1628, %v1716
      %v1718 = vpop.f32.mrf.mxu0
      %v1719 = vadd.f32 %v1630, %v1718
      %1720 = vmatmul.bf16.gmra.mxu0 %v1372
      %v1721 = vpop.f32.mrf.mxu0
      %v1722 = vadd.f32 %v1633, %v1721
      %v1723 = vpop.f32.mrf.mxu0
      %v1724 = vadd.f32 %v1635, %v1723
      %1725 = vmatmul.bf16.gmra.mxu0 %v1375
      %v1726 = vpop.f32.mrf.mxu0
      %v1727 = vadd.f32 %v1638, %v1726
      %v1728 = vpop.f32.mrf.mxu0
      %v1729 = vadd.f32 %v1640, %v1728
      %1730 = vmatmul.bf16.gmra.mxu0 %v1378
      %v1731 = vpop.f32.mrf.mxu0
      %v1732 = vadd.f32 %v1643, %v1731
      %v1733 = vpop.f32.mrf.mxu0
      %v1734 = vadd.f32 %v1645, %v1733
      %1735 = vmatmul.bf16.gmra.mxu0 %v1381
      %v1736 = vpop.f32.mrf.mxu0
      %v1737 = vadd.f32 %v1648, %v1736
      %v1738 = vpop.f32.mrf.mxu0
      %v1739 = vadd.f32 %v1650, %v1738
      %1740 = vmatmul.bf16.gmra.mxu0 %v1384
      %v1741 = vpop.f32.mrf.mxu0
      %v1742 = vadd.f32 %v1653, %v1741
      %v1743 = vpop.f32.mrf.mxu0
      %v1744 = vadd.f32 %v1655, %v1743
      %1745 = vmatmul.bf16.gmra.mxu0 %v1387
      %v1746 = vpop.f32.mrf.mxu0
      %v1747 = vadd.f32 %v1658, %v1746
      %v1748 = vpop.f32.mrf.mxu0
      %v1749 = vadd.f32 %v1660, %v1748
      %1750 = vmatmul.bf16.gmra.mxu0 %v1390
      %v1751 = vpop.f32.mrf.mxu0
      %v1752 = vadd.f32 %v1663, %v1751
      %v1753 = vpop.f32.mrf.mxu0
      %v1754 = vadd.f32 %v1665, %v1753
      %1755 = vmatmul.bf16.gmra.mxu0 %v1393
      %v1756 = vpop.f32.mrf.mxu0
      %v1757 = vadd.f32 %v1668, %v1756
      %v1758 = vpop.f32.mrf.mxu0
      %v1759 = vadd.f32 %v1670, %v1758
      %1760 = vmatmul.bf16.gmra.mxu0 %v1396
      %v1761 = vpop.f32.mrf.mxu0
      %v1762 = vadd.f32 %v1673, %v1761
      %v1763 = vpop.f32.mrf.mxu0
      %v1764 = vadd.f32 %v1675, %v1763
      %1765 = vmatmul.bf16.gmra.mxu0 %v1399
      %v1766 = vpop.f32.mrf.mxu0
      %v1767 = vadd.f32 %v1678, %v1766
      %v1768 = vpop.f32.mrf.mxu0
      %v1769 = vadd.f32 %v1680, %v1768
      %1770 = vdwg.mxu0
      %1771 = vmatpush.bf16.msra.mxu0 0
      %1772 = vmatpush.bf16.msra.mxu0 0
      %1773 = vmatpush.bf16.msra.mxu0 0
      %1774 = vmatpush.bf16.msra.mxu0 0
      %1775 = vmatpush.bf16.msra.mxu0 0
      %1776 = vmatpush.bf16.msra.mxu0 0
      %1777 = vmatpush.bf16.msra.mxu0 %v1526
      %1778 = vmatpush.bf16.msra.mxu0 %v1525
      %1779 = vmatmul.bf16.gmra.mxu0 %v1546
      %v1780 = vpop.f32.mrf.mxu0
      %v1781 = vadd.f32 %v1692, %v1780
      %v1782 = vpop.f32.mrf.mxu0
      %v1783 = vadd.f32 %v1694, %v1782
      %1784 = vmatmul.bf16.gmra.mxu0 %v1549
      %v1785 = vpop.f32.mrf.mxu0
      %v1786 = vadd.f32 %v1697, %v1785
      %v1787 = vpop.f32.mrf.mxu0
      %v1788 = vadd.f32 %v1699, %v1787
      %1789 = vmatmul.bf16.gmra.mxu0 %v1552
      %v1790 = vpop.f32.mrf.mxu0
      %v1791 = vadd.f32 %v1702, %v1790
      %v1792 = vpop.f32.mrf.mxu0
      %v1793 = vadd.f32 %v1704, %v1792
      %1794 = vmatmul.bf16.gmra.mxu0 %v1555
      %v1795 = vpop.f32.mrf.mxu0
      %v1796 = vadd.f32 %v1707, %v1795
      %v1797 = vpop.f32.mrf.mxu0
      %v1798 = vadd.f32 %v1709, %v1797
      %1799 = vmatmul.bf16.gmra.mxu0 %v1558
      %v1800 = vpop.f32.mrf.mxu0
      %v1801 = vadd.f32 %v1712, %v1800
      %v1802 = vpop.f32.mrf.mxu0
      %v1803 = vadd.f32 %v1714, %v1802
      %1804 = vmatmul.bf16.gmra.mxu0 %v1561
      %v1805 = vpop.f32.mrf.mxu0
      %v1806 = vadd.f32 %v1717, %v1805
      %v1807 = vpop.f32.mrf.mxu0
      %v1808 = vadd.f32 %v1719, %v1807
      %1809 = vmatmul.bf16.gmra.mxu0 %v1564
      %v1810 = vpop.f32.mrf.mxu0
      %v1811 = vadd.f32 %v1722, %v1810
      %v1812 = vpop.f32.mrf.mxu0
      %v1813 = vadd.f32 %v1724, %v1812
      %1814 = vmatmul.bf16.gmra.mxu0 %v1567
      %v1815 = vpop.f32.mrf.mxu0
      %v1816 = vadd.f32 %v1727, %v1815
      %v1817 = vpop.f32.mrf.mxu0
      %v1818 = vadd.f32 %v1729, %v1817
      %1819 = vmatmul.bf16.gmra.mxu0 %v1570
      %v1820 = vpop.f32.mrf.mxu0
      %v1821 = vadd.f32 %v1732, %v1820
      %v1822 = vpop.f32.mrf.mxu0
      %v1823 = vadd.f32 %v1734, %v1822
      %1824 = vmatmul.bf16.gmra.mxu0 %v1573
      %v1825 = vpop.f32.mrf.mxu0
      %v1826 = vadd.f32 %v1737, %v1825
      %v1827 = vpop.f32.mrf.mxu0
      %v1828 = vadd.f32 %v1739, %v1827
      %1829 = vmatmul.bf16.gmra.mxu0 %v1576
      %v1830 = vpop.f32.mrf.mxu0
      %v1831 = vadd.f32 %v1742, %v1830
      %v1832 = vpop.f32.mrf.mxu0
      %v1833 = vadd.f32 %v1744, %v1832
      %1834 = vmatmul.bf16.gmra.mxu0 %v1579
      %v1835 = vpop.f32.mrf.mxu0
      %v1836 = vadd.f32 %v1747, %v1835
      %v1837 = vpop.f32.mrf.mxu0
      %v1838 = vadd.f32 %v1749, %v1837
      %1839 = vmatmul.bf16.gmra.mxu0 %v1582
      %v1840 = vpop.f32.mrf.mxu0
      %v1841 = vadd.f32 %v1752, %v1840
      %v1842 = vpop.f32.mrf.mxu0
      %v1843 = vadd.f32 %v1754, %v1842
      %1844 = vmatmul.bf16.gmra.mxu0 %v1585
      %v1845 = vpop.f32.mrf.mxu0
      %v1846 = vadd.f32 %v1757, %v1845
      %v1847 = vpop.f32.mrf.mxu0
      %v1848 = vadd.f32 %v1759, %v1847
      %1849 = vmatmul.bf16.gmra.mxu0 %v1588
      %v1850 = vpop.f32.mrf.mxu0
      %v1851 = vadd.f32 %v1762, %v1850
      %v1852 = vpop.f32.mrf.mxu0
      %v1853 = vadd.f32 %v1764, %v1852
      %1854 = vmatmul.bf16.gmra.mxu0 %v1591
      %v1855 = vpop.f32.mrf.mxu0
      %v1856 = vadd.f32 %v1767, %v1855
      %v1857 = vpop.f32.mrf.mxu0
      %v1858 = vadd.f32 %v1769, %v1857
      %1859 = vdwg.mxu0
      %1860 = vst.msk [vmem:[%s231] sm:$0xff] %vm1158, %v1781
      %1861 = vst.msk [vmem:[%s231 + $0x8] sm:$0xff] %vm1158, %v1783
      %1862 = vst.msk [vmem:[%s231 + $0x10] sm:$0xff] %vm1158, %v1786
      %1863 = vst.msk [vmem:[%s231 + $0x18] sm:$0xff] %vm1158, %v1788
      %1864 = vst.msk [vmem:[%s231 + $0x20] sm:$0xff] %vm1158, %v1791
      %1865 = vst.msk [vmem:[%s231 + $0x28] sm:$0xff] %vm1158, %v1793
      %1866 = vst.msk [vmem:[%s231 + $0x30] sm:$0xff] %vm1158, %v1796
      %1867 = vst.msk [vmem:[%s231 + $0x38] sm:$0xff] %vm1158, %v1798
      %1868 = vst.msk [vmem:[%s231 + $0x40] sm:$0xff] %vm1158, %v1801
      %1869 = vst.msk [vmem:[%s231 + $0x48] sm:$0xff] %vm1158, %v1803
      %1870 = vst.msk [vmem:[%s231 + $0x50] sm:$0xff] %vm1158, %v1806
      %1871 = vst.msk [vmem:[%s231 + $0x58] sm:$0xff] %vm1158, %v1808
      %1872 = vst.msk [vmem:[%s231 + $0x60] sm:$0xff] %vm1158, %v1811
      %1873 = vst.msk [vmem:[%s231 + $0x68] sm:$0xff] %vm1158, %v1813
      %1874 = vst.msk [vmem:[%s231 + $0x70] sm:$0xff] %vm1158, %v1816
      %1875 = vst.msk [vmem:[%s231 + $0x78] sm:$0xff] %vm1158, %v1818
      %1876 = vst.msk [vmem:[%s231 + $0x80] sm:$0xff] %vm1158, %v1821
      %1877 = vst.msk [vmem:[%s231 + $0x88] sm:$0xff] %vm1158, %v1823
      %1878 = vst.msk [vmem:[%s231 + $0x90] sm:$0xff] %vm1158, %v1826
      %1879 = vst.msk [vmem:[%s231 + $0x98] sm:$0xff] %vm1158, %v1828
      %1880 = vst.msk [vmem:[%s231 + $0xa0] sm:$0xff] %vm1158, %v1831
      %1881 = vst.msk [vmem:[%s231 + $0xa8] sm:$0xff] %vm1158, %v1833
      %1882 = vst.msk [vmem:[%s231 + $0xb0] sm:$0xff] %vm1158, %v1836
      %1883 = vst.msk [vmem:[%s231 + $0xb8] sm:$0xff] %vm1158, %v1838
      %1884 = vst.msk [vmem:[%s231 + $0xc0] sm:$0xff] %vm1158, %v1841
      %1885 = vst.msk [vmem:[%s231 + $0xc8] sm:$0xff] %vm1158, %v1843
      %1886 = vst.msk [vmem:[%s231 + $0xd0] sm:$0xff] %vm1158, %v1846
      %1887 = vst.msk [vmem:[%s231 + $0xd8] sm:$0xff] %vm1158, %v1848
      %1888 = vst.msk [vmem:[%s231 + $0xe0] sm:$0xff] %vm1158, %v1851
      %1889 = vst.msk [vmem:[%s231 + $0xe8] sm:$0xff] %vm1158, %v1853
      %1890 = vst.msk [vmem:[%s231 + $0xf0] sm:$0xff] %vm1158, %v1856
      %1891 = vst.msk [vmem:[%s231 + $0xf8] sm:$0xff] %vm1158, %v1858
      %v1892 = vsel %vm1158, %v1781, 0.0
      %v1893 = vsel %vm1158, %v1783, 0.0
      %v1894 = vadd.f32 %v1892, %v1893
      %v1895 = vsel %vm1158, %v1786, 0.0
      %v1896 = vadd.f32 %v1894, %v1895
      %v1897 = vsel %vm1158, %v1788, 0.0
      %v1898 = vadd.f32 %v1896, %v1897
      %v1899 = vsel %vm1158, %v1791, 0.0
      %v1900 = vadd.f32 %v1898, %v1899
      %v1901 = vsel %vm1158, %v1793, 0.0
      %v1902 = vadd.f32 %v1900, %v1901
      %v1903 = vsel %vm1158, %v1796, 0.0
      %v1904 = vadd.f32 %v1902, %v1903
      %v1905 = vsel %vm1158, %v1798, 0.0
      %v1906 = vadd.f32 %v1904, %v1905
      %v1907 = vsel %vm1158, %v1801, 0.0
      %v1908 = vadd.f32 %v1906, %v1907
      %v1909 = vsel %vm1158, %v1803, 0.0
      %v1910 = vadd.f32 %v1908, %v1909
      %v1911 = vsel %vm1158, %v1806, 0.0
      %v1912 = vadd.f32 %v1910, %v1911
      %v1913 = vsel %vm1158, %v1808, 0.0
      %v1914 = vadd.f32 %v1912, %v1913
      %v1915 = vsel %vm1158, %v1811, 0.0
      %v1916 = vadd.f32 %v1914, %v1915
      %v1917 = vsel %vm1158, %v1813, 0.0
      %v1918 = vadd.f32 %v1916, %v1917
      %v1919 = vsel %vm1158, %v1816, 0.0
      %v1920 = vadd.f32 %v1918, %v1919
      %v1921 = vsel %vm1158, %v1818, 0.0
      %v1922 = vadd.f32 %v1920, %v1921
      %v1923 = vsel %vm1158, %v1821, 0.0
      %v1924 = vadd.f32 %v1922, %v1923
      %v1925 = vsel %vm1158, %v1823, 0.0
      %v1926 = vadd.f32 %v1924, %v1925
      %v1927 = vsel %vm1158, %v1826, 0.0
      %v1928 = vadd.f32 %v1926, %v1927
      %v1929 = vsel %vm1158, %v1828, 0.0
      %v1930 = vadd.f32 %v1928, %v1929
      %v1931 = vsel %vm1158, %v1831, 0.0
      %v1932 = vadd.f32 %v1930, %v1931
      %v1933 = vsel %vm1158, %v1833, 0.0
      %v1934 = vadd.f32 %v1932, %v1933
      %v1935 = vsel %vm1158, %v1836, 0.0
      %v1936 = vadd.f32 %v1934, %v1935
      %v1937 = vsel %vm1158, %v1838, 0.0
      %v1938 = vadd.f32 %v1936, %v1937
      %v1939 = vsel %vm1158, %v1841, 0.0
      %v1940 = vadd.f32 %v1938, %v1939
      %v1941 = vsel %vm1158, %v1843, 0.0
      %v1942 = vadd.f32 %v1940, %v1941
      %v1943 = vsel %vm1158, %v1846, 0.0
      %v1944 = vadd.f32 %v1942, %v1943
      %v1945 = vsel %vm1158, %v1848, 0.0
      %v1946 = vadd.f32 %v1944, %v1945
      %v1947 = vsel %vm1158, %v1851, 0.0
      %v1948 = vadd.f32 %v1946, %v1947
      %v1949 = vsel %vm1158, %v1853, 0.0
      %v1950 = vadd.f32 %v1948, %v1949
      %v1951 = vsel %vm1158, %v1856, 0.0
      %v1952 = vadd.f32 %v1950, %v1951
      %v1953 = vsel %vm1158, %v1858, 0.0
      %v1954 = vadd.f32 %v1952, %v1953
      %v1955 = vrot.slane %v1954, 4
      %v1956 = vadd.f32 %v1954, %v1955
      %v1957 = vrot.slane %v1956, 2
      %v1958 = vadd.f32 %v1956, %v1957
      %v1959 = vrot.slane %v1958, 1
      %v1960 = vadd.f32 %v1958, %v1959
      %v1961 = vmul.f32 %v1781, %v1781
      %v1962 = vmul.f32 %v1783, %v1783
      %v1963 = vmul.f32 %v1786, %v1786
      %v1964 = vmul.f32 %v1788, %v1788
      %v1965 = vmul.f32 %v1791, %v1791
      %v1966 = vmul.f32 %v1793, %v1793
      %v1967 = vmul.f32 %v1796, %v1796
      %v1968 = vmul.f32 %v1798, %v1798
      %v1969 = vmul.f32 %v1801, %v1801
      %v1970 = vmul.f32 %v1803, %v1803
      %v1971 = vmul.f32 %v1806, %v1806
      %v1972 = vmul.f32 %v1808, %v1808
      %v1973 = vmul.f32 %v1811, %v1811
      %v1974 = vmul.f32 %v1813, %v1813
      %v1975 = vmul.f32 %v1816, %v1816
      %v1976 = vmul.f32 %v1818, %v1818
      %v1977 = vmul.f32 %v1821, %v1821
      %v1978 = vmul.f32 %v1823, %v1823
      %v1979 = vmul.f32 %v1826, %v1826
      %v1980 = vmul.f32 %v1828, %v1828
      %v1981 = vmul.f32 %v1831, %v1831
      %v1982 = vmul.f32 %v1833, %v1833
      %v1983 = vmul.f32 %v1836, %v1836
      %v1984 = vmul.f32 %v1838, %v1838
      %v1985 = vmul.f32 %v1841, %v1841
      %v1986 = vmul.f32 %v1843, %v1843
      %v1987 = vmul.f32 %v1846, %v1846
      %v1988 = vmul.f32 %v1848, %v1848
      %v1989 = vmul.f32 %v1851, %v1851
      %v1990 = vmul.f32 %v1853, %v1853
      %v1991 = vmul.f32 %v1856, %v1856
      %v1992 = vmul.f32 %v1858, %v1858
      %v1993 = vsel %vm1158, %v1961, 0.0
      %v1994 = vsel %vm1158, %v1962, 0.0
      %v1995 = vadd.f32 %v1993, %v1994
      %v1996 = vsel %vm1158, %v1963, 0.0
      %v1997 = vadd.f32 %v1995, %v1996
      %v1998 = vsel %vm1158, %v1964, 0.0
      %v1999 = vadd.f32 %v1997, %v1998
      %v2000 = vsel %vm1158, %v1965, 0.0
      %v2001 = vadd.f32 %v1999, %v2000
      %v2002 = vsel %vm1158, %v1966, 0.0
      %v2003 = vadd.f32 %v2001, %v2002
      %v2004 = vsel %vm1158, %v1967, 0.0
      %v2005 = vadd.f32 %v2003, %v2004
      %v2006 = vsel %vm1158, %v1968, 0.0
      %v2007 = vadd.f32 %v2005, %v2006
      %v2008 = vsel %vm1158, %v1969, 0.0
      %v2009 = vadd.f32 %v2007, %v2008
      %v2010 = vsel %vm1158, %v1970, 0.0
      %v2011 = vadd.f32 %v2009, %v2010
      %v2012 = vsel %vm1158, %v1971, 0.0
      %v2013 = vadd.f32 %v2011, %v2012
      %v2014 = vsel %vm1158, %v1972, 0.0
      %v2015 = vadd.f32 %v2013, %v2014
      %v2016 = vsel %vm1158, %v1973, 0.0
      %v2017 = vadd.f32 %v2015, %v2016
      %v2018 = vsel %vm1158, %v1974, 0.0
      %v2019 = vadd.f32 %v2017, %v2018
      %v2020 = vsel %vm1158, %v1975, 0.0
      %v2021 = vadd.f32 %v2019, %v2020
      %v2022 = vsel %vm1158, %v1976, 0.0
      %v2023 = vadd.f32 %v2021, %v2022
      %v2024 = vsel %vm1158, %v1977, 0.0
      %v2025 = vadd.f32 %v2023, %v2024
      %v2026 = vsel %vm1158, %v1978, 0.0
      %v2027 = vadd.f32 %v2025, %v2026
      %v2028 = vsel %vm1158, %v1979, 0.0
      %v2029 = vadd.f32 %v2027, %v2028
      %v2030 = vsel %vm1158, %v1980, 0.0
      %v2031 = vadd.f32 %v2029, %v2030
      %v2032 = vsel %vm1158, %v1981, 0.0
      %v2033 = vadd.f32 %v2031, %v2032
      %v2034 = vsel %vm1158, %v1982, 0.0
      %v2035 = vadd.f32 %v2033, %v2034
      %v2036 = vsel %vm1158, %v1983, 0.0
      %v2037 = vadd.f32 %v2035, %v2036
      %v2038 = vsel %vm1158, %v1984, 0.0
      %v2039 = vadd.f32 %v2037, %v2038
      %v2040 = vsel %vm1158, %v1985, 0.0
      %v2041 = vadd.f32 %v2039, %v2040
      %v2042 = vsel %vm1158, %v1986, 0.0
      %v2043 = vadd.f32 %v2041, %v2042
      %v2044 = vsel %vm1158, %v1987, 0.0
      %v2045 = vadd.f32 %v2043, %v2044
      %v2046 = vsel %vm1158, %v1988, 0.0
      %v2047 = vadd.f32 %v2045, %v2046
      %v2048 = vsel %vm1158, %v1989, 0.0
      %v2049 = vadd.f32 %v2047, %v2048
      %v2050 = vsel %vm1158, %v1990, 0.0
      %v2051 = vadd.f32 %v2049, %v2050
      %v2052 = vsel %vm1158, %v1991, 0.0
      %v2053 = vadd.f32 %v2051, %v2052
      %v2054 = vsel %vm1158, %v1992, 0.0
      %v2055 = vadd.f32 %v2053, %v2054
      %v2056 = vrot.slane %v2055, 4
      %v2057 = vadd.f32 %v2055, %v2056
      %v2058 = vrot.slane %v2057, 2
      %v2059 = vadd.f32 %v2057, %v2058
      %v2060 = vrot.slane %v2059, 1
      %v2061 = vadd.f32 %v2059, %v2060
      %vm2062 = vcmask 1040384
      %v2063 = vsel %vm2062, %v1960, %v2061
      %vm2064 = vcmask 1041408
      %v2065 = vsel %vm2064, %v2063, 0.0
      %2066 = vst.msk [vmem:[%s235] sm:$0xff] %vm1158, %v2065
      %p2067 = scmp.lt.s32.totalorder %s17, 1
      %s2068 = scalar_select %p2067, %s17, 1
      %s2069 = smul.addr %s2068, 32
      %s2070 = smul.addr %s2069, 8
      %s2071 = scalar_lea.vmem %s4, %s2070
      %p2072 = scmp.lt.s32.totalorder %s17, 1
      %s2073 = scalar_select %p2072, %s17, 1
      %s2074 = smul.addr %s2073, 8
      %s2075 = scalar_lea.vmem %s5, %s2074
      // Predicated region
      $region37: #{bottleneck_forward.5} parent=35 // pred_check
        %p2076 = pneg %p124
      $region38: #{bottleneck_forward.5} parent=35 // pred_check_branch
        %2078 = sbr.rel (%p2076) target = $region40
      $region39: #{bottleneck_forward.5} parent=35 // pred_region
        _
      $region40: #{bottleneck_forward.5} parent=35 // pred_fallthru
        _
      // Predicated region
      $region41: #{bottleneck_forward.5} parent=35 // pred_check
        %p2079 = pneg %p150
      $region42: #{bottleneck_forward.5} parent=35 // pred_check_branch
        %2081 = sbr.rel (%p2079) target = $region44
      $region43: #{bottleneck_forward.5} parent=35 // pred_region
        _
      $region44: #{bottleneck_forward.5} parent=35 // pred_fallthru
        _
    $region36: #{bottleneck_forward.5} parent=5 // pred_fallthru
      _
    %p2082 = scmp.le.s32.totalorder 2, %s12
    // Predicated region
    $region45: #{bottleneck_forward.5} parent=5 // pred_check
      %p2083 = pneg %p2082
    $region46: #{bottleneck_forward.5} parent=5 // pred_check_branch
      %2085 = sbr.rel (%p2083) target = $region48
    $region47: #{bottleneck_forward.5} parent=5 // pred_region
      %s2086 = ssub.s32 %s12, 2
      // Predicated region
      $region49: #{bottleneck_forward.5} parent=47 // pred_check
        %p2087 = pneg %p130
      $region50: #{bottleneck_forward.5} parent=47 // pred_check_branch
        %2089 = sbr.rel (%p2087) target = $region52
      $region51: #{bottleneck_forward.5} parent=47 // pred_region
        %p2090 = scmp.lt.s32.totalorder %s18, 1
        %s2091 = scalar_select %p2090, %s18, 1
        %s2092 = smul.addr %s2091, 32
        %s2093 = smul.addr %s2092, 8
        %s2094 = scalar_lea.vmem %s4, %s2093
      $region52: #{bottleneck_forward.5} parent=47 // pred_fallthru
        _
      // Predicated region
      $region53: #{bottleneck_forward.5} parent=47 // pred_check
        %p2095 = pneg %p156
      $region54: #{bottleneck_forward.5} parent=47 // pred_check_branch
        %2097 = sbr.rel (%p2095) target = $region56
      $region55: #{bottleneck_forward.5} parent=47 // pred_region
        %p2098 = scmp.lt.s32.totalorder %s18, 1
        %s2099 = scalar_select %p2098, %s18, 1
        %s2100 = smul.addr %s2099, 8
        %s2101 = scalar_lea.vmem %s5, %s2100
      $region56: #{bottleneck_forward.5} parent=47 // pred_fallthru
        _
    $region48: #{bottleneck_forward.5} parent=5 // pred_fallthru
      _
  $region6: #{bottleneck_forward.5} parent=0 // loop_footer
    %s16 = sadd.s32 1, %s12
  $region7: #{bottleneck_forward.5} parent=0 // loop_footer_branch
    %11 = sbr.rel target = $region3
  $region8: #{bottleneck_forward.5} parent=0 // loop_exit
    _

</llo_original>
